<compile_context>
chip_gen: v6e
topology: v6e:2x2x1
jax: 0.10.0
libtpu: 0.0.40
codegen_flags: <defaults>
</compile_context>

<pallas_src>
import jax
import jax.numpy as jnp
from jax.experimental import pallas as pl
from jax.experimental.pallas import tpu as pltpu

# ----------------------- small synthetic BLIP config -----------------------
BATCH = 2
IMG_C, IMG_HW, PATCH = 3, 16, 8                  # 4 patches + 1 cls = 5 tokens
N_PATCH = (IMG_HW // PATCH) ** 2
VIS_SEQ = N_PATCH + 1
PATCH_DIM = IMG_C * PATCH * PATCH                # 192
VISION_WIDTH, VIT_DEPTH, VIT_HEADS = 128, 2, 4   # lane-dense hidden width
VIT_MLP = 4 * VISION_WIDTH
TEXT_WIDTH, BERT_DEPTH, BERT_HEADS = 128, 2, 4
BERT_INTER = 4 * TEXT_WIDTH
SEQ_LEN = 8                                      # stands in for max_length=35
VOCAB = 64
EMBED_DIM = 128
LN_EPS_VIT = 1e-6
LN_EPS_BERT = 1e-12
N_VEC_ROWS = 16                                  # packed per-layer vector rows


# --------------------------- in-kernel helpers ------------------------------
def _ln(x, g, b, eps):
    mu = jnp.mean(x, axis=-1, keepdims=True)
    var = jnp.mean(jnp.square(x - mu), axis=-1, keepdims=True)
    return (x - mu) * jax.lax.rsqrt(var + eps) * g + b


def _mm(a, w):
    """bf16 MXU matmul with f32 accumulation (w already bf16)."""
    return jnp.dot(a.astype(jnp.bfloat16), w, preferred_element_type=jnp.float32)


def _gelu(x):
    # TODO(synk): timm / BERT default to exact erf-GELU; the tanh approximation
    # is kept for guaranteed Mosaic lowering (tiny numeric deviation).
    return jax.nn.gelu(x, approximate=True)


def _mha(x, bias, qkv_w, q_b, k_b, v_b, proj_w, proj_b, n_heads, ctx_ref):
    """Per-batch multi-head self-attention on a (S, D) activation.

    * fused (D, 3D) QKV matmul (lane-dense output)
    * per-head scores/softmax (static unroll, heads are tiny here)
    * head merge done by writing each head's context into its lane slice of the
      ctx_ref VMEM buffer, then ONE (S, D) @ (D, D) output projection.
    * `bias` is an optional additive (1, S) key mask (0 valid / -1e9 padded).
    """
    s, d = x.shape
    dh = d // n_heads
    scale = dh ** -0.5

    qkv = _mm(x, qkv_w)                                       # (s, 3d) f32
    q = ((qkv[:, 0:d] + q_b) * scale).astype(jnp.bfloat16)
    k = (qkv[:, d:2 * d] + k_b).astype(jnp.bfloat16)
    v = (qkv[:, 2 * d:3 * d] + v_b).astype(jnp.bfloat16)

    # TODO(synk): at production widths the per-head QK^T / PV contractions
    # (K = Dh) would be packed/batched to keep the MXU contraction >= 128 wide.
    for h in range(n_heads):                                  # static unroll
        sl = slice(h * dh, (h + 1) * dh)
        sc = jax.lax.dot_general(q[:, sl], k[:, sl], (((1,), (1,)), ((), ())),
                                 preferred_element_type=jnp.float32)
        if bias is not None:
            sc = sc + bias
        sc = sc - jnp.max(sc, axis=-1, keepdims=True)
        p = jnp.exp(sc)
        p = p * pl.reciprocal(jnp.sum(p, axis=-1, keepdims=True), approx=True)
        ctx_ref[:, sl] = jnp.dot(p.astype(jnp.bfloat16), v[:, sl],
                                 preferred_element_type=jnp.float32)

    return _mm(ctx_ref[...], proj_w) + proj_b                 # fused head merge


# --------------------------- fused ViT encoder -------------------------------
# packed per-layer vector rows (f32, (L, 16, D)):
#   0 ln1_g | 1 ln1_b | 2 q_b | 3 k_b | 4 v_b | 5 proj_b | 6 ln2_g | 7 ln2_b
#   8..11 fc1_b (MLP split in D-wide chunks) | 12 fc2_b | 13..15 zero pad
def _vit_encoder_kernel(patches_ref, pw_ref, base_ref,
                        qkvw_ref, projw_ref, fc1w_ref, fc2w_ref,
                        vecs_ref, lnf_ref, out_ref, ctx_sc):
    layer = pl.program_id(1)

    @pl.when(layer == 0)
    def _():
        # Patch embedding.  Row 0 of `patches` is a zero row standing in for
        # the cls token so the matmul output aligns 1:1 with the token rows;
        # patch bias + positional embeddings are pre-folded into `base`.
        out_ref[0] = base_ref[...] + _mm(patches_ref[0], pw_ref[...])

    x = out_ref[0]                           # activation resident across layers
    vecs = vecs_ref[0]                       # (16, D) packed per-layer vectors
    ln1_g, ln1_b = vecs[0:1], vecs[1:2]
    q_b, k_b, v_b = vecs[2:3], vecs[3:4], vecs[4:5]
    proj_b = vecs[5:6]
    ln2_g, ln2_b = vecs[6:7], vecs[7:8]
    n_ch = VIT_MLP // VISION_WIDTH
    fc1_b = jnp.concatenate([vecs[8 + i:9 + i] for i in range(n_ch)], axis=-1)
    fc2_b = vecs[8 + n_ch:9 + n_ch]

    # pre-LN attention block
    y = _ln(x, ln1_g, ln1_b, LN_EPS_VIT)
    x = x + _mha(y, None, qkvw_ref[0], q_b, k_b, v_b, projw_ref[0], proj_b,
                 VIT_HEADS, ctx_sc)
    # pre-LN MLP block
    y = _ln(x, ln2_g, ln2_b, LN_EPS_VIT)
    h = _gelu(_mm(y, fc1w_ref[0]) + fc1_b)
    x = x + _mm(h, fc2w_ref[0]) + fc2_b
    out_ref[0] = x

    @pl.when(layer == pl.num_programs(1) - 1)
    def _():
        out_ref[0] = _ln(x, lnf_ref[0:1], lnf_ref[1:2], LN_EPS_VIT)


def vit_encoder(patches, base, p):
    B, S, PD = patches.shape
    D = VISION_WIDTH
    L = VIT_DEPTH

    def rep(shape):
        return pl.BlockSpec(shape, lambda b, l: (0,) * len(shape))

    def batch_block(shape):
        return pl.BlockSpec((1,) + shape[1:],
                            lambda b, l: (b,) + (0,) * (len(shape) - 1))

    def layer_block(shape):
        return pl.BlockSpec((1,) + shape[1:],
                            lambda b, l: (l,) + (0,) * (len(shape) - 1))

    return pl.pallas_call(
        _vit_encoder_kernel,
        out_shape=jax.ShapeDtypeStruct((B, S, D), jnp.float32),
        grid=(B, L),
        in_specs=[
            batch_block((B, S, PD)),            # patches (zero cls row prepended)
            rep((PD, D)),                       # patch embedding weight
            rep((S, D)),                        # cls/pos/patch-bias base
            layer_block((L, D, 3 * D)),         # fused QKV weight
            layer_block((L, D, D)),             # attention out-projection
            layer_block((L, D, VIT_MLP)),       # MLP fc1
            layer_block((L, VIT_MLP, D)),       # MLP fc2
            layer_block((L, N_VEC_ROWS, D)),    # packed LN scales + biases
            rep((2, D)),                        # final LN (g, b)
        ],
        out_specs=batch_block((B, S, D)),
        scratch_shapes=[pltpu.VMEM((S, D), jnp.float32)],
        compiler_params=pltpu.CompilerParams(
            dimension_semantics=("parallel", "arbitrary"),
            vmem_limit_bytes=32 * 1024 * 1024),
    )(patches, p["patch_w"], base, p["qkv_w"], p["proj_w"],
      p["fc1_w"], p["fc2_w"], p["vecs"], p["lnf"])


# --------------------------- fused BERT encoder ------------------------------
# packed per-layer vector rows (f32, (L, 16, T)):
#   0 q_b | 1 k_b | 2 v_b | 3 ao_b | 4 aln_g | 5 aln_b
#   6..9 inter_b (D-wide chunks) | 10 out_b | 11 oln_g | 12 oln_b | 13..15 pad
def _bert_encoder_kernel(emb_ref, mask_ref, eln_ref,
                         qkvw_ref, aow_ref, iw_ref, ow_ref,
                         vecs_ref, out_ref, ctx_sc):
    layer = pl.program_id(1)

    @pl.when(layer == 0)
    def _():
        out_ref[0] = _ln(emb_ref[0], eln_ref[0:1], eln_ref[1:2], LN_EPS_BERT)

    x = out_ref[0]
    # key-padding mask generated in-kernel (no dense (R, R) bias DMA):
    # 0 on valid keys, -1e9 on padded keys; broadcast over query rows.
    bias = (mask_ref[0] - 1.0) * 1e9

    vecs = vecs_ref[0]
    q_b, k_b, v_b = vecs[0:1], vecs[1:2], vecs[2:3]
    ao_b = vecs[3:4]
    aln_g, aln_b = vecs[4:5], vecs[5:6]
    n_ch = BERT_INTER // TEXT_WIDTH
    inter_b = jnp.concatenate([vecs[6 + i:7 + i] for i in range(n_ch)], axis=-1)
    out_b = vecs[6 + n_ch:7 + n_ch]
    oln_g, oln_b = vecs[7 + n_ch:8 + n_ch], vecs[8 + n_ch:9 + n_ch]

    # post-LN BERT layer
    a = _mha(x, bias, qkvw_ref[0], q_b, k_b, v_b, aow_ref[0], ao_b,
             BERT_HEADS, ctx_sc)
    x = _ln(x + a, aln_g, aln_b, LN_EPS_BERT)
    h = _gelu(_mm(x, iw_ref[0]) + inter_b)
    x = _ln(x + _mm(h, ow_ref[0]) + out_b, oln_g, oln_b, LN_EPS_BERT)
    out_ref[0] = x


def bert_encoder(emb, mask, p):
    B, S, T = emb.shape
    L = BERT_DEPTH

    def rep(shape):
        return pl.BlockSpec(shape, lambda b, l: (0,) * len(shape))

    def batch_block(shape):
        return pl.BlockSpec((1,) + shape[1:],
                            lambda b, l: (b,) + (0,) * (len(shape) - 1))

    def layer_block(shape):
        return pl.BlockSpec((1,) + shape[1:],
                            lambda b, l: (l,) + (0,) * (len(shape) - 1))

    return pl.pallas_call(
        _bert_encoder_kernel,
        out_shape=jax.ShapeDtypeStruct((B, S, T), jnp.float32),
        grid=(B, L),
        in_specs=[
            batch_block((B, S, T)),             # token + pos + type embeddings
            batch_block((B, 1, S)),             # attention mask row
            rep((2, T)),                        # embedding LN (g, b)
            layer_block((L, T, 3 * T)),         # fused QKV weight
            layer_block((L, T, T)),             # attention output dense
            layer_block((L, T, BERT_INTER)),    # intermediate dense
            layer_block((L, BERT_INTER, T)),    # output dense
            layer_block((L, N_VEC_ROWS, T)),    # packed LN scales + biases
        ],
        out_specs=batch_block((B, S, T)),
        scratch_shapes=[pltpu.VMEM((S, T), jnp.float32)],
        compiler_params=pltpu.CompilerParams(
            dimension_semantics=("parallel", "arbitrary"),
            vmem_limit_bytes=32 * 1024 * 1024),
    )(emb, mask, p["eln"], p["qkv_w"], p["ao_w"], p["inter_w"], p["out_w"],
      p["vecs"])


# ------------------ fused projections + contrastive (ITA) loss ---------------
def _proj_ita_kernel(ic_ref, vw_ref, vb_ref, tc_ref, tw_ref, tb_ref, invt_ref,
                     o_ref):
    inv_temp = invt_ref[0, 0]
    img = _mm(ic_ref[...], vw_ref[...]) + vb_ref[...]
    txt = _mm(tc_ref[...], tw_ref[...]) + tb_ref[...]

    def l2norm(x):                                   # F.normalize(dim=-1)
        return x * jax.lax.rsqrt(jnp.sum(x * x, axis=-1, keepdims=True) + 1e-12)

    fi = l2norm(img).astype(jnp.bfloat16)
    ft = l2norm(txt).astype(jnp.bfloat16)

    def dot_nt(a, b):                                # a @ b.T on the MXU
        return jax.lax.dot_general(a, b, (((1,), (1,)), ((), ())),
                                   preferred_element_type=jnp.float32)

    sim_i2t = dot_nt(fi, ft) * inv_temp
    sim_t2i = dot_nt(ft, fi) * inv_temp

    B = sim_i2t.shape[0]
    eye = (jax.lax.broadcasted_iota(jnp.int32, (B, B), 0)
           == jax.lax.broadcasted_iota(jnp.int32, (B, B), 1)).astype(jnp.float32)

    def log_softmax(s):
        m = jnp.max(s, axis=1, keepdims=True)
        z = s - m
        return z - jnp.log(jnp.sum(jnp.exp(z), axis=1, keepdims=True))

    nll_i2t = -jnp.sum(log_softmax(sim_i2t) * eye, axis=1, keepdims=True)
    nll_t2i = -jnp.sum(log_softmax(sim_t2i) * eye, axis=1, keepdims=True)
    loss = 0.5 * (jnp.sum(nll_i2t, axis=0, keepdims=True)
                  + jnp.sum(nll_t2i, axis=0, keepdims=True)) / B
    o_ref[...] = loss


def proj_ita_loss(image_cls, vw, vb, text_cls, tw, tb, inv_temp):
    B, Dv = image_cls.shape
    Dt = text_cls.shape[1]
    E = vw.shape[1]

    def full(shape):
        return pl.BlockSpec(shape, lambda i: (0,) * len(shape))

    return pl.pallas_call(
        _proj_ita_kernel,
        out_shape=jax.ShapeDtypeStruct((1, 1), jnp.float32),
        grid=(1,),
        in_specs=[full((B, Dv)), full((Dv, E)), full((1, E)),
                  full((B, Dt)), full((Dt, E)), full((1, E)),
                  pl.BlockSpec(memory_space=pltpu.MemorySpace.SMEM)],
        out_specs=full((1, 1)),
    )(image_cls, vw, vb, text_cls, tw, tb, inv_temp.reshape(1, 1))


# ------------------------------ parameters ----------------------------------
def _pack_vecs(rows, n_rows=N_VEC_ROWS):
    """Concat (L, k_i, D) row groups along axis 1 and zero-pad to n_rows."""
    packed = jnp.concatenate(rows, axis=1)
    L, used, D = packed.shape
    pad = n_rows - used
    return jnp.concatenate([packed, jnp.zeros((L, pad, D), jnp.float32)], axis=1)


def init_params(key):
    keys = iter(jax.random.split(key, 64))
    nrm = lambda shape: 0.02 * jax.random.normal(next(keys), shape, jnp.float32)

    D, L = VISION_WIDTH, VIT_DEPTH
    ones = lambda depth, d: jnp.ones((depth, 1, d), jnp.float32)
    vit_vecs = _pack_vecs([
        ones(L, D), nrm((L, 1, D)),                    # ln1 g, b
        nrm((L, 3, D)),                                # q / k / v biases
        nrm((L, 1, D)),                                # attn out-proj bias
        ones(L, D), nrm((L, 1, D)),                    # ln2 g, b
        nrm((L, VIT_MLP // D, D)),                     # fc1 bias (D-wide chunks)
        nrm((L, 1, D)),                                # fc2 bias
    ])
    vit = {
        "patch_w": nrm((PATCH_DIM, D)).astype(jnp.bfloat16),
        "patch_b": nrm((D,)),
        "cls": nrm((1, D)),
        "pos": nrm((VIS_SEQ, D)),
        "qkv_w": nrm((L, D, 3 * D)).astype(jnp.bfloat16),
        "proj_w": nrm((L, D, D)).astype(jnp.bfloat16),
        "fc1_w": nrm((L, D, VIT_MLP)).astype(jnp.bfloat16),
        "fc2_w": nrm((L, VIT_MLP, D)).astype(jnp.bfloat16),
        "vecs": vit_vecs,
        "lnf": jnp.concatenate([jnp.ones((1, D), jnp.float32),
                                jnp.zeros((1, D), jnp.float32)], axis=0),
    }

    T, Lt = TEXT_WIDTH, BERT_DEPTH
    bert_vecs = _pack_vecs([
        nrm((Lt, 3, T)),                               # q / k / v biases
        nrm((Lt, 1, T)),                               # attn output bias
        ones(Lt, T), nrm((Lt, 1, T)),                  # attn LN g, b
        nrm((Lt, BERT_INTER // T, T)),                 # intermediate bias
        nrm((Lt, 1, T)),                               # output bias
        ones(Lt, T), nrm((Lt, 1, T)),                  # output LN g, b
    ])
    bert = {
        "word_emb": nrm((VOCAB, T)),
        "pos_emb": nrm((SEQ_LEN, T)),
        "type_emb": nrm((2, T)),
        "eln": jnp.concatenate([jnp.ones((1, T), jnp.float32),
                                jnp.zeros((1, T), jnp.float32)], axis=0),
        "qkv_w": nrm((Lt, T, 3 * T)).astype(jnp.bfloat16),
        "ao_w": nrm((Lt, T, T)).astype(jnp.bfloat16),
        "inter_w": nrm((Lt, T, BERT_INTER)).astype(jnp.bfloat16),
        "out_w": nrm((Lt, BERT_INTER, T)).astype(jnp.bfloat16),
        "vecs": bert_vecs,
    }

    return {
        "vit": vit,
        "bert": bert,
        "vision_proj_w": nrm((D, EMBED_DIM)).astype(jnp.bfloat16),
        "vision_proj_b": jnp.zeros((1, EMBED_DIM), jnp.float32),
        "text_proj_w": nrm((T, EMBED_DIM)).astype(jnp.bfloat16),
        "text_proj_b": jnp.zeros((1, EMBED_DIM), jnp.float32),
        "temp": jnp.array(0.07, jnp.float32),
    }


# ------------------------------ forward glue ---------------------------------
def blip_forward(image, input_ids, attention_mask, params):
    # TODO(synk): the HuggingFace BertTokenizer has no Pallas/JAX equivalent;
    # the caption is passed in as pre-tokenized integer ids + attention mask.
    temp = jnp.clip(params["temp"], 0.001, 0.5)      # temp.clamp_(0.001, 0.5)
    inv_temp = 1.0 / temp

    # ---- vision branch (fused ViT encoder kernel) ----
    vit_p = params["vit"]
    B, C, H, W = image.shape
    nph, npw = H // PATCH, W // PATCH
    patches = image.reshape(B, C, nph, PATCH, npw, PATCH)
    patches = patches.transpose(0, 2, 4, 1, 3, 5).reshape(B, nph * npw, PATCH_DIM)
    # prepend a zero "cls" row so patch rows align 1:1 with token rows
    patches = jnp.concatenate(
        [jnp.zeros((B, 1, PATCH_DIM), patches.dtype), patches], axis=1)
    # cls + positional embeddings, patch bias folded into the patch rows
    base = jnp.concatenate(
        [vit_p["cls"] + vit_p["pos"][0:1],
         vit_p["pos"][1:] + vit_p["patch_b"][None, :]], axis=0)
    image_hidden = vit_encoder(patches, base, vit_p)         # (B, S_v, D)
    image_cls = image_hidden[:, 0, :]

    # ---- text branch (fused BERT encoder kernel) ----
    # TODO(synk): embedding-table gathers stay in plain JAX (tiny data-dependent
    # gather); everything downstream runs in the fused kernel.
    bert_p = params["bert"]
    Bt, S = input_ids.shape
    emb = (bert_p["word_emb"][input_ids]
           + bert_p["pos_emb"][None, :S, :]
           + bert_p["type_emb"][0][None, None, :])           # (B, S, T)
    mask3 = attention_mask.astype(jnp.float32).reshape(Bt, 1, S)
    text_hidden = bert_encoder(emb, mask3, bert_p)           # (B, S, T)
    text_cls = text_hidden[:, 0, :]

    # ---- fused projection + normalize + sim + log_softmax + ITA loss ----
    loss = proj_ita_loss(image_cls, params["vision_proj_w"],
                         params["vision_proj_b"], text_cls,
                         params["text_proj_w"], params["text_proj_b"], inv_temp)
    return loss[0, 0], None


# ---------------------------------- main -------------------------------------
if __name__ == "__main__":
    key = jax.random.PRNGKey(0)
    pkey, ikey, tkey = jax.random.split(key, 3)

    params = init_params(pkey)
    image = jax.random.normal(ikey, (BATCH, IMG_C, IMG_HW, IMG_HW), jnp.float32)
    input_ids = jax.random.randint(tkey, (BATCH, SEQ_LEN), 0, VOCAB)
    # second caption has two padded positions to exercise the key-padding mask
    attention_mask = jnp.ones((BATCH, SEQ_LEN), jnp.float32).at[1, 6:].set(0.0)

    loss_ita, _ = jax.jit(blip_forward)(image, input_ids, attention_mask, params)
    jax.block_until_ready(loss_ita)
    print("KERNEL_OK")
</pallas_src>

<mosaic_0001>
module attributes {stable_mosaic.version = 11 : i64} {
  func.func @_vit_encoder_kernel(%arg0: i32, %arg1: i32, %arg2: memref<1x5x192xf32, #tpu.memory_space<vmem>>, %arg3: memref<192x128xbf16, #tpu.memory_space<vmem>>, %arg4: memref<5x128xf32, #tpu.memory_space<vmem>>, %arg5: memref<1x128x384xbf16, #tpu.memory_space<vmem>>, %arg6: memref<1x128x128xbf16, #tpu.memory_space<vmem>>, %arg7: memref<1x128x512xbf16, #tpu.memory_space<vmem>>, %arg8: memref<1x512x128xbf16, #tpu.memory_space<vmem>>, %arg9: memref<1x16x128xf32, #tpu.memory_space<vmem>>, %arg10: memref<2x128xf32, #tpu.memory_space<vmem>>, %arg11: memref<1x5x128xf32, #tpu.memory_space<vmem>>, %arg12: memref<5x128xf32, #tpu.memory_space<vmem>>) attributes {dimension_semantics = [#tpu.dimension_semantics<parallel>, #tpu.dimension_semantics<arbitrary>], iteration_bounds = array<i64: 2, 2>, scalar_prefetch = 0 : i64, scratch_operands = 1 : i64, tpu.core_type = #tpu.core_type<tc>, window_params = [{transform_indices = @transform_0, window_bounds = array<i64: 1, 5, 192>}, {pipeline_mode = #tpu.pipeline_mode<synchronous>, transform_indices = @transform_1, window_bounds = array<i64: 192, 128>}, {pipeline_mode = #tpu.pipeline_mode<synchronous>, transform_indices = @transform_2, window_bounds = array<i64: 5, 128>}, {transform_indices = @transform_3, window_bounds = array<i64: 1, 128, 384>}, {transform_indices = @transform_4, window_bounds = array<i64: 1, 128, 128>}, {transform_indices = @transform_5, window_bounds = array<i64: 1, 128, 512>}, {transform_indices = @transform_6, window_bounds = array<i64: 1, 512, 128>}, {transform_indices = @transform_7, window_bounds = array<i64: 1, 16, 128>}, {pipeline_mode = #tpu.pipeline_mode<synchronous>, transform_indices = @transform_8, window_bounds = array<i64: 2, 128>}, {transform_indices = @transform_9, window_bounds = array<i64: 1, 5, 128>}]} {
    %c0_i32 = arith.constant 0 : i32
    %0 = arith.cmpi eq, %arg1, %c0_i32 : i32
    %1 = arith.extui %0 : i1 to i32
    %c0_i32_0 = arith.constant 0 : i32
    %2 = arith.cmpi ne, %1, %c0_i32_0 : i32
    scf.if %2 {
      %c0_63 = arith.constant 0 : index
      %c0_64 = arith.constant 0 : index
      %191 = vector.load %arg4[%c0_63, %c0_64] : memref<5x128xf32, #tpu.memory_space<vmem>>, vector<5x128xf32>
      %c0_65 = arith.constant 0 : index
      %c0_66 = arith.constant 0 : index
      %c0_67 = arith.constant 0 : index
      %192 = vector.load %arg2[%c0_65, %c0_66, %c0_67] : memref<1x5x192xf32, #tpu.memory_space<vmem>>, vector<1x5x192xf32>
      %193 = vector.shape_cast %192 : vector<1x5x192xf32> to vector<5x192xf32>
      %c0_68 = arith.constant 0 : index
      %c0_69 = arith.constant 0 : index
      %194 = vector.load %arg3[%c0_68, %c0_69] : memref<192x128xbf16, #tpu.memory_space<vmem>>, vector<192x128xbf16>
      %195 = arith.truncf %193 : vector<5x192xf32> to vector<5x192xbf16>
      %cst_70 = arith.constant dense<0.000000e+00> : vector<5x128xf32>
      %196 = tpu.matmul %195, %194, %cst_70 {dimension_numbers = #tpu.dot_dimension_numbers<[1], [0], [0], [1], [0, 0, 1, 1], [], []>} : vector<5x192xbf16>, vector<192x128xbf16>, vector<5x128xf32> -> vector<5x128xf32>
      %197 = arith.addf %191, %196 : vector<5x128xf32>
      %c0_71 = arith.constant 0 : index
      %c0_72 = arith.constant 0 : index
      %c0_73 = arith.constant 0 : index
      %198 = vector.load %arg11[%c0_71, %c0_72, %c0_73] : memref<1x5x128xf32, #tpu.memory_space<vmem>>, vector<1x5x128xf32>
      %199 = vector.shape_cast %198 : vector<1x5x128xf32> to vector<5x128xf32>
      %200 = vector.shape_cast %197 : vector<5x128xf32> to vector<1x5x128xf32>
      tpu.vector_store %arg11[%c0_71, %c0_72, %c0_73], %200 {strides = array<i32>} : memref<1x5x128xf32, #tpu.memory_space<vmem>>, vector<1x5x128xf32>,
    } else {
    }
    %c0 = arith.constant 0 : index
    %c0_1 = arith.constant 0 : index
    %c0_2 = arith.constant 0 : index
    %3 = vector.load %arg11[%c0, %c0_1, %c0_2] : memref<1x5x128xf32, #tpu.memory_space<vmem>>, vector<1x5x128xf32>
    %4 = vector.shape_cast %3 : vector<1x5x128xf32> to vector<5x128xf32>
    %c0_3 = arith.constant 0 : index
    %c0_4 = arith.constant 0 : index
    %c0_5 = arith.constant 0 : index
    %5 = vector.load %arg9[%c0_3, %c0_4, %c0_5] : memref<1x16x128xf32, #tpu.memory_space<vmem>>, vector<1x16x128xf32>
    %6 = vector.shape_cast %5 : vector<1x16x128xf32> to vector<16x128xf32>
    %7 = vector.extract_strided_slice %6 {offsets = [0, 0], sizes = [1, 128], strides = [1, 1]} : vector<16x128xf32> to vector<1x128xf32>
    %8 = vector.extract_strided_slice %6 {offsets = [1, 0], sizes = [1, 128], strides = [1, 1]} : vector<16x128xf32> to vector<1x128xf32>
    %9 = vector.extract_strided_slice %6 {offsets = [2, 0], sizes = [1, 128], strides = [1, 1]} : vector<16x128xf32> to vector<1x128xf32>
    %10 = vector.extract_strided_slice %6 {offsets = [3, 0], sizes = [1, 128], strides = [1, 1]} : vector<16x128xf32> to vector<1x128xf32>
    %11 = vector.extract_strided_slice %6 {offsets = [4, 0], sizes = [1, 128], strides = [1, 1]} : vector<16x128xf32> to vector<1x128xf32>
    %12 = vector.extract_strided_slice %6 {offsets = [5, 0], sizes = [1, 128], strides = [1, 1]} : vector<16x128xf32> to vector<1x128xf32>
    %13 = vector.extract_strided_slice %6 {offsets = [6, 0], sizes = [1, 128], strides = [1, 1]} : vector<16x128xf32> to vector<1x128xf32>
    %14 = vector.extract_strided_slice %6 {offsets = [7, 0], sizes = [1, 128], strides = [1, 1]} : vector<16x128xf32> to vector<1x128xf32>
    %15 = vector.extract_strided_slice %6 {offsets = [8, 0], sizes = [1, 128], strides = [1, 1]} : vector<16x128xf32> to vector<1x128xf32>
    %16 = vector.extract_strided_slice %6 {offsets = [9, 0], sizes = [1, 128], strides = [1, 1]} : vector<16x128xf32> to vector<1x128xf32>
    %17 = vector.extract_strided_slice %6 {offsets = [10, 0], sizes = [1, 128], strides = [1, 1]} : vector<16x128xf32> to vector<1x128xf32>
    %18 = vector.extract_strided_slice %6 {offsets = [11, 0], sizes = [1, 128], strides = [1, 1]} : vector<16x128xf32> to vector<1x128xf32>
    %19 = tpu.concatenate %15, %16, %17, %18 in 1 : vector<1x128xf32>, vector<1x128xf32>, vector<1x128xf32>, vector<1x128xf32> -> vector<1x512xf32>
    %20 = vector.extract_strided_slice %6 {offsets = [12, 0], sizes = [1, 128], strides = [1, 1]} : vector<16x128xf32> to vector<1x128xf32>
    %cst = arith.constant dense<0.000000e+00> : vector<5xf32>
    %21 = vector.multi_reduction <add>, %4, %cst [1] : vector<5x128xf32> to vector<5xf32>
    %22 = vector.shape_cast %21 : vector<5xf32> to vector<5x1xf32>
    %cst_6 = arith.constant 1.280000e+02 : f32
    %23 = vector.broadcast %cst_6 : f32 to vector<5x1xf32>
    %24 = arith.divf %22, %23 : vector<5x1xf32>
    %25 = vector.broadcast %24 : vector<5x1xf32> to vector<5x128xf32>
    %26 = arith.subf %4, %25 : vector<5x128xf32>
    %27 = arith.mulf %26, %26 : vector<5x128xf32>
    %cst_7 = arith.constant dense<0.000000e+00> : vector<5xf32>
    %28 = vector.multi_reduction <add>, %27, %cst_7 [1] : vector<5x128xf32> to vector<5xf32>
    %29 = vector.shape_cast %28 : vector<5xf32> to vector<5x1xf32>
    %cst_8 = arith.constant 1.280000e+02 : f32
    %30 = vector.broadcast %cst_8 : f32 to vector<5x1xf32>
    %31 = arith.divf %29, %30 : vector<5x1xf32>
    %32 = vector.broadcast %24 : vector<5x1xf32> to vector<5x128xf32>
    %33 = arith.subf %4, %32 : vector<5x128xf32>
    %cst_9 = arith.constant 9.99999997E-7 : f32
    %34 = vector.broadcast %cst_9 : f32 to vector<5x1xf32>
    %35 = arith.addf %31, %34 : vector<5x1xf32>
    %36 = math.rsqrt %35 : vector<5x1xf32>
    %37 = vector.broadcast %36 : vector<5x1xf32> to vector<5x128xf32>
    %38 = arith.mulf %33, %37 : vector<5x128xf32>
    %39 = vector.broadcast %7 : vector<1x128xf32> to vector<5x128xf32>
    %40 = arith.mulf %38, %39 : vector<5x128xf32>
    %41 = vector.broadcast %8 : vector<1x128xf32> to vector<5x128xf32>
    %42 = arith.addf %40, %41 : vector<5x128xf32>
    %c0_10 = arith.constant 0 : index
    %c0_11 = arith.constant 0 : index
    %c0_12 = arith.constant 0 : index
    %43 = vector.load %arg5[%c0_10, %c0_11, %c0_12] : memref<1x128x384xbf16, #tpu.memory_space<vmem>>, vector<1x128x384xbf16>
    %44 = vector.shape_cast %43 : vector<1x128x384xbf16> to vector<128x384xbf16>
    %c0_13 = arith.constant 0 : index
    %c0_14 = arith.constant 0 : index
    %c0_15 = arith.constant 0 : index
    %45 = vector.load %arg6[%c0_13, %c0_14, %c0_15] : memref<1x128x128xbf16, #tpu.memory_space<vmem>>, vector<1x128x128xbf16>
    %46 = vector.shape_cast %45 : vector<1x128x128xbf16> to vector<128x128xbf16>
    %47 = arith.truncf %42 : vector<5x128xf32> to vector<5x128xbf16>
    %cst_16 = arith.constant dense<0.000000e+00> : vector<5x384xf32>
    %48 = tpu.matmul %47, %44, %cst_16 {dimension_numbers = #tpu.dot_dimension_numbers<[1], [0], [0], [1], [0, 0, 1, 1], [], []>} : vector<5x128xbf16>, vector<128x384xbf16>, vector<5x384xf32> -> vector<5x384xf32>
    %49 = vector.extract_strided_slice %48 {offsets = [0, 0], sizes = [5, 128], strides = [1, 1]} : vector<5x384xf32> to vector<5x128xf32>
    %50 = vector.broadcast %9 : vector<1x128xf32> to vector<5x128xf32>
    %51 = arith.addf %49, %50 : vector<5x128xf32>
    %cst_17 = arith.constant 0.176776692 : f32
    %52 = vector.broadcast %cst_17 : f32 to vector<5x128xf32>
    %53 = arith.mulf %51, %52 : vector<5x128xf32>
    %54 = arith.truncf %53 : vector<5x128xf32> to vector<5x128xbf16>
    %55 = vector.extract_strided_slice %48 {offsets = [0, 128], sizes = [5, 128], strides = [1, 1]} : vector<5x384xf32> to vector<5x128xf32>
    %56 = vector.broadcast %10 : vector<1x128xf32> to vector<5x128xf32>
    %57 = arith.addf %55, %56 : vector<5x128xf32>
    %58 = arith.truncf %57 : vector<5x128xf32> to vector<5x128xbf16>
    %59 = vector.extract_strided_slice %48 {offsets = [0, 256], sizes = [5, 128], strides = [1, 1]} : vector<5x384xf32> to vector<5x128xf32>
    %60 = vector.broadcast %11 : vector<1x128xf32> to vector<5x128xf32>
    %61 = arith.addf %59, %60 : vector<5x128xf32>
    %62 = arith.truncf %61 : vector<5x128xf32> to vector<5x128xbf16>
    %63 = vector.extract_strided_slice %54 {offsets = [0, 0], sizes = [5, 32], strides = [1, 1]} : vector<5x128xbf16> to vector<5x32xbf16>
    %64 = vector.extract_strided_slice %58 {offsets = [0, 0], sizes = [5, 32], strides = [1, 1]} : vector<5x128xbf16> to vector<5x32xbf16>
    %cst_18 = arith.constant dense<0.000000e+00> : vector<5x5xf32>
    %65 = tpu.matmul %63, %64, %cst_18 {dimension_numbers = #tpu.dot_dimension_numbers<[1], [1], [0], [0], [0, 0, 1, 0], [], []>} : vector<5x32xbf16>, vector<5x32xbf16>, vector<5x5xf32> -> vector<5x5xf32>
    %cst_19 = arith.constant dense<0xFF800000> : vector<5xf32>
    %66 = vector.multi_reduction <maximumf>, %65, %cst_19 [1] : vector<5x5xf32> to vector<5xf32>
    %67 = vector.shape_cast %66 : vector<5xf32> to vector<5x1xf32>
    %68 = vector.broadcast %67 : vector<5x1xf32> to vector<5x5xf32>
    %69 = arith.subf %65, %68 : vector<5x5xf32>
    %70 = math.exp %69 : vector<5x5xf32>
    %cst_20 = arith.constant dense<0.000000e+00> : vector<5xf32>
    %71 = vector.multi_reduction <add>, %70, %cst_20 [1] : vector<5x5xf32> to vector<5xf32>
    %72 = vector.shape_cast %71 : vector<5xf32> to vector<5x1xf32>
    %73 = tpu.reciprocal %72 {approx = true} : vector<5x1xf32> -> vector<5x1xf32>
    %74 = vector.broadcast %73 : vector<5x1xf32> to vector<5x5xf32>
    %75 = arith.mulf %70, %74 : vector<5x5xf32>
    %76 = arith.truncf %75 : vector<5x5xf32> to vector<5x5xbf16>
    %77 = vector.extract_strided_slice %62 {offsets = [0, 0], sizes = [5, 32], strides = [1, 1]} : vector<5x128xbf16> to vector<5x32xbf16>
    %cst_21 = arith.constant dense<0.000000e+00> : vector<5x32xf32>
    %78 = tpu.matmul %76, %77, %cst_21 {dimension_numbers = #tpu.dot_dimension_numbers<[1], [0], [0], [1], [0, 0, 1, 1], [], []>} : vector<5x5xbf16>, vector<5x32xbf16>, vector<5x32xf32> -> vector<5x32xf32>
    %c0_22 = arith.constant 0 : index
    %c0_23 = arith.constant 0 : index
    %79 = vector.load %arg12[%c0_22, %c0_23] : memref<5x128xf32, #tpu.memory_space<vmem>>, vector<5x32xf32>
    tpu.vector_store %arg12[%c0_22, %c0_23], %78 {strides = array<i32>} : memref<5x128xf32, #tpu.memory_space<vmem>>, vector<5x32xf32>,
    %80 = vector.extract_strided_slice %54 {offsets = [0, 32], sizes = [5, 32], strides = [1, 1]} : vector<5x128xbf16> to vector<5x32xbf16>
    %81 = vector.extract_strided_slice %58 {offsets = [0, 32], sizes = [5, 32], strides = [1, 1]} : vector<5x128xbf16> to vector<5x32xbf16>
    %cst_24 = arith.constant dense<0.000000e+00> : vector<5x5xf32>
    %82 = tpu.matmul %80, %81, %cst_24 {dimension_numbers = #tpu.dot_dimension_numbers<[1], [1], [0], [0], [0, 0, 1, 0], [], []>} : vector<5x32xbf16>, vector<5x32xbf16>, vector<5x5xf32> -> vector<5x5xf32>
    %cst_25 = arith.constant dense<0xFF800000> : vector<5xf32>
    %83 = vector.multi_reduction <maximumf>, %82, %cst_25 [1] : vector<5x5xf32> to vector<5xf32>
    %84 = vector.shape_cast %83 : vector<5xf32> to vector<5x1xf32>
    %85 = vector.broadcast %84 : vector<5x1xf32> to vector<5x5xf32>
    %86 = arith.subf %82, %85 : vector<5x5xf32>
    %87 = math.exp %86 : vector<5x5xf32>
    %cst_26 = arith.constant dense<0.000000e+00> : vector<5xf32>
    %88 = vector.multi_reduction <add>, %87, %cst_26 [1] : vector<5x5xf32> to vector<5xf32>
    %89 = vector.shape_cast %88 : vector<5xf32> to vector<5x1xf32>
    %90 = tpu.reciprocal %89 {approx = true} : vector<5x1xf32> -> vector<5x1xf32>
    %91 = vector.broadcast %90 : vector<5x1xf32> to vector<5x5xf32>
    %92 = arith.mulf %87, %91 : vector<5x5xf32>
    %93 = arith.truncf %92 : vector<5x5xf32> to vector<5x5xbf16>
    %94 = vector.extract_strided_slice %62 {offsets = [0, 32], sizes = [5, 32], strides = [1, 1]} : vector<5x128xbf16> to vector<5x32xbf16>
    %cst_27 = arith.constant dense<0.000000e+00> : vector<5x32xf32>
    %95 = tpu.matmul %93, %94, %cst_27 {dimension_numbers = #tpu.dot_dimension_numbers<[1], [0], [0], [1], [0, 0, 1, 1], [], []>} : vector<5x5xbf16>, vector<5x32xbf16>, vector<5x32xf32> -> vector<5x32xf32>
    %c0_28 = arith.constant 0 : index
    %c32 = arith.constant 32 : index
    %96 = vector.load %arg12[%c0_28, %c32] : memref<5x128xf32, #tpu.memory_space<vmem>>, vector<5x32xf32>
    tpu.vector_store %arg12[%c0_28, %c32], %95 {strides = array<i32>} : memref<5x128xf32, #tpu.memory_space<vmem>>, vector<5x32xf32>,
    %97 = vector.extract_strided_slice %54 {offsets = [0, 64], sizes = [5, 32], strides = [1, 1]} : vector<5x128xbf16> to vector<5x32xbf16>
    %98 = vector.extract_strided_slice %58 {offsets = [0, 64], sizes = [5, 32], strides = [1, 1]} : vector<5x128xbf16> to vector<5x32xbf16>
    %cst_29 = arith.constant dense<0.000000e+00> : vector<5x5xf32>
    %99 = tpu.matmul %97, %98, %cst_29 {dimension_numbers = #tpu.dot_dimension_numbers<[1], [1], [0], [0], [0, 0, 1, 0], [], []>} : vector<5x32xbf16>, vector<5x32xbf16>, vector<5x5xf32> -> vector<5x5xf32>
    %cst_30 = arith.constant dense<0xFF800000> : vector<5xf32>
    %100 = vector.multi_reduction <maximumf>, %99, %cst_30 [1] : vector<5x5xf32> to vector<5xf32>
    %101 = vector.shape_cast %100 : vector<5xf32> to vector<5x1xf32>
    %102 = vector.broadcast %101 : vector<5x1xf32> to vector<5x5xf32>
    %103 = arith.subf %99, %102 : vector<5x5xf32>
    %104 = math.exp %103 : vector<5x5xf32>
    %cst_31 = arith.constant dense<0.000000e+00> : vector<5xf32>
    %105 = vector.multi_reduction <add>, %104, %cst_31 [1] : vector<5x5xf32> to vector<5xf32>
    %106 = vector.shape_cast %105 : vector<5xf32> to vector<5x1xf32>
    %107 = tpu.reciprocal %106 {approx = true} : vector<5x1xf32> -> vector<5x1xf32>
    %108 = vector.broadcast %107 : vector<5x1xf32> to vector<5x5xf32>
    %109 = arith.mulf %104, %108 : vector<5x5xf32>
    %110 = arith.truncf %109 : vector<5x5xf32> to vector<5x5xbf16>
    %111 = vector.extract_strided_slice %62 {offsets = [0, 64], sizes = [5, 32], strides = [1, 1]} : vector<5x128xbf16> to vector<5x32xbf16>
    %cst_32 = arith.constant dense<0.000000e+00> : vector<5x32xf32>
    %112 = tpu.matmul %110, %111, %cst_32 {dimension_numbers = #tpu.dot_dimension_numbers<[1], [0], [0], [1], [0, 0, 1, 1], [], []>} : vector<5x5xbf16>, vector<5x32xbf16>, vector<5x32xf32> -> vector<5x32xf32>
    %c0_33 = arith.constant 0 : index
    %c64 = arith.constant 64 : index
    %113 = vector.load %arg12[%c0_33, %c64] : memref<5x128xf32, #tpu.memory_space<vmem>>, vector<5x32xf32>
    tpu.vector_store %arg12[%c0_33, %c64], %112 {strides = array<i32>} : memref<5x128xf32, #tpu.memory_space<vmem>>, vector<5x32xf32>,
    %114 = vector.extract_strided_slice %54 {offsets = [0, 96], sizes = [5, 32], strides = [1, 1]} : vector<5x128xbf16> to vector<5x32xbf16>
    %115 = vector.extract_strided_slice %58 {offsets = [0, 96], sizes = [5, 32], strides = [1, 1]} : vector<5x128xbf16> to vector<5x32xbf16>
    %cst_34 = arith.constant dense<0.000000e+00> : vector<5x5xf32>
    %116 = tpu.matmul %114, %115, %cst_34 {dimension_numbers = #tpu.dot_dimension_numbers<[1], [1], [0], [0], [0, 0, 1, 0], [], []>} : vector<5x32xbf16>, vector<5x32xbf16>, vector<5x5xf32> -> vector<5x5xf32>
    %cst_35 = arith.constant dense<0xFF800000> : vector<5xf32>
    %117 = vector.multi_reduction <maximumf>, %116, %cst_35 [1] : vector<5x5xf32> to vector<5xf32>
    %118 = vector.shape_cast %117 : vector<5xf32> to vector<5x1xf32>
    %119 = vector.broadcast %118 : vector<5x1xf32> to vector<5x5xf32>
    %120 = arith.subf %116, %119 : vector<5x5xf32>
    %121 = math.exp %120 : vector<5x5xf32>
    %cst_36 = arith.constant dense<0.000000e+00> : vector<5xf32>
    %122 = vector.multi_reduction <add>, %121, %cst_36 [1] : vector<5x5xf32> to vector<5xf32>
    %123 = vector.shape_cast %122 : vector<5xf32> to vector<5x1xf32>
    %124 = tpu.reciprocal %123 {approx = true} : vector<5x1xf32> -> vector<5x1xf32>
    %125 = vector.broadcast %124 : vector<5x1xf32> to vector<5x5xf32>
    %126 = arith.mulf %121, %125 : vector<5x5xf32>
    %127 = arith.truncf %126 : vector<5x5xf32> to vector<5x5xbf16>
    %128 = vector.extract_strided_slice %62 {offsets = [0, 96], sizes = [5, 32], strides = [1, 1]} : vector<5x128xbf16> to vector<5x32xbf16>
    %cst_37 = arith.constant dense<0.000000e+00> : vector<5x32xf32>
    %129 = tpu.matmul %127, %128, %cst_37 {dimension_numbers = #tpu.dot_dimension_numbers<[1], [0], [0], [1], [0, 0, 1, 1], [], []>} : vector<5x5xbf16>, vector<5x32xbf16>, vector<5x32xf32> -> vector<5x32xf32>
    %c0_38 = arith.constant 0 : index
    %c96 = arith.constant 96 : index
    %130 = vector.load %arg12[%c0_38, %c96] : memref<5x128xf32, #tpu.memory_space<vmem>>, vector<5x32xf32>
    tpu.vector_store %arg12[%c0_38, %c96], %129 {strides = array<i32>} : memref<5x128xf32, #tpu.memory_space<vmem>>, vector<5x32xf32>,
    %c0_39 = arith.constant 0 : index
    %c0_40 = arith.constant 0 : index
    %131 = vector.load %arg12[%c0_39, %c0_40] : memref<5x128xf32, #tpu.memory_space<vmem>>, vector<5x128xf32>
    %132 = arith.truncf %131 : vector<5x128xf32> to vector<5x128xbf16>
    %cst_41 = arith.constant dense<0.000000e+00> : vector<5x128xf32>
    %133 = tpu.matmul %132, %46, %cst_41 {dimension_numbers = #tpu.dot_dimension_numbers<[1], [0], [0], [1], [0, 0, 1, 1], [], []>} : vector<5x128xbf16>, vector<128x128xbf16>, vector<5x128xf32> -> vector<5x128xf32>
    %134 = vector.broadcast %12 : vector<1x128xf32> to vector<5x128xf32>
    %135 = arith.addf %133, %134 : vector<5x128xf32>
    %136 = arith.addf %4, %135 : vector<5x128xf32>
    %cst_42 = arith.constant dense<0.000000e+00> : vector<5xf32>
    %137 = vector.multi_reduction <add>, %136, %cst_42 [1] : vector<5x128xf32> to vector<5xf32>
    %138 = vector.shape_cast %137 : vector<5xf32> to vector<5x1xf32>
    %cst_43 = arith.constant 1.280000e+02 : f32
    %139 = vector.broadcast %cst_43 : f32 to vector<5x1xf32>
    %140 = arith.divf %138, %139 : vector<5x1xf32>
    %141 = vector.broadcast %140 : vector<5x1xf32> to vector<5x128xf32>
    %142 = arith.subf %136, %141 : vector<5x128xf32>
    %143 = arith.mulf %142, %142 : vector<5x128xf32>
    %cst_44 = arith.constant dense<0.000000e+00> : vector<5xf32>
    %144 = vector.multi_reduction <add>, %143, %cst_44 [1] : vector<5x128xf32> to vector<5xf32>
    %145 = vector.shape_cast %144 : vector<5xf32> to vector<5x1xf32>
    %cst_45 = arith.constant 1.280000e+02 : f32
    %146 = vector.broadcast %cst_45 : f32 to vector<5x1xf32>
    %147 = arith.divf %145, %146 : vector<5x1xf32>
    %148 = vector.broadcast %140 : vector<5x1xf32> to vector<5x128xf32>
    %149 = arith.subf %136, %148 : vector<5x128xf32>
    %cst_46 = arith.constant 9.99999997E-7 : f32
    %150 = vector.broadcast %cst_46 : f32 to vector<5x1xf32>
    %151 = arith.addf %147, %150 : vector<5x1xf32>
    %152 = math.rsqrt %151 : vector<5x1xf32>
    %153 = vector.broadcast %152 : vector<5x1xf32> to vector<5x128xf32>
    %154 = arith.mulf %149, %153 : vector<5x128xf32>
    %155 = vector.broadcast %13 : vector<1x128xf32> to vector<5x128xf32>
    %156 = arith.mulf %154, %155 : vector<5x128xf32>
    %157 = vector.broadcast %14 : vector<1x128xf32> to vector<5x128xf32>
    %158 = arith.addf %156, %157 : vector<5x128xf32>
    %c0_47 = arith.constant 0 : index
    %c0_48 = arith.constant 0 : index
    %c0_49 = arith.constant 0 : index
    %159 = vector.load %arg7[%c0_47, %c0_48, %c0_49] : memref<1x128x512xbf16, #tpu.memory_space<vmem>>, vector<1x128x512xbf16>
    %160 = vector.shape_cast %159 : vector<1x128x512xbf16> to vector<128x512xbf16>
    %161 = arith.truncf %158 : vector<5x128xf32> to vector<5x128xbf16>
    %cst_50 = arith.constant dense<0.000000e+00> : vector<5x512xf32>
    %162 = tpu.matmul %161, %160, %cst_50 {dimension_numbers = #tpu.dot_dimension_numbers<[1], [0], [0], [1], [0, 0, 1, 1], [], []>} : vector<5x128xbf16>, vector<128x512xbf16>, vector<5x512xf32> -> vector<5x512xf32>
    %163 = vector.broadcast %19 : vector<1x512xf32> to vector<5x512xf32>
    %164 = arith.addf %162, %163 : vector<5x512xf32>
    %165 = arith.mulf %164, %164 : vector<5x512xf32>
    %166 = arith.mulf %164, %165 : vector<5x512xf32>
    %cst_51 = arith.constant 4.471500e-02 : f32
    %167 = vector.broadcast %cst_51 : f32 to vector<5x512xf32>
    %168 = arith.mulf %167, %166 : vector<5x512xf32>
    %169 = arith.addf %164, %168 : vector<5x512xf32>
    %cst_52 = arith.constant 0.797884583 : f32
    %170 = vector.broadcast %cst_52 : f32 to vector<5x512xf32>
    %171 = arith.mulf %170, %169 : vector<5x512xf32>
    %172 = math.tanh %171 : vector<5x512xf32>
    %cst_53 = arith.constant 1.000000e+00 : f32
    %173 = vector.broadcast %cst_53 : f32 to vector<5x512xf32>
    %174 = arith.addf %173, %172 : vector<5x512xf32>
    %cst_54 = arith.constant 5.000000e-01 : f32
    %175 = vector.broadcast %cst_54 : f32 to vector<5x512xf32>
    %176 = arith.mulf %175, %174 : vector<5x512xf32>
    %177 = arith.mulf %164, %176 : vector<5x512xf32>
    %c0_55 = arith.constant 0 : index
    %c0_56 = arith.constant 0 : index
    %c0_57 = arith.constant 0 : index
    %178 = vector.load %arg8[%c0_55, %c0_56, %c0_57] : memref<1x512x128xbf16, #tpu.memory_space<vmem>>, vector<1x512x128xbf16>
    %179 = vector.shape_cast %178 : vector<1x512x128xbf16> to vector<512x128xbf16>
    %180 = arith.truncf %177 : vector<5x512xf32> to vector<5x512xbf16>
    %cst_58 = arith.constant dense<0.000000e+00> : vector<5x128xf32>
    %181 = tpu.matmul %180, %179, %cst_58 {dimension_numbers = #tpu.dot_dimension_numbers<[1], [0], [0], [1], [0, 0, 1, 1], [], []>} : vector<5x512xbf16>, vector<512x128xbf16>, vector<5x128xf32> -> vector<5x128xf32>
    %182 = arith.addf %136, %181 : vector<5x128xf32>
    %183 = vector.broadcast %20 : vector<1x128xf32> to vector<5x128xf32>
    %184 = arith.addf %182, %183 : vector<5x128xf32>
    %c0_59 = arith.constant 0 : index
    %c0_60 = arith.constant 0 : index
    %c0_61 = arith.constant 0 : index
    %185 = vector.load %arg11[%c0_59, %c0_60, %c0_61] : memref<1x5x128xf32, #tpu.memory_space<vmem>>, vector<1x5x128xf32>
    %186 = vector.shape_cast %185 : vector<1x5x128xf32> to vector<5x128xf32>
    %187 = vector.shape_cast %184 : vector<5x128xf32> to vector<1x5x128xf32>
    tpu.vector_store %arg11[%c0_59, %c0_60, %c0_61], %187 {strides = array<i32>} : memref<1x5x128xf32, #tpu.memory_space<vmem>>, vector<1x5x128xf32>,
    %c1_i32 = arith.constant 1 : i32
    %188 = arith.cmpi eq, %arg1, %c1_i32 : i32
    %189 = arith.extui %188 : i1 to i32
    %c0_i32_62 = arith.constant 0 : i32
    %190 = arith.cmpi ne, %189, %c0_i32_62 : i32
    scf.if %190 {
      %c0_63 = arith.constant 0 : index
      %c0_64 = arith.constant 0 : index
      %191 = vector.load %arg10[%c0_63, %c0_64] : memref<2x128xf32, #tpu.memory_space<vmem>>, vector<1x128xf32>
      %c1 = arith.constant 1 : index
      %c0_65 = arith.constant 0 : index
      %192 = vector.load %arg10[%c1, %c0_65] : memref<2x128xf32, #tpu.memory_space<vmem>>, vector<1x128xf32>
      %cst_66 = arith.constant dense<0.000000e+00> : vector<5xf32>
      %193 = vector.multi_reduction <add>, %184, %cst_66 [1] : vector<5x128xf32> to vector<5xf32>
      %194 = vector.shape_cast %193 : vector<5xf32> to vector<5x1xf32>
      %cst_67 = arith.constant 1.280000e+02 : f32
      %195 = vector.broadcast %cst_67 : f32 to vector<5x1xf32>
      %196 = arith.divf %194, %195 : vector<5x1xf32>
      %197 = vector.broadcast %196 : vector<5x1xf32> to vector<5x128xf32>
      %198 = arith.subf %184, %197 : vector<5x128xf32>
      %199 = arith.mulf %198, %198 : vector<5x128xf32>
      %cst_68 = arith.constant dense<0.000000e+00> : vector<5xf32>
      %200 = vector.multi_reduction <add>, %199, %cst_68 [1] : vector<5x128xf32> to vector<5xf32>
      %201 = vector.shape_cast %200 : vector<5xf32> to vector<5x1xf32>
      %cst_69 = arith.constant 1.280000e+02 : f32
      %202 = vector.broadcast %cst_69 : f32 to vector<5x1xf32>
      %203 = arith.divf %201, %202 : vector<5x1xf32>
      %204 = vector.broadcast %196 : vector<5x1xf32> to vector<5x128xf32>
      %205 = arith.subf %184, %204 : vector<5x128xf32>
      %cst_70 = arith.constant 9.99999997E-7 : f32
      %206 = vector.broadcast %cst_70 : f32 to vector<5x1xf32>
      %207 = arith.addf %203, %206 : vector<5x1xf32>
      %208 = math.rsqrt %207 : vector<5x1xf32>
      %209 = vector.broadcast %208 : vector<5x1xf32> to vector<5x128xf32>
      %210 = arith.mulf %205, %209 : vector<5x128xf32>
      %211 = vector.broadcast %191 : vector<1x128xf32> to vector<5x128xf32>
      %212 = arith.mulf %210, %211 : vector<5x128xf32>
      %213 = vector.broadcast %192 : vector<1x128xf32> to vector<5x128xf32>
      %214 = arith.addf %212, %213 : vector<5x128xf32>
      %c0_71 = arith.constant 0 : index
      %c0_72 = arith.constant 0 : index
      %c0_73 = arith.constant 0 : index
      %215 = vector.load %arg11[%c0_71, %c0_72, %c0_73] : memref<1x5x128xf32, #tpu.memory_space<vmem>>, vector<1x5x128xf32>
      %216 = vector.shape_cast %215 : vector<1x5x128xf32> to vector<5x128xf32>
      %217 = vector.shape_cast %214 : vector<5x128xf32> to vector<1x5x128xf32>
      tpu.vector_store %arg11[%c0_71, %c0_72, %c0_73], %217 {strides = array<i32>} : memref<1x5x128xf32, #tpu.memory_space<vmem>>, vector<1x5x128xf32>,
    } else {
    }
    return
  }
  func.func @transform_0(%arg0: i32, %arg1: i32) -> (i32, i32, i32) {
    %c0_i32 = arith.constant 0 : i32
    %c0_i32_0 = arith.constant 0 : i32
    %c0_i32_1 = arith.constant 0 : i32
    return %arg0, %c0_i32, %c0_i32_0 : i32, i32, i32
  }
  func.func @transform_1(%arg0: i32, %arg1: i32) -> (i32, i32) {
    %c0_i32 = arith.constant 0 : i32
    %c0_i32_0 = arith.constant 0 : i32
    %c0_i32_1 = arith.constant 0 : i32
    return %c0_i32, %c0_i32_0 : i32, i32
  }
  func.func @transform_2(%arg0: i32, %arg1: i32) -> (i32, i32) {
    %c0_i32 = arith.constant 0 : i32
    %c0_i32_0 = arith.constant 0 : i32
    %c0_i32_1 = arith.constant 0 : i32
    return %c0_i32, %c0_i32_0 : i32, i32
  }
  func.func @transform_3(%arg0: i32, %arg1: i32) -> (i32, i32, i32) {
    %c0_i32 = arith.constant 0 : i32
    %c0_i32_0 = arith.constant 0 : i32
    %c0_i32_1 = arith.constant 0 : i32
    return %arg1, %c0_i32, %c0_i32_0 : i32, i32, i32
  }
  func.func @transform_4(%arg0: i32, %arg1: i32) -> (i32, i32, i32) {
    %c0_i32 = arith.constant 0 : i32
    %c0_i32_0 = arith.constant 0 : i32
    %c0_i32_1 = arith.constant 0 : i32
    return %arg1, %c0_i32, %c0_i32_0 : i32, i32, i32
  }
  func.func @transform_5(%arg0: i32, %arg1: i32) -> (i32, i32, i32) {
    %c0_i32 = arith.constant 0 : i32
    %c0_i32_0 = arith.constant 0 : i32
    %c0_i32_1 = arith.constant 0 : i32
    return %arg1, %c0_i32, %c0_i32_0 : i32, i32, i32
  }
  func.func @transform_6(%arg0: i32, %arg1: i32) -> (i32, i32, i32) {
    %c0_i32 = arith.constant 0 : i32
    %c0_i32_0 = arith.constant 0 : i32
    %c0_i32_1 = arith.constant 0 : i32
    return %arg1, %c0_i32, %c0_i32_0 : i32, i32, i32
  }
  func.func @transform_7(%arg0: i32, %arg1: i32) -> (i32, i32, i32) {
    %c0_i32 = arith.constant 0 : i32
    %c0_i32_0 = arith.constant 0 : i32
    %c0_i32_1 = arith.constant 0 : i32
    return %arg1, %c0_i32, %c0_i32_0 : i32, i32, i32
  }
  func.func @transform_8(%arg0: i32, %arg1: i32) -> (i32, i32) {
    %c0_i32 = arith.constant 0 : i32
    %c0_i32_0 = arith.constant 0 : i32
    %c0_i32_1 = arith.constant 0 : i32
    return %c0_i32, %c0_i32_0 : i32, i32
  }
  func.func @transform_9(%arg0: i32, %arg1: i32) -> (i32, i32, i32) {
    %c0_i32 = arith.constant 0 : i32
    %c0_i32_0 = arith.constant 0 : i32
    %c0_i32_1 = arith.constant 0 : i32
    return %arg0, %c0_i32, %c0_i32_0 : i32, i32, i32
  }
}

module attributes {stable_mosaic.version = 11 : i64} {
  func.func @_bert_encoder_kernel(%arg0: i32, %arg1: i32, %arg2: memref<1x8x128xf32, #tpu.memory_space<vmem>>, %arg3: memref<1x1x8xf32, #tpu.memory_space<vmem>>, %arg4: memref<2x128xf32, #tpu.memory_space<vmem>>, %arg5: memref<1x128x384xbf16, #tpu.memory_space<vmem>>, %arg6: memref<1x128x128xbf16, #tpu.memory_space<vmem>>, %arg7: memref<1x128x512xbf16, #tpu.memory_space<vmem>>, %arg8: memref<1x512x128xbf16, #tpu.memory_space<vmem>>, %arg9: memref<1x16x128xf32, #tpu.memory_space<vmem>>, %arg10: memref<1x8x128xf32, #tpu.memory_space<vmem>>, %arg11: memref<8x128xf32, #tpu.memory_space<vmem>>) attributes {dimension_semantics = [#tpu.dimension_semantics<parallel>, #tpu.dimension_semantics<arbitrary>], iteration_bounds = array<i64: 2, 2>, scalar_prefetch = 0 : i64, scratch_operands = 1 : i64, tpu.core_type = #tpu.core_type<tc>, window_params = [{transform_indices = @transform_0, window_bounds = array<i64: 1, 8, 128>}, {transform_indices = @transform_1, window_bounds = array<i64: 1, 1, 8>}, {pipeline_mode = #tpu.pipeline_mode<synchronous>, transform_indices = @transform_2, window_bounds = array<i64: 2, 128>}, {transform_indices = @transform_3, window_bounds = array<i64: 1, 128, 384>}, {transform_indices = @transform_4, window_bounds = array<i64: 1, 128, 128>}, {transform_indices = @transform_5, window_bounds = array<i64: 1, 128, 512>}, {transform_indices = @transform_6, window_bounds = array<i64: 1, 512, 128>}, {transform_indices = @transform_7, window_bounds = array<i64: 1, 16, 128>}, {transform_indices = @transform_8, window_bounds = array<i64: 1, 8, 128>}]} {
    %c0_i32 = arith.constant 0 : i32
    %0 = arith.cmpi eq, %arg1, %c0_i32 : i32
    %1 = arith.extui %0 : i1 to i32
    %c0_i32_0 = arith.constant 0 : i32
    %2 = arith.cmpi ne, %1, %c0_i32_0 : i32
    scf.if %2 {
      %c0_67 = arith.constant 0 : index
      %c0_68 = arith.constant 0 : index
      %c0_69 = arith.constant 0 : index
      %202 = vector.load %arg2[%c0_67, %c0_68, %c0_69] : memref<1x8x128xf32, #tpu.memory_space<vmem>>, vector<1x8x128xf32>
      %203 = vector.shape_cast %202 : vector<1x8x128xf32> to vector<8x128xf32>
      %c0_70 = arith.constant 0 : index
      %c0_71 = arith.constant 0 : index
      %204 = vector.load %arg4[%c0_70, %c0_71] : memref<2x128xf32, #tpu.memory_space<vmem>>, vector<1x128xf32>
      %c1 = arith.constant 1 : index
      %c0_72 = arith.constant 0 : index
      %205 = vector.load %arg4[%c1, %c0_72] : memref<2x128xf32, #tpu.memory_space<vmem>>, vector<1x128xf32>
      %cst_73 = arith.constant dense<0.000000e+00> : vector<8xf32>
      %206 = vector.multi_reduction <add>, %203, %cst_73 [1] : vector<8x128xf32> to vector<8xf32>
      %207 = vector.shape_cast %206 : vector<8xf32> to vector<8x1xf32>
      %cst_74 = arith.constant 1.280000e+02 : f32
      %208 = vector.broadcast %cst_74 : f32 to vector<8x1xf32>
      %209 = arith.divf %207, %208 : vector<8x1xf32>
      %210 = vector.broadcast %209 : vector<8x1xf32> to vector<8x128xf32>
      %211 = arith.subf %203, %210 : vector<8x128xf32>
      %212 = arith.mulf %211, %211 : vector<8x128xf32>
      %cst_75 = arith.constant dense<0.000000e+00> : vector<8xf32>
      %213 = vector.multi_reduction <add>, %212, %cst_75 [1] : vector<8x128xf32> to vector<8xf32>
      %214 = vector.shape_cast %213 : vector<8xf32> to vector<8x1xf32>
      %cst_76 = arith.constant 1.280000e+02 : f32
      %215 = vector.broadcast %cst_76 : f32 to vector<8x1xf32>
      %216 = arith.divf %214, %215 : vector<8x1xf32>
      %217 = vector.broadcast %209 : vector<8x1xf32> to vector<8x128xf32>
      %218 = arith.subf %203, %217 : vector<8x128xf32>
      %cst_77 = arith.constant 9.99999996E-13 : f32
      %219 = vector.broadcast %cst_77 : f32 to vector<8x1xf32>
      %220 = arith.addf %216, %219 : vector<8x1xf32>
      %221 = math.rsqrt %220 : vector<8x1xf32>
      %222 = vector.broadcast %221 : vector<8x1xf32> to vector<8x128xf32>
      %223 = arith.mulf %218, %222 : vector<8x128xf32>
      %224 = vector.broadcast %204 : vector<1x128xf32> to vector<8x128xf32>
      %225 = arith.mulf %223, %224 : vector<8x128xf32>
      %226 = vector.broadcast %205 : vector<1x128xf32> to vector<8x128xf32>
      %227 = arith.addf %225, %226 : vector<8x128xf32>
      %c0_78 = arith.constant 0 : index
      %c0_79 = arith.constant 0 : index
      %c0_80 = arith.constant 0 : index
      %228 = vector.load %arg10[%c0_78, %c0_79, %c0_80] : memref<1x8x128xf32, #tpu.memory_space<vmem>>, vector<1x8x128xf32>
      %229 = vector.shape_cast %228 : vector<1x8x128xf32> to vector<8x128xf32>
      %230 = vector.shape_cast %227 : vector<8x128xf32> to vector<1x8x128xf32>
      tpu.vector_store %arg10[%c0_78, %c0_79, %c0_80], %230 {strides = array<i32>} : memref<1x8x128xf32, #tpu.memory_space<vmem>>, vector<1x8x128xf32>,
    } else {
    }
    %c0 = arith.constant 0 : index
    %c0_1 = arith.constant 0 : index
    %c0_2 = arith.constant 0 : index
    %3 = vector.load %arg10[%c0, %c0_1, %c0_2] : memref<1x8x128xf32, #tpu.memory_space<vmem>>, vector<1x8x128xf32>
    %4 = vector.shape_cast %3 : vector<1x8x128xf32> to vector<8x128xf32>
    %c0_3 = arith.constant 0 : index
    %c0_4 = arith.constant 0 : index
    %c0_5 = arith.constant 0 : index
    %5 = vector.load %arg3[%c0_3, %c0_4, %c0_5] : memref<1x1x8xf32, #tpu.memory_space<vmem>>, vector<1x1x8xf32>
    %6 = vector.shape_cast %5 : vector<1x1x8xf32> to vector<1x8xf32>
    %cst = arith.constant 1.000000e+00 : f32
    %7 = vector.broadcast %cst : f32 to vector<1x8xf32>
    %8 = arith.subf %6, %7 : vector<1x8xf32>
    %cst_6 = arith.constant 1.000000e+09 : f32
    %9 = vector.broadcast %cst_6 : f32 to vector<1x8xf32>
    %10 = arith.mulf %8, %9 : vector<1x8xf32>
    %c0_7 = arith.constant 0 : index
    %c0_8 = arith.constant 0 : index
    %c0_9 = arith.constant 0 : index
    %11 = vector.load %arg9[%c0_7, %c0_8, %c0_9] : memref<1x16x128xf32, #tpu.memory_space<vmem>>, vector<1x16x128xf32>
    %12 = vector.shape_cast %11 : vector<1x16x128xf32> to vector<16x128xf32>
    %13 = vector.extract_strided_slice %12 {offsets = [0, 0], sizes = [1, 128], strides = [1, 1]} : vector<16x128xf32> to vector<1x128xf32>
    %14 = vector.extract_strided_slice %12 {offsets = [1, 0], sizes = [1, 128], strides = [1, 1]} : vector<16x128xf32> to vector<1x128xf32>
    %15 = vector.extract_strided_slice %12 {offsets = [2, 0], sizes = [1, 128], strides = [1, 1]} : vector<16x128xf32> to vector<1x128xf32>
    %16 = vector.extract_strided_slice %12 {offsets = [3, 0], sizes = [1, 128], strides = [1, 1]} : vector<16x128xf32> to vector<1x128xf32>
    %17 = vector.extract_strided_slice %12 {offsets = [4, 0], sizes = [1, 128], strides = [1, 1]} : vector<16x128xf32> to vector<1x128xf32>
    %18 = vector.extract_strided_slice %12 {offsets = [5, 0], sizes = [1, 128], strides = [1, 1]} : vector<16x128xf32> to vector<1x128xf32>
    %19 = vector.extract_strided_slice %12 {offsets = [6, 0], sizes = [1, 128], strides = [1, 1]} : vector<16x128xf32> to vector<1x128xf32>
    %20 = vector.extract_strided_slice %12 {offsets = [7, 0], sizes = [1, 128], strides = [1, 1]} : vector<16x128xf32> to vector<1x128xf32>
    %21 = vector.extract_strided_slice %12 {offsets = [8, 0], sizes = [1, 128], strides = [1, 1]} : vector<16x128xf32> to vector<1x128xf32>
    %22 = vector.extract_strided_slice %12 {offsets = [9, 0], sizes = [1, 128], strides = [1, 1]} : vector<16x128xf32> to vector<1x128xf32>
    %23 = tpu.concatenate %19, %20, %21, %22 in 1 : vector<1x128xf32>, vector<1x128xf32>, vector<1x128xf32>, vector<1x128xf32> -> vector<1x512xf32>
    %24 = vector.extract_strided_slice %12 {offsets = [10, 0], sizes = [1, 128], strides = [1, 1]} : vector<16x128xf32> to vector<1x128xf32>
    %25 = vector.extract_strided_slice %12 {offsets = [11, 0], sizes = [1, 128], strides = [1, 1]} : vector<16x128xf32> to vector<1x128xf32>
    %26 = vector.extract_strided_slice %12 {offsets = [12, 0], sizes = [1, 128], strides = [1, 1]} : vector<16x128xf32> to vector<1x128xf32>
    %c0_10 = arith.constant 0 : index
    %c0_11 = arith.constant 0 : index
    %c0_12 = arith.constant 0 : index
    %27 = vector.load %arg5[%c0_10, %c0_11, %c0_12] : memref<1x128x384xbf16, #tpu.memory_space<vmem>>, vector<1x128x384xbf16>
    %28 = vector.shape_cast %27 : vector<1x128x384xbf16> to vector<128x384xbf16>
    %c0_13 = arith.constant 0 : index
    %c0_14 = arith.constant 0 : index
    %c0_15 = arith.constant 0 : index
    %29 = vector.load %arg6[%c0_13, %c0_14, %c0_15] : memref<1x128x128xbf16, #tpu.memory_space<vmem>>, vector<1x128x128xbf16>
    %30 = vector.shape_cast %29 : vector<1x128x128xbf16> to vector<128x128xbf16>
    %31 = arith.truncf %4 : vector<8x128xf32> to vector<8x128xbf16>
    %cst_16 = arith.constant dense<0.000000e+00> : vector<8x384xf32>
    %32 = tpu.matmul %31, %28, %cst_16 {dimension_numbers = #tpu.dot_dimension_numbers<[1], [0], [0], [1], [0, 0, 1, 1], [], []>} : vector<8x128xbf16>, vector<128x384xbf16>, vector<8x384xf32> -> vector<8x384xf32>
    %33 = vector.extract_strided_slice %32 {offsets = [0, 0], sizes = [8, 128], strides = [1, 1]} : vector<8x384xf32> to vector<8x128xf32>
    %34 = vector.broadcast %13 : vector<1x128xf32> to vector<8x128xf32>
    %35 = arith.addf %33, %34 : vector<8x128xf32>
    %cst_17 = arith.constant 0.176776692 : f32
    %36 = vector.broadcast %cst_17 : f32 to vector<8x128xf32>
    %37 = arith.mulf %35, %36 : vector<8x128xf32>
    %38 = arith.truncf %37 : vector<8x128xf32> to vector<8x128xbf16>
    %39 = vector.extract_strided_slice %32 {offsets = [0, 128], sizes = [8, 128], strides = [1, 1]} : vector<8x384xf32> to vector<8x128xf32>
    %40 = vector.broadcast %14 : vector<1x128xf32> to vector<8x128xf32>
    %41 = arith.addf %39, %40 : vector<8x128xf32>
    %42 = arith.truncf %41 : vector<8x128xf32> to vector<8x128xbf16>
    %43 = vector.extract_strided_slice %32 {offsets = [0, 256], sizes = [8, 128], strides = [1, 1]} : vector<8x384xf32> to vector<8x128xf32>
    %44 = vector.broadcast %15 : vector<1x128xf32> to vector<8x128xf32>
    %45 = arith.addf %43, %44 : vector<8x128xf32>
    %46 = arith.truncf %45 : vector<8x128xf32> to vector<8x128xbf16>
    %47 = vector.extract_strided_slice %38 {offsets = [0, 0], sizes = [8, 32], strides = [1, 1]} : vector<8x128xbf16> to vector<8x32xbf16>
    %48 = vector.extract_strided_slice %42 {offsets = [0, 0], sizes = [8, 32], strides = [1, 1]} : vector<8x128xbf16> to vector<8x32xbf16>
    %cst_18 = arith.constant dense<0.000000e+00> : vector<8x8xf32>
    %49 = tpu.matmul %47, %48, %cst_18 {dimension_numbers = #tpu.dot_dimension_numbers<[1], [1], [0], [0], [0, 0, 1, 0], [], []>} : vector<8x32xbf16>, vector<8x32xbf16>, vector<8x8xf32> -> vector<8x8xf32>
    %50 = vector.broadcast %10 : vector<1x8xf32> to vector<8x8xf32>
    %51 = arith.addf %49, %50 : vector<8x8xf32>
    %cst_19 = arith.constant dense<0xFF800000> : vector<8xf32>
    %52 = vector.multi_reduction <maximumf>, %51, %cst_19 [1] : vector<8x8xf32> to vector<8xf32>
    %53 = vector.shape_cast %52 : vector<8xf32> to vector<8x1xf32>
    %54 = vector.broadcast %53 : vector<8x1xf32> to vector<8x8xf32>
    %55 = arith.subf %51, %54 : vector<8x8xf32>
    %56 = math.exp %55 : vector<8x8xf32>
    %cst_20 = arith.constant dense<0.000000e+00> : vector<8xf32>
    %57 = vector.multi_reduction <add>, %56, %cst_20 [1] : vector<8x8xf32> to vector<8xf32>
    %58 = vector.shape_cast %57 : vector<8xf32> to vector<8x1xf32>
    %59 = tpu.reciprocal %58 {approx = true} : vector<8x1xf32> -> vector<8x1xf32>
    %60 = vector.broadcast %59 : vector<8x1xf32> to vector<8x8xf32>
    %61 = arith.mulf %56, %60 : vector<8x8xf32>
    %62 = arith.truncf %61 : vector<8x8xf32> to vector<8x8xbf16>
    %63 = vector.extract_strided_slice %46 {offsets = [0, 0], sizes = [8, 32], strides = [1, 1]} : vector<8x128xbf16> to vector<8x32xbf16>
    %cst_21 = arith.constant dense<0.000000e+00> : vector<8x32xf32>
    %64 = tpu.matmul %62, %63, %cst_21 {dimension_numbers = #tpu.dot_dimension_numbers<[1], [0], [0], [1], [0, 0, 1, 1], [], []>} : vector<8x8xbf16>, vector<8x32xbf16>, vector<8x32xf32> -> vector<8x32xf32>
    %c0_22 = arith.constant 0 : index
    %c0_23 = arith.constant 0 : index
    %65 = vector.load %arg11[%c0_22, %c0_23] : memref<8x128xf32, #tpu.memory_space<vmem>>, vector<8x32xf32>
    tpu.vector_store %arg11[%c0_22, %c0_23], %64 {strides = array<i32>} : memref<8x128xf32, #tpu.memory_space<vmem>>, vector<8x32xf32>,
    %66 = vector.extract_strided_slice %38 {offsets = [0, 32], sizes = [8, 32], strides = [1, 1]} : vector<8x128xbf16> to vector<8x32xbf16>
    %67 = vector.extract_strided_slice %42 {offsets = [0, 32], sizes = [8, 32], strides = [1, 1]} : vector<8x128xbf16> to vector<8x32xbf16>
    %cst_24 = arith.constant dense<0.000000e+00> : vector<8x8xf32>
    %68 = tpu.matmul %66, %67, %cst_24 {dimension_numbers = #tpu.dot_dimension_numbers<[1], [1], [0], [0], [0, 0, 1, 0], [], []>} : vector<8x32xbf16>, vector<8x32xbf16>, vector<8x8xf32> -> vector<8x8xf32>
    %69 = vector.broadcast %10 : vector<1x8xf32> to vector<8x8xf32>
    %70 = arith.addf %68, %69 : vector<8x8xf32>
    %cst_25 = arith.constant dense<0xFF800000> : vector<8xf32>
    %71 = vector.multi_reduction <maximumf>, %70, %cst_25 [1] : vector<8x8xf32> to vector<8xf32>
    %72 = vector.shape_cast %71 : vector<8xf32> to vector<8x1xf32>
    %73 = vector.broadcast %72 : vector<8x1xf32> to vector<8x8xf32>
    %74 = arith.subf %70, %73 : vector<8x8xf32>
    %75 = math.exp %74 : vector<8x8xf32>
    %cst_26 = arith.constant dense<0.000000e+00> : vector<8xf32>
    %76 = vector.multi_reduction <add>, %75, %cst_26 [1] : vector<8x8xf32> to vector<8xf32>
    %77 = vector.shape_cast %76 : vector<8xf32> to vector<8x1xf32>
    %78 = tpu.reciprocal %77 {approx = true} : vector<8x1xf32> -> vector<8x1xf32>
    %79 = vector.broadcast %78 : vector<8x1xf32> to vector<8x8xf32>
    %80 = arith.mulf %75, %79 : vector<8x8xf32>
    %81 = arith.truncf %80 : vector<8x8xf32> to vector<8x8xbf16>
    %82 = vector.extract_strided_slice %46 {offsets = [0, 32], sizes = [8, 32], strides = [1, 1]} : vector<8x128xbf16> to vector<8x32xbf16>
    %cst_27 = arith.constant dense<0.000000e+00> : vector<8x32xf32>
    %83 = tpu.matmul %81, %82, %cst_27 {dimension_numbers = #tpu.dot_dimension_numbers<[1], [0], [0], [1], [0, 0, 1, 1], [], []>} : vector<8x8xbf16>, vector<8x32xbf16>, vector<8x32xf32> -> vector<8x32xf32>
    %c0_28 = arith.constant 0 : index
    %c32 = arith.constant 32 : index
    %84 = vector.load %arg11[%c0_28, %c32] : memref<8x128xf32, #tpu.memory_space<vmem>>, vector<8x32xf32>
    tpu.vector_store %arg11[%c0_28, %c32], %83 {strides = array<i32>} : memref<8x128xf32, #tpu.memory_space<vmem>>, vector<8x32xf32>,
    %85 = vector.extract_strided_slice %38 {offsets = [0, 64], sizes = [8, 32], strides = [1, 1]} : vector<8x128xbf16> to vector<8x32xbf16>
    %86 = vector.extract_strided_slice %42 {offsets = [0, 64], sizes = [8, 32], strides = [1, 1]} : vector<8x128xbf16> to vector<8x32xbf16>
    %cst_29 = arith.constant dense<0.000000e+00> : vector<8x8xf32>
    %87 = tpu.matmul %85, %86, %cst_29 {dimension_numbers = #tpu.dot_dimension_numbers<[1], [1], [0], [0], [0, 0, 1, 0], [], []>} : vector<8x32xbf16>, vector<8x32xbf16>, vector<8x8xf32> -> vector<8x8xf32>
    %88 = vector.broadcast %10 : vector<1x8xf32> to vector<8x8xf32>
    %89 = arith.addf %87, %88 : vector<8x8xf32>
    %cst_30 = arith.constant dense<0xFF800000> : vector<8xf32>
    %90 = vector.multi_reduction <maximumf>, %89, %cst_30 [1] : vector<8x8xf32> to vector<8xf32>
    %91 = vector.shape_cast %90 : vector<8xf32> to vector<8x1xf32>
    %92 = vector.broadcast %91 : vector<8x1xf32> to vector<8x8xf32>
    %93 = arith.subf %89, %92 : vector<8x8xf32>
    %94 = math.exp %93 : vector<8x8xf32>
    %cst_31 = arith.constant dense<0.000000e+00> : vector<8xf32>
    %95 = vector.multi_reduction <add>, %94, %cst_31 [1] : vector<8x8xf32> to vector<8xf32>
    %96 = vector.shape_cast %95 : vector<8xf32> to vector<8x1xf32>
    %97 = tpu.reciprocal %96 {approx = true} : vector<8x1xf32> -> vector<8x1xf32>
    %98 = vector.broadcast %97 : vector<8x1xf32> to vector<8x8xf32>
    %99 = arith.mulf %94, %98 : vector<8x8xf32>
    %100 = arith.truncf %99 : vector<8x8xf32> to vector<8x8xbf16>
    %101 = vector.extract_strided_slice %46 {offsets = [0, 64], sizes = [8, 32], strides = [1, 1]} : vector<8x128xbf16> to vector<8x32xbf16>
    %cst_32 = arith.constant dense<0.000000e+00> : vector<8x32xf32>
    %102 = tpu.matmul %100, %101, %cst_32 {dimension_numbers = #tpu.dot_dimension_numbers<[1], [0], [0], [1], [0, 0, 1, 1], [], []>} : vector<8x8xbf16>, vector<8x32xbf16>, vector<8x32xf32> -> vector<8x32xf32>
    %c0_33 = arith.constant 0 : index
    %c64 = arith.constant 64 : index
    %103 = vector.load %arg11[%c0_33, %c64] : memref<8x128xf32, #tpu.memory_space<vmem>>, vector<8x32xf32>
    tpu.vector_store %arg11[%c0_33, %c64], %102 {strides = array<i32>} : memref<8x128xf32, #tpu.memory_space<vmem>>, vector<8x32xf32>,
    %104 = vector.extract_strided_slice %38 {offsets = [0, 96], sizes = [8, 32], strides = [1, 1]} : vector<8x128xbf16> to vector<8x32xbf16>
    %105 = vector.extract_strided_slice %42 {offsets = [0, 96], sizes = [8, 32], strides = [1, 1]} : vector<8x128xbf16> to vector<8x32xbf16>
    %cst_34 = arith.constant dense<0.000000e+00> : vector<8x8xf32>
    %106 = tpu.matmul %104, %105, %cst_34 {dimension_numbers = #tpu.dot_dimension_numbers<[1], [1], [0], [0], [0, 0, 1, 0], [], []>} : vector<8x32xbf16>, vector<8x32xbf16>, vector<8x8xf32> -> vector<8x8xf32>
    %107 = vector.broadcast %10 : vector<1x8xf32> to vector<8x8xf32>
    %108 = arith.addf %106, %107 : vector<8x8xf32>
    %cst_35 = arith.constant dense<0xFF800000> : vector<8xf32>
    %109 = vector.multi_reduction <maximumf>, %108, %cst_35 [1] : vector<8x8xf32> to vector<8xf32>
    %110 = vector.shape_cast %109 : vector<8xf32> to vector<8x1xf32>
    %111 = vector.broadcast %110 : vector<8x1xf32> to vector<8x8xf32>
    %112 = arith.subf %108, %111 : vector<8x8xf32>
    %113 = math.exp %112 : vector<8x8xf32>
    %cst_36 = arith.constant dense<0.000000e+00> : vector<8xf32>
    %114 = vector.multi_reduction <add>, %113, %cst_36 [1] : vector<8x8xf32> to vector<8xf32>
    %115 = vector.shape_cast %114 : vector<8xf32> to vector<8x1xf32>
    %116 = tpu.reciprocal %115 {approx = true} : vector<8x1xf32> -> vector<8x1xf32>
    %117 = vector.broadcast %116 : vector<8x1xf32> to vector<8x8xf32>
    %118 = arith.mulf %113, %117 : vector<8x8xf32>
    %119 = arith.truncf %118 : vector<8x8xf32> to vector<8x8xbf16>
    %120 = vector.extract_strided_slice %46 {offsets = [0, 96], sizes = [8, 32], strides = [1, 1]} : vector<8x128xbf16> to vector<8x32xbf16>
    %cst_37 = arith.constant dense<0.000000e+00> : vector<8x32xf32>
    %121 = tpu.matmul %119, %120, %cst_37 {dimension_numbers = #tpu.dot_dimension_numbers<[1], [0], [0], [1], [0, 0, 1, 1], [], []>} : vector<8x8xbf16>, vector<8x32xbf16>, vector<8x32xf32> -> vector<8x32xf32>
    %c0_38 = arith.constant 0 : index
    %c96 = arith.constant 96 : index
    %122 = vector.load %arg11[%c0_38, %c96] : memref<8x128xf32, #tpu.memory_space<vmem>>, vector<8x32xf32>
    tpu.vector_store %arg11[%c0_38, %c96], %121 {strides = array<i32>} : memref<8x128xf32, #tpu.memory_space<vmem>>, vector<8x32xf32>,
    %c0_39 = arith.constant 0 : index
    %c0_40 = arith.constant 0 : index
    %123 = vector.load %arg11[%c0_39, %c0_40] : memref<8x128xf32, #tpu.memory_space<vmem>>, vector<8x128xf32>
    %124 = arith.truncf %123 : vector<8x128xf32> to vector<8x128xbf16>
    %cst_41 = arith.constant dense<0.000000e+00> : vector<8x128xf32>
    %125 = tpu.matmul %124, %30, %cst_41 {dimension_numbers = #tpu.dot_dimension_numbers<[1], [0], [0], [1], [0, 0, 1, 1], [], []>} : vector<8x128xbf16>, vector<128x128xbf16>, vector<8x128xf32> -> vector<8x128xf32>
    %126 = vector.broadcast %16 : vector<1x128xf32> to vector<8x128xf32>
    %127 = arith.addf %125, %126 : vector<8x128xf32>
    %128 = arith.addf %4, %127 : vector<8x128xf32>
    %cst_42 = arith.constant dense<0.000000e+00> : vector<8xf32>
    %129 = vector.multi_reduction <add>, %128, %cst_42 [1] : vector<8x128xf32> to vector<8xf32>
    %130 = vector.shape_cast %129 : vector<8xf32> to vector<8x1xf32>
    %cst_43 = arith.constant 1.280000e+02 : f32
    %131 = vector.broadcast %cst_43 : f32 to vector<8x1xf32>
    %132 = arith.divf %130, %131 : vector<8x1xf32>
    %133 = vector.broadcast %132 : vector<8x1xf32> to vector<8x128xf32>
    %134 = arith.subf %128, %133 : vector<8x128xf32>
    %135 = arith.mulf %134, %134 : vector<8x128xf32>
    %cst_44 = arith.constant dense<0.000000e+00> : vector<8xf32>
    %136 = vector.multi_reduction <add>, %135, %cst_44 [1] : vector<8x128xf32> to vector<8xf32>
    %137 = vector.shape_cast %136 : vector<8xf32> to vector<8x1xf32>
    %cst_45 = arith.constant 1.280000e+02 : f32
    %138 = vector.broadcast %cst_45 : f32 to vector<8x1xf32>
    %139 = arith.divf %137, %138 : vector<8x1xf32>
    %140 = vector.broadcast %132 : vector<8x1xf32> to vector<8x128xf32>
    %141 = arith.subf %128, %140 : vector<8x128xf32>
    %cst_46 = arith.constant 9.99999996E-13 : f32
    %142 = vector.broadcast %cst_46 : f32 to vector<8x1xf32>
    %143 = arith.addf %139, %142 : vector<8x1xf32>
    %144 = math.rsqrt %143 : vector<8x1xf32>
    %145 = vector.broadcast %144 : vector<8x1xf32> to vector<8x128xf32>
    %146 = arith.mulf %141, %145 : vector<8x128xf32>
    %147 = vector.broadcast %17 : vector<1x128xf32> to vector<8x128xf32>
    %148 = arith.mulf %146, %147 : vector<8x128xf32>
    %149 = vector.broadcast %18 : vector<1x128xf32> to vector<8x128xf32>
    %150 = arith.addf %148, %149 : vector<8x128xf32>
    %c0_47 = arith.constant 0 : index
    %c0_48 = arith.constant 0 : index
    %c0_49 = arith.constant 0 : index
    %151 = vector.load %arg7[%c0_47, %c0_48, %c0_49] : memref<1x128x512xbf16, #tpu.memory_space<vmem>>, vector<1x128x512xbf16>
    %152 = vector.shape_cast %151 : vector<1x128x512xbf16> to vector<128x512xbf16>
    %153 = arith.truncf %150 : vector<8x128xf32> to vector<8x128xbf16>
    %cst_50 = arith.constant dense<0.000000e+00> : vector<8x512xf32>
    %154 = tpu.matmul %153, %152, %cst_50 {dimension_numbers = #tpu.dot_dimension_numbers<[1], [0], [0], [1], [0, 0, 1, 1], [], []>} : vector<8x128xbf16>, vector<128x512xbf16>, vector<8x512xf32> -> vector<8x512xf32>
    %155 = vector.broadcast %23 : vector<1x512xf32> to vector<8x512xf32>
    %156 = arith.addf %154, %155 : vector<8x512xf32>
    %157 = arith.mulf %156, %156 : vector<8x512xf32>
    %158 = arith.mulf %156, %157 : vector<8x512xf32>
    %cst_51 = arith.constant 4.471500e-02 : f32
    %159 = vector.broadcast %cst_51 : f32 to vector<8x512xf32>
    %160 = arith.mulf %159, %158 : vector<8x512xf32>
    %161 = arith.addf %156, %160 : vector<8x512xf32>
    %cst_52 = arith.constant 0.797884583 : f32
    %162 = vector.broadcast %cst_52 : f32 to vector<8x512xf32>
    %163 = arith.mulf %162, %161 : vector<8x512xf32>
    %164 = math.tanh %163 : vector<8x512xf32>
    %cst_53 = arith.constant 1.000000e+00 : f32
    %165 = vector.broadcast %cst_53 : f32 to vector<8x512xf32>
    %166 = arith.addf %165, %164 : vector<8x512xf32>
    %cst_54 = arith.constant 5.000000e-01 : f32
    %167 = vector.broadcast %cst_54 : f32 to vector<8x512xf32>
    %168 = arith.mulf %167, %166 : vector<8x512xf32>
    %169 = arith.mulf %156, %168 : vector<8x512xf32>
    %c0_55 = arith.constant 0 : index
    %c0_56 = arith.constant 0 : index
    %c0_57 = arith.constant 0 : index
    %170 = vector.load %arg8[%c0_55, %c0_56, %c0_57] : memref<1x512x128xbf16, #tpu.memory_space<vmem>>, vector<1x512x128xbf16>
    %171 = vector.shape_cast %170 : vector<1x512x128xbf16> to vector<512x128xbf16>
    %172 = arith.truncf %169 : vector<8x512xf32> to vector<8x512xbf16>
    %cst_58 = arith.constant dense<0.000000e+00> : vector<8x128xf32>
    %173 = tpu.matmul %172, %171, %cst_58 {dimension_numbers = #tpu.dot_dimension_numbers<[1], [0], [0], [1], [0, 0, 1, 1], [], []>} : vector<8x512xbf16>, vector<512x128xbf16>, vector<8x128xf32> -> vector<8x128xf32>
    %174 = arith.addf %150, %173 : vector<8x128xf32>
    %175 = vector.broadcast %24 : vector<1x128xf32> to vector<8x128xf32>
    %176 = arith.addf %174, %175 : vector<8x128xf32>
    %cst_59 = arith.constant dense<0.000000e+00> : vector<8xf32>
    %177 = vector.multi_reduction <add>, %176, %cst_59 [1] : vector<8x128xf32> to vector<8xf32>
    %178 = vector.shape_cast %177 : vector<8xf32> to vector<8x1xf32>
    %cst_60 = arith.constant 1.280000e+02 : f32
    %179 = vector.broadcast %cst_60 : f32 to vector<8x1xf32>
    %180 = arith.divf %178, %179 : vector<8x1xf32>
    %181 = vector.broadcast %180 : vector<8x1xf32> to vector<8x128xf32>
    %182 = arith.subf %176, %181 : vector<8x128xf32>
    %183 = arith.mulf %182, %182 : vector<8x128xf32>
    %cst_61 = arith.constant dense<0.000000e+00> : vector<8xf32>
    %184 = vector.multi_reduction <add>, %183, %cst_61 [1] : vector<8x128xf32> to vector<8xf32>
    %185 = vector.shape_cast %184 : vector<8xf32> to vector<8x1xf32>
    %cst_62 = arith.constant 1.280000e+02 : f32
    %186 = vector.broadcast %cst_62 : f32 to vector<8x1xf32>
    %187 = arith.divf %185, %186 : vector<8x1xf32>
    %188 = vector.broadcast %180 : vector<8x1xf32> to vector<8x128xf32>
    %189 = arith.subf %176, %188 : vector<8x128xf32>
    %cst_63 = arith.constant 9.99999996E-13 : f32
    %190 = vector.broadcast %cst_63 : f32 to vector<8x1xf32>
    %191 = arith.addf %187, %190 : vector<8x1xf32>
    %192 = math.rsqrt %191 : vector<8x1xf32>
    %193 = vector.broadcast %192 : vector<8x1xf32> to vector<8x128xf32>
    %194 = arith.mulf %189, %193 : vector<8x128xf32>
    %195 = vector.broadcast %25 : vector<1x128xf32> to vector<8x128xf32>
    %196 = arith.mulf %194, %195 : vector<8x128xf32>
    %197 = vector.broadcast %26 : vector<1x128xf32> to vector<8x128xf32>
    %198 = arith.addf %196, %197 : vector<8x128xf32>
    %c0_64 = arith.constant 0 : index
    %c0_65 = arith.constant 0 : index
    %c0_66 = arith.constant 0 : index
    %199 = vector.load %arg10[%c0_64, %c0_65, %c0_66] : memref<1x8x128xf32, #tpu.memory_space<vmem>>, vector<1x8x128xf32>
    %200 = vector.shape_cast %199 : vector<1x8x128xf32> to vector<8x128xf32>
    %201 = vector.shape_cast %198 : vector<8x128xf32> to vector<1x8x128xf32>
    tpu.vector_store %arg10[%c0_64, %c0_65, %c0_66], %201 {strides = array<i32>} : memref<1x8x128xf32, #tpu.memory_space<vmem>>, vector<1x8x128xf32>,
    return
  }
  func.func @transform_0(%arg0: i32, %arg1: i32) -> (i32, i32, i32) {
    %c0_i32 = arith.constant 0 : i32
    %c0_i32_0 = arith.constant 0 : i32
    %c0_i32_1 = arith.constant 0 : i32
    return %arg0, %c0_i32, %c0_i32_0 : i32, i32, i32
  }
  func.func @transform_1(%arg0: i32, %arg1: i32) -> (i32, i32, i32) {
    %c0_i32 = arith.constant 0 : i32
    %c0_i32_0 = arith.constant 0 : i32
    %c0_i32_1 = arith.constant 0 : i32
    return %arg0, %c0_i32, %c0_i32_0 : i32, i32, i32
  }
  func.func @transform_2(%arg0: i32, %arg1: i32) -> (i32, i32) {
    %c0_i32 = arith.constant 0 : i32
    %c0_i32_0 = arith.constant 0 : i32
    %c0_i32_1 = arith.constant 0 : i32
    return %c0_i32, %c0_i32_0 : i32, i32
  }
  func.func @transform_3(%arg0: i32, %arg1: i32) -> (i32, i32, i32) {
    %c0_i32 = arith.constant 0 : i32
    %c0_i32_0 = arith.constant 0 : i32
    %c0_i32_1 = arith.constant 0 : i32
    return %arg1, %c0_i32, %c0_i32_0 : i32, i32, i32
  }
  func.func @transform_4(%arg0: i32, %arg1: i32) -> (i32, i32, i32) {
    %c0_i32 = arith.constant 0 : i32
    %c0_i32_0 = arith.constant 0 : i32
    %c0_i32_1 = arith.constant 0 : i32
    return %arg1, %c0_i32, %c0_i32_0 : i32, i32, i32
  }
  func.func @transform_5(%arg0: i32, %arg1: i32) -> (i32, i32, i32) {
    %c0_i32 = arith.constant 0 : i32
    %c0_i32_0 = arith.constant 0 : i32
    %c0_i32_1 = arith.constant 0 : i32
    return %arg1, %c0_i32, %c0_i32_0 : i32, i32, i32
  }
  func.func @transform_6(%arg0: i32, %arg1: i32) -> (i32, i32, i32) {
    %c0_i32 = arith.constant 0 : i32
    %c0_i32_0 = arith.constant 0 : i32
    %c0_i32_1 = arith.constant 0 : i32
    return %arg1, %c0_i32, %c0_i32_0 : i32, i32, i32
  }
  func.func @transform_7(%arg0: i32, %arg1: i32) -> (i32, i32, i32) {
    %c0_i32 = arith.constant 0 : i32
    %c0_i32_0 = arith.constant 0 : i32
    %c0_i32_1 = arith.constant 0 : i32
    return %arg1, %c0_i32, %c0_i32_0 : i32, i32, i32
  }
  func.func @transform_8(%arg0: i32, %arg1: i32) -> (i32, i32, i32) {
    %c0_i32 = arith.constant 0 : i32
    %c0_i32_0 = arith.constant 0 : i32
    %c0_i32_1 = arith.constant 0 : i32
    return %arg0, %c0_i32, %c0_i32_0 : i32, i32, i32
  }
}

module attributes {stable_mosaic.version = 11 : i64} {
  func.func @_proj_ita_kernel(%arg0: i32, %arg1: memref<2x128xf32, #tpu.memory_space<vmem>>, %arg2: memref<128x128xbf16, #tpu.memory_space<vmem>>, %arg3: memref<1x128xf32, #tpu.memory_space<vmem>>, %arg4: memref<2x128xf32, #tpu.memory_space<vmem>>, %arg5: memref<128x128xbf16, #tpu.memory_space<vmem>>, %arg6: memref<1x128xf32, #tpu.memory_space<vmem>>, %arg7: memref<1x1xf32, #tpu.memory_space<smem>>, %arg8: memref<1x1xf32, #tpu.memory_space<vmem>>) attributes {dimension_semantics = [#tpu.dimension_semantics<arbitrary>], iteration_bounds = array<i64: 1>, scalar_prefetch = 0 : i64, scratch_operands = 0 : i64, tpu.core_type = #tpu.core_type<tc>, window_params = [{pipeline_mode = #tpu.pipeline_mode<synchronous>, transform_indices = @transform_0, window_bounds = array<i64: 2, 128>}, {pipeline_mode = #tpu.pipeline_mode<synchronous>, transform_indices = @transform_1, window_bounds = array<i64: 128, 128>}, {pipeline_mode = #tpu.pipeline_mode<synchronous>, transform_indices = @transform_2, window_bounds = array<i64: 1, 128>}, {pipeline_mode = #tpu.pipeline_mode<synchronous>, transform_indices = @transform_3, window_bounds = array<i64: 2, 128>}, {pipeline_mode = #tpu.pipeline_mode<synchronous>, transform_indices = @transform_4, window_bounds = array<i64: 128, 128>}, {pipeline_mode = #tpu.pipeline_mode<synchronous>, transform_indices = @transform_5, window_bounds = array<i64: 1, 128>}, {transform_indices = @transform_6, window_bounds = array<i64: 1, 1>}, {pipeline_mode = #tpu.pipeline_mode<synchronous>, transform_indices = @transform_7, window_bounds = array<i64: 1, 1>}]} {
    %c0 = arith.constant 0 : index
    %c0_0 = arith.constant 0 : index
    %0 = memref.load %arg7[%c0, %c0_0] : memref<1x1xf32, #tpu.memory_space<smem>>
    %c0_1 = arith.constant 0 : index
    %c0_2 = arith.constant 0 : index
    %1 = vector.load %arg1[%c0_1, %c0_2] : memref<2x128xf32, #tpu.memory_space<vmem>>, vector<2x128xf32>
    %c0_3 = arith.constant 0 : index
    %c0_4 = arith.constant 0 : index
    %2 = vector.load %arg2[%c0_3, %c0_4] : memref<128x128xbf16, #tpu.memory_space<vmem>>, vector<128x128xbf16>
    %3 = arith.truncf %1 : vector<2x128xf32> to vector<2x128xbf16>
    %cst = arith.constant dense<0.000000e+00> : vector<2x128xf32>
    %4 = tpu.matmul %3, %2, %cst {dimension_numbers = #tpu.dot_dimension_numbers<[1], [0], [0], [1], [0, 0, 1, 1], [], []>} : vector<2x128xbf16>, vector<128x128xbf16>, vector<2x128xf32> -> vector<2x128xf32>
    %c0_5 = arith.constant 0 : index
    %c0_6 = arith.constant 0 : index
    %5 = vector.load %arg3[%c0_5, %c0_6] : memref<1x128xf32, #tpu.memory_space<vmem>>, vector<1x128xf32>
    %6 = vector.broadcast %5 : vector<1x128xf32> to vector<2x128xf32>
    %7 = arith.addf %4, %6 : vector<2x128xf32>
    %c0_7 = arith.constant 0 : index
    %c0_8 = arith.constant 0 : index
    %8 = vector.load %arg4[%c0_7, %c0_8] : memref<2x128xf32, #tpu.memory_space<vmem>>, vector<2x128xf32>
    %c0_9 = arith.constant 0 : index
    %c0_10 = arith.constant 0 : index
    %9 = vector.load %arg5[%c0_9, %c0_10] : memref<128x128xbf16, #tpu.memory_space<vmem>>, vector<128x128xbf16>
    %10 = arith.truncf %8 : vector<2x128xf32> to vector<2x128xbf16>
    %cst_11 = arith.constant dense<0.000000e+00> : vector<2x128xf32>
    %11 = tpu.matmul %10, %9, %cst_11 {dimension_numbers = #tpu.dot_dimension_numbers<[1], [0], [0], [1], [0, 0, 1, 1], [], []>} : vector<2x128xbf16>, vector<128x128xbf16>, vector<2x128xf32> -> vector<2x128xf32>
    %c0_12 = arith.constant 0 : index
    %c0_13 = arith.constant 0 : index
    %12 = vector.load %arg6[%c0_12, %c0_13] : memref<1x128xf32, #tpu.memory_space<vmem>>, vector<1x128xf32>
    %13 = vector.broadcast %12 : vector<1x128xf32> to vector<2x128xf32>
    %14 = arith.addf %11, %13 : vector<2x128xf32>
    %15 = arith.mulf %7, %7 : vector<2x128xf32>
    %cst_14 = arith.constant dense<0.000000e+00> : vector<2xf32>
    %16 = vector.multi_reduction <add>, %15, %cst_14 [1] : vector<2x128xf32> to vector<2xf32>
    %17 = vector.shape_cast %16 : vector<2xf32> to vector<2x1xf32>
    %cst_15 = arith.constant 9.99999996E-13 : f32
    %18 = vector.broadcast %cst_15 : f32 to vector<2x1xf32>
    %19 = arith.addf %17, %18 : vector<2x1xf32>
    %20 = math.rsqrt %19 : vector<2x1xf32>
    %21 = vector.broadcast %20 : vector<2x1xf32> to vector<2x128xf32>
    %22 = arith.mulf %7, %21 : vector<2x128xf32>
    %23 = arith.truncf %22 : vector<2x128xf32> to vector<2x128xbf16>
    %24 = arith.mulf %14, %14 : vector<2x128xf32>
    %cst_16 = arith.constant dense<0.000000e+00> : vector<2xf32>
    %25 = vector.multi_reduction <add>, %24, %cst_16 [1] : vector<2x128xf32> to vector<2xf32>
    %26 = vector.shape_cast %25 : vector<2xf32> to vector<2x1xf32>
    %cst_17 = arith.constant 9.99999996E-13 : f32
    %27 = vector.broadcast %cst_17 : f32 to vector<2x1xf32>
    %28 = arith.addf %26, %27 : vector<2x1xf32>
    %29 = math.rsqrt %28 : vector<2x1xf32>
    %30 = vector.broadcast %29 : vector<2x1xf32> to vector<2x128xf32>
    %31 = arith.mulf %14, %30 : vector<2x128xf32>
    %32 = arith.truncf %31 : vector<2x128xf32> to vector<2x128xbf16>
    %cst_18 = arith.constant dense<0.000000e+00> : vector<2x2xf32>
    %33 = tpu.matmul %23, %32, %cst_18 {dimension_numbers = #tpu.dot_dimension_numbers<[1], [1], [0], [0], [0, 0, 1, 0], [], []>} : vector<2x128xbf16>, vector<2x128xbf16>, vector<2x2xf32> -> vector<2x2xf32>
    %34 = vector.broadcast %0 : f32 to vector<2x2xf32>
    %35 = arith.mulf %33, %34 : vector<2x2xf32>
    %cst_19 = arith.constant dense<0.000000e+00> : vector<2x2xf32>
    %36 = tpu.matmul %32, %23, %cst_19 {dimension_numbers = #tpu.dot_dimension_numbers<[1], [1], [0], [0], [0, 0, 1, 0], [], []>} : vector<2x128xbf16>, vector<2x128xbf16>, vector<2x2xf32> -> vector<2x2xf32>
    %37 = vector.broadcast %0 : f32 to vector<2x2xf32>
    %38 = arith.mulf %36, %37 : vector<2x2xf32>
    %39 = tpu.iota {dimensions = array<i32: 0>} : vector<2x2xi32>
    %40 = tpu.iota {dimensions = array<i32: 1>} : vector<2x2xi32>
    %41 = arith.cmpi eq, %39, %40 : vector<2x2xi32>
    %42 = arith.extui %41 : vector<2x2xi1> to vector<2x2xi32>
    %43 = arith.sitofp %42 : vector<2x2xi32> to vector<2x2xf32>
    %cst_20 = arith.constant dense<0xFF800000> : vector<2xf32>
    %44 = vector.multi_reduction <maximumf>, %35, %cst_20 [1] : vector<2x2xf32> to vector<2xf32>
    %45 = vector.shape_cast %44 : vector<2xf32> to vector<2x1xf32>
    %46 = vector.broadcast %45 : vector<2x1xf32> to vector<2x2xf32>
    %47 = arith.subf %35, %46 : vector<2x2xf32>
    %48 = math.exp %47 : vector<2x2xf32>
    %cst_21 = arith.constant dense<0.000000e+00> : vector<2xf32>
    %49 = vector.multi_reduction <add>, %48, %cst_21 [1] : vector<2x2xf32> to vector<2xf32>
    %50 = vector.shape_cast %49 : vector<2xf32> to vector<2x1xf32>
    %51 = math.log %50 : vector<2x1xf32>
    %52 = vector.broadcast %51 : vector<2x1xf32> to vector<2x2xf32>
    %53 = arith.subf %47, %52 : vector<2x2xf32>
    %54 = arith.mulf %53, %43 : vector<2x2xf32>
    %cst_22 = arith.constant dense<0.000000e+00> : vector<2xf32>
    %55 = vector.multi_reduction <add>, %54, %cst_22 [1] : vector<2x2xf32> to vector<2xf32>
    %56 = vector.shape_cast %55 : vector<2xf32> to vector<2x1xf32>
    %cst_23 = arith.constant 0.000000e+00 : f32
    %57 = vector.broadcast %cst_23 : f32 to vector<2x1xf32>
    %58 = arith.subf %57, %56 : vector<2x1xf32>
    %cst_24 = arith.constant dense<0xFF800000> : vector<2xf32>
    %59 = vector.multi_reduction <maximumf>, %38, %cst_24 [1] : vector<2x2xf32> to vector<2xf32>
    %60 = vector.shape_cast %59 : vector<2xf32> to vector<2x1xf32>
    %61 = vector.broadcast %60 : vector<2x1xf32> to vector<2x2xf32>
    %62 = arith.subf %38, %61 : vector<2x2xf32>
    %63 = math.exp %62 : vector<2x2xf32>
    %cst_25 = arith.constant dense<0.000000e+00> : vector<2xf32>
    %64 = vector.multi_reduction <add>, %63, %cst_25 [1] : vector<2x2xf32> to vector<2xf32>
    %65 = vector.shape_cast %64 : vector<2xf32> to vector<2x1xf32>
    %66 = math.log %65 : vector<2x1xf32>
    %67 = vector.broadcast %66 : vector<2x1xf32> to vector<2x2xf32>
    %68 = arith.subf %62, %67 : vector<2x2xf32>
    %69 = arith.mulf %68, %43 : vector<2x2xf32>
    %cst_26 = arith.constant dense<0.000000e+00> : vector<2xf32>
    %70 = vector.multi_reduction <add>, %69, %cst_26 [1] : vector<2x2xf32> to vector<2xf32>
    %71 = vector.shape_cast %70 : vector<2xf32> to vector<2x1xf32>
    %cst_27 = arith.constant 0.000000e+00 : f32
    %72 = vector.broadcast %cst_27 : f32 to vector<2x1xf32>
    %73 = arith.subf %72, %71 : vector<2x1xf32>
    %cst_28 = arith.constant dense<0.000000e+00> : vector<1xf32>
    %74 = vector.multi_reduction <add>, %58, %cst_28 [0] : vector<2x1xf32> to vector<1xf32>
    %75 = vector.shape_cast %74 : vector<1xf32> to vector<1x1xf32>
    %cst_29 = arith.constant dense<0.000000e+00> : vector<1xf32>
    %76 = vector.multi_reduction <add>, %73, %cst_29 [0] : vector<2x1xf32> to vector<1xf32>
    %77 = vector.shape_cast %76 : vector<1xf32> to vector<1x1xf32>
    %78 = arith.addf %75, %77 : vector<1x1xf32>
    %cst_30 = arith.constant 5.000000e-01 : f32
    %79 = vector.broadcast %cst_30 : f32 to vector<1x1xf32>
    %80 = arith.mulf %79, %78 : vector<1x1xf32>
    %cst_31 = arith.constant 2.000000e+00 : f32
    %81 = vector.broadcast %cst_31 : f32 to vector<1x1xf32>
    %82 = arith.divf %80, %81 : vector<1x1xf32>
    %c0_32 = arith.constant 0 : index
    %c0_33 = arith.constant 0 : index
    %83 = vector.load %arg8[%c0_32, %c0_33] : memref<1x1xf32, #tpu.memory_space<vmem>>, vector<1x1xf32>
    tpu.vector_store %arg8[%c0_32, %c0_33], %82 {strides = array<i32>} : memref<1x1xf32, #tpu.memory_space<vmem>>, vector<1x1xf32>,
    return
  }
  func.func @transform_0(%arg0: i32) -> (i32, i32) {
    %c0_i32 = arith.constant 0 : i32
    %c0_i32_0 = arith.constant 0 : i32
    %c0_i32_1 = arith.constant 0 : i32
    return %c0_i32, %c0_i32_0 : i32, i32
  }
  func.func @transform_1(%arg0: i32) -> (i32, i32) {
    %c0_i32 = arith.constant 0 : i32
    %c0_i32_0 = arith.constant 0 : i32
    %c0_i32_1 = arith.constant 0 : i32
    return %c0_i32, %c0_i32_0 : i32, i32
  }
  func.func @transform_2(%arg0: i32) -> (i32, i32) {
    %c0_i32 = arith.constant 0 : i32
    %c0_i32_0 = arith.constant 0 : i32
    %c0_i32_1 = arith.constant 0 : i32
    return %c0_i32, %c0_i32_0 : i32, i32
  }
  func.func @transform_3(%arg0: i32) -> (i32, i32) {
    %c0_i32 = arith.constant 0 : i32
    %c0_i32_0 = arith.constant 0 : i32
    %c0_i32_1 = arith.constant 0 : i32
    return %c0_i32, %c0_i32_0 : i32, i32
  }
  func.func @transform_4(%arg0: i32) -> (i32, i32) {
    %c0_i32 = arith.constant 0 : i32
    %c0_i32_0 = arith.constant 0 : i32
    %c0_i32_1 = arith.constant 0 : i32
    return %c0_i32, %c0_i32_0 : i32, i32
  }
  func.func @transform_5(%arg0: i32) -> (i32, i32) {
    %c0_i32 = arith.constant 0 : i32
    %c0_i32_0 = arith.constant 0 : i32
    %c0_i32_1 = arith.constant 0 : i32
    return %c0_i32, %c0_i32_0 : i32, i32
  }
  func.func @transform_6(%arg0: i32) -> (i32, i32) {
    %c0_i32 = arith.constant 0 : i32
    %c0_i32_0 = arith.constant 0 : i32
    %c0_i32_1 = arith.constant 0 : i32
    return %c0_i32, %c0_i32_0 : i32, i32
  }
  func.func @transform_7(%arg0: i32) -> (i32, i32) {
    %c0_i32 = arith.constant 0 : i32
    %c0_i32_0 = arith.constant 0 : i32
    %c0_i32_1 = arith.constant 0 : i32
    return %c0_i32, %c0_i32_0 : i32, i32
  }
}

</mosaic_0001>

<llo_original>
// kernel: blip_forward.5
$region0: #{blip_forward.5}
  #allocation0 [shape = 'u32[]', space=smem, size = 0x4, offset = 0x4, fixed_abs, tag = 'smem constant byte address 0x4 - core index']
  #allocation1 [shape = 'u32[144,128]{1,0:T(1,128)}', space=vmem, size = 0x12000, scoped, tag = 'internal scratch']
  #allocation2 [shape = 'f32[1,1]{1,0:T(1,128)S(6)}', space=smem, size = 0x200, scoped, tag = 'scoped memory for blip_forward.5']
  %s0 = inlined_call_operand.vmem [shape: f32[2,128], index: 0, kind: input, shape index: {}]
  %s1 = inlined_call_operand.vmem [shape: bf16[128,128], index: 1, kind: input, shape index: {}]
  %s2 = inlined_call_operand.vmem [shape: f32[1,128], index: 2, kind: input, shape index: {}]
  %s3 = inlined_call_operand.vmem [shape: f32[2,128], index: 3, kind: input, shape index: {}]
  %s4 = inlined_call_operand.vmem [shape: bf16[128,128], index: 4, kind: input, shape index: {}]
  %s5 = inlined_call_operand.vmem [shape: f32[1,128], index: 5, kind: input, shape index: {}]
  %s6 = inlined_call_operand.<no memory space> [shape: f32[1,1], index: 6, kind: input, shape index: {}]
  %s7 = inlined_call_operand.hbm [shape: f32[1,1], index: 7, kind: output, shape index: {}]
  %s8 = sld [smem:[#allocation0]]
  $region38: #{blip_forward.5} parent=0
    _
  %s10 = ssub.s32 1, %s8
  %s11 = scalar_select 0, %s10, %s8
  %12 = sst [smem:[#allocation2]] %s6
  $region1: #{blip_forward.5} parent=0
    #allocation3 [shape = 'u8[512]{0}', space=vmem, size = 0x400, scoped, tag = 'output window, operand 0, single buffered']
    #allocation4 [shape = 's32[1]{0}', space=sflag, size = 0x4, scoped, tag = 'scoped memory for blip_forward.5']
    %13 = vsyncpa [#allocation4], 0
    // Predicated region
    $region2: #{blip_forward.5} parent=1 // pred_check
      _
    $region3: #{blip_forward.5} parent=1 // pred_check_branch
      %15 = sbr.rel (0) target = $region5
    $region4: #{blip_forward.5} parent=1 // pred_region
      _
    $region5: #{blip_forward.5} parent=1 // pred_fallthru
      _
    // Predicated region
    $region6: #{blip_forward.5} parent=1 // pred_check
      _
    $region7: #{blip_forward.5} parent=1 // pred_check_branch
      %17 = sbr.rel (0) target = $region9
    $region8: #{blip_forward.5} parent=1 // pred_region
      _
    $region9: #{blip_forward.5} parent=1 // pred_fallthru
      _
    // Predicated region
    $region10: #{blip_forward.5} parent=1 // pred_check
      _
    $region11: #{blip_forward.5} parent=1 // pred_check_branch
      %19 = sbr.rel (0) target = $region13
    $region12: #{blip_forward.5} parent=1 // pred_region
      _
    $region13: #{blip_forward.5} parent=1 // pred_fallthru
      _
    // Predicated region
    $region14: #{blip_forward.5} parent=1 // pred_check
      _
    $region15: #{blip_forward.5} parent=1 // pred_check_branch
      %21 = sbr.rel (0) target = $region17
    $region16: #{blip_forward.5} parent=1 // pred_region
      _
    $region17: #{blip_forward.5} parent=1 // pred_fallthru
      _
    // Predicated region
    $region18: #{blip_forward.5} parent=1 // pred_check
      _
    $region19: #{blip_forward.5} parent=1 // pred_check_branch
      %23 = sbr.rel (0) target = $region21
    $region20: #{blip_forward.5} parent=1 // pred_region
      _
    $region21: #{blip_forward.5} parent=1 // pred_fallthru
      _
    // Predicated region
    $region22: #{blip_forward.5} parent=1 // pred_check
      _
    $region23: #{blip_forward.5} parent=1 // pred_check_branch
      %25 = sbr.rel (0) target = $region25
    $region24: #{blip_forward.5} parent=1 // pred_region
      _
    $region25: #{blip_forward.5} parent=1 // pred_fallthru
      _
    // Predicated region
    $region26: #{blip_forward.5} parent=1 // pred_check
      _
    $region27: #{blip_forward.5} parent=1 // pred_check_branch
      %27 = sbr.rel (0) target = $region29
    $region28: #{blip_forward.5} parent=1 // pred_region
      _
    $region29: #{blip_forward.5} parent=1 // pred_fallthru
      _
    %s29 = sld [smem:[#allocation2]]
    %v30 = vld [vmem:[%s0] sm:$0x3]
    %v31 = vld [vmem:[%s1] sm:$0xf]
    %v32 = vld [vmem:[%s1 + $0x4] sm:$0xf]
    %v33 = vld [vmem:[%s1 + $0x8] sm:$0xf]
    %v34 = vld [vmem:[%s1 + $0xc] sm:$0xf]
    %v35 = vld [vmem:[%s1 + $0x10] sm:$0xf]
    %v36 = vld [vmem:[%s1 + $0x14] sm:$0xf]
    %v37 = vld [vmem:[%s1 + $0x18] sm:$0xf]
    %v38 = vld [vmem:[%s1 + $0x1c] sm:$0xf]
    %v39 = vld [vmem:[%s1 + $0x20] sm:$0xf]
    %v40 = vld [vmem:[%s1 + $0x24] sm:$0xf]
    %v41 = vld [vmem:[%s1 + $0x28] sm:$0xf]
    %v42 = vld [vmem:[%s1 + $0x2c] sm:$0xf]
    %v43 = vld [vmem:[%s1 + $0x30] sm:$0xf]
    %v44 = vld [vmem:[%s1 + $0x34] sm:$0xf]
    %v45 = vld [vmem:[%s1 + $0x38] sm:$0xf]
    %v46 = vld [vmem:[%s1 + $0x3c] sm:$0xf]
    %v47 = vpack.c.bf16 %v30, %v30
    %v48 = vld [vmem:[%s2] sm:$0x1]
    %v50 = vlaneseq
    %v51 = vshrl.u32 %v50, 7
    %v52 = vsub.s32 0, %v51
    %v53 = vrot.slane %v48, %v52
    %v71 = vunpack.c.l.b16 %v31
    %v72 = vunpack.c.l.b16 %v32
    %v73 = vunpack.c.l.b16 %v33
    %v74 = vunpack.c.l.b16 %v34
    %v75 = vunpack.c.l.b16 %v35
    %v76 = vunpack.c.l.b16 %v36
    %v77 = vunpack.c.l.b16 %v37
    %v78 = vunpack.c.l.b16 %v38
    %v79 = vunpack.c.l.b16 %v39
    %v80 = vunpack.c.l.b16 %v40
    %v81 = vunpack.c.l.b16 %v41
    %v82 = vunpack.c.l.b16 %v42
    %v83 = vunpack.c.l.b16 %v43
    %v84 = vunpack.c.l.b16 %v44
    %v85 = vunpack.c.l.b16 %v45
    %v86 = vunpack.c.l.b16 %v46
    %v87 = vpack.c.b16 %v72, %v71
    %v88 = vpack.c.b16 %v74, %v73
    %v89 = vpack.c.b16 %v76, %v75
    %v90 = vpack.c.b16 %v78, %v77
    %v91 = vpack.c.b16 %v80, %v79
    %v92 = vpack.c.b16 %v82, %v81
    %v93 = vpack.c.b16 %v84, %v83
    %v94 = vpack.c.b16 %v86, %v85
    %103 = vmatprep.subr.bf16.mxu0 0
    %104 = vmatpush1.bf16.msra.mxu0 %v94
    %105 = vmatprep.subr.bf16.mxu0 0
    %106 = vmatpush1.bf16.msra.mxu0 %v93
    %107 = vmatprep.subr.bf16.mxu0 0
    %108 = vmatpush1.bf16.msra.mxu0 %v92
    %109 = vmatprep.subr.bf16.mxu0 0
    %110 = vmatpush1.bf16.msra.mxu0 %v91
    %111 = vmatprep.subr.bf16.mxu0 0
    %112 = vmatpush1.bf16.msra.mxu0 %v90
    %113 = vmatprep.subr.bf16.mxu0 0
    %114 = vmatpush1.bf16.msra.mxu0 %v89
    %115 = vmatprep.subr.bf16.mxu0 0
    %116 = vmatpush1.bf16.msra.mxu0 %v88
    %117 = vmatprep.subr.bf16.mxu0 0
    %118 = vmatpush1.bf16.msra.mxu0 %v87
    %119 = vmatprep.subr.bf16.mxu0 0
    %120 = vmatpush2.bf16.msra.mxu0 0
    %121 = vmatprep.subr.bf16.mxu0 0
    %122 = vmatpush2.bf16.msra.mxu0 0
    %123 = vmatprep.subr.bf16.mxu0 0
    %124 = vmatpush2.bf16.msra.mxu0 0
    %125 = vmatprep.subr.bf16.mxu0 0
    %126 = vmatpush2.bf16.msra.mxu0 0
    %127 = vmatprep.subr.bf16.mxu0 0
    %128 = vmatpush2.bf16.msra.mxu0 0
    %129 = vmatprep.subr.bf16.mxu0 0
    %130 = vmatpush2.bf16.msra.mxu0 0
    %131 = vmatprep.subr.bf16.mxu0 0
    %132 = vmatpush2.bf16.msra.mxu0 0
    %133 = vmatprep.subr.bf16.mxu0 0
    %134 = vmatpush2.bf16.msra.mxu0 0
    %135 = vmatprep.mubr.bf16.mxu0 0
    %136 = vmatmul.mubr.bf16.gmra.mxu0 %v47
    %v137 = vpop.f32.mrf.mxu0
    %v138 = vadd.f32 %v53, %v137
    %v139 = vpop.f32.mrf.mxu0
    %v140 = vpop.f32.mrf.mxu0
    %v141 = vpop.f32.mrf.mxu0
    %142 = vdwg.mxu0
    %v143 = vld [vmem:[%s3] sm:$0x3]
    %v144 = vld [vmem:[%s4] sm:$0xf]
    %v145 = vld [vmem:[%s4 + $0x4] sm:$0xf]
    %v146 = vld [vmem:[%s4 + $0x8] sm:$0xf]
    %v147 = vld [vmem:[%s4 + $0xc] sm:$0xf]
    %v148 = vld [vmem:[%s4 + $0x10] sm:$0xf]
    %v149 = vld [vmem:[%s4 + $0x14] sm:$0xf]
    %v150 = vld [vmem:[%s4 + $0x18] sm:$0xf]
    %v151 = vld [vmem:[%s4 + $0x1c] sm:$0xf]
    %v152 = vld [vmem:[%s4 + $0x20] sm:$0xf]
    %v153 = vld [vmem:[%s4 + $0x24] sm:$0xf]
    %v154 = vld [vmem:[%s4 + $0x28] sm:$0xf]
    %v155 = vld [vmem:[%s4 + $0x2c] sm:$0xf]
    %v156 = vld [vmem:[%s4 + $0x30] sm:$0xf]
    %v157 = vld [vmem:[%s4 + $0x34] sm:$0xf]
    %v158 = vld [vmem:[%s4 + $0x38] sm:$0xf]
    %v159 = vld [vmem:[%s4 + $0x3c] sm:$0xf]
    %v160 = vpack.c.bf16 %v143, %v143
    %v161 = vld [vmem:[%s5] sm:$0x1]
    %v163 = vlaneseq
    %v164 = vshrl.u32 %v163, 7
    %v165 = vsub.s32 0, %v164
    %v166 = vrot.slane %v161, %v165
    %v184 = vunpack.c.l.b16 %v144
    %v185 = vunpack.c.l.b16 %v145
    %v186 = vunpack.c.l.b16 %v146
    %v187 = vunpack.c.l.b16 %v147
    %v188 = vunpack.c.l.b16 %v148
    %v189 = vunpack.c.l.b16 %v149
    %v190 = vunpack.c.l.b16 %v150
    %v191 = vunpack.c.l.b16 %v151
    %v192 = vunpack.c.l.b16 %v152
    %v193 = vunpack.c.l.b16 %v153
    %v194 = vunpack.c.l.b16 %v154
    %v195 = vunpack.c.l.b16 %v155
    %v196 = vunpack.c.l.b16 %v156
    %v197 = vunpack.c.l.b16 %v157
    %v198 = vunpack.c.l.b16 %v158
    %v199 = vunpack.c.l.b16 %v159
    %v200 = vpack.c.b16 %v185, %v184
    %v201 = vpack.c.b16 %v187, %v186
    %v202 = vpack.c.b16 %v189, %v188
    %v203 = vpack.c.b16 %v191, %v190
    %v204 = vpack.c.b16 %v193, %v192
    %v205 = vpack.c.b16 %v195, %v194
    %v206 = vpack.c.b16 %v197, %v196
    %v207 = vpack.c.b16 %v199, %v198
    %216 = vmatprep.subr.bf16.mxu0 0
    %217 = vmatpush1.bf16.msra.mxu0 %v207
    %218 = vmatprep.subr.bf16.mxu0 0
    %219 = vmatpush1.bf16.msra.mxu0 %v206
    %220 = vmatprep.subr.bf16.mxu0 0
    %221 = vmatpush1.bf16.msra.mxu0 %v205
    %222 = vmatprep.subr.bf16.mxu0 0
    %223 = vmatpush1.bf16.msra.mxu0 %v204
    %224 = vmatprep.subr.bf16.mxu0 0
    %225 = vmatpush1.bf16.msra.mxu0 %v203
    %226 = vmatprep.subr.bf16.mxu0 0
    %227 = vmatpush1.bf16.msra.mxu0 %v202
    %228 = vmatprep.subr.bf16.mxu0 0
    %229 = vmatpush1.bf16.msra.mxu0 %v201
    %230 = vmatprep.subr.bf16.mxu0 0
    %231 = vmatpush1.bf16.msra.mxu0 %v200
    %232 = vmatprep.subr.bf16.mxu0 0
    %233 = vmatpush2.bf16.msra.mxu0 0
    %234 = vmatprep.subr.bf16.mxu0 0
    %235 = vmatpush2.bf16.msra.mxu0 0
    %236 = vmatprep.subr.bf16.mxu0 0
    %237 = vmatpush2.bf16.msra.mxu0 0
    %238 = vmatprep.subr.bf16.mxu0 0
    %239 = vmatpush2.bf16.msra.mxu0 0
    %240 = vmatprep.subr.bf16.mxu0 0
    %241 = vmatpush2.bf16.msra.mxu0 0
    %242 = vmatprep.subr.bf16.mxu0 0
    %243 = vmatpush2.bf16.msra.mxu0 0
    %244 = vmatprep.subr.bf16.mxu0 0
    %245 = vmatpush2.bf16.msra.mxu0 0
    %246 = vmatprep.subr.bf16.mxu0 0
    %247 = vmatpush2.bf16.msra.mxu0 0
    %248 = vmatprep.mubr.bf16.mxu0 0
    %249 = vmatmul.mubr.bf16.gmra.mxu0 %v160
    %v250 = vpop.f32.mrf.mxu0
    %v251 = vadd.f32 %v166, %v250
    %v252 = vpop.f32.mrf.mxu0
    %v253 = vpop.f32.mrf.mxu0
    %v254 = vpop.f32.mrf.mxu0
    %255 = vdwg.mxu0
    %v256 = vmul.f32 %v138, %v138
    %vm257 = vcmask 1041408
    %v258 = vsel %vm257, %v256, 0.0
    %259 = vadd.xlane.f32.xlu0 %v258
    %v260 = vpop.xlane.xlu0 %259
    %v261 = vadd.f32 %v260, 1e-12
    %v262 = vrsqrt.pop %v261
    %v263 = vmul.f32 %v138, %v262
    %v264 = vpack.c.bf16 %v263, %v263
    %v265 = vmul.f32 %v251, %v251
    %v266 = vsel %vm257, %v265, 0.0
    %267 = vadd.xlane.f32.xlu0 %v266
    %v268 = vpop.xlane.xlu0 %267
    %v269 = vadd.f32 %v268, 1e-12
    %v270 = vrsqrt.pop %v269
    %v271 = vmul.f32 %v251, %v270
    %v272 = vpack.c.bf16 %v271, %v271
    %273 = vmatprep.subr.bf16.mxu0 0
    %274 = vmatpush1.bf16.xpose.msra.mxu0 0
    %275 = vmatprep.subr.bf16.mxu0 0
    %276 = vmatpush1.bf16.xpose.msra.mxu0 0
    %277 = vmatprep.subr.bf16.mxu0 0
    %278 = vmatpush1.bf16.xpose.msra.mxu0 0
    %279 = vmatprep.subr.bf16.mxu0 0
    %280 = vmatpush1.bf16.xpose.msra.mxu0 0
    %281 = vmatprep.subr.bf16.mxu0 0
    %282 = vmatpush1.bf16.xpose.msra.mxu0 0
    %283 = vmatprep.subr.bf16.mxu0 0
    %284 = vmatpush1.bf16.xpose.msra.mxu0 0
    %285 = vmatprep.subr.bf16.mxu0 0
    %286 = vmatpush1.bf16.xpose.msra.mxu0 0
    %287 = vmatprep.subr.bf16.mxu0 0
    %288 = vmatpush1.bf16.xpose.msra.mxu0 %v272
    %289 = vmatprep.subr.bf16.mxu0 0
    %290 = vmatpush2.bf16.xpose.msra.mxu0 0
    %291 = vmatprep.subr.bf16.mxu0 0
    %292 = vmatpush2.bf16.xpose.msra.mxu0 0
    %293 = vmatprep.subr.bf16.mxu0 0
    %294 = vmatpush2.bf16.xpose.msra.mxu0 0
    %295 = vmatprep.subr.bf16.mxu0 0
    %296 = vmatpush2.bf16.xpose.msra.mxu0 0
    %297 = vmatprep.subr.bf16.mxu0 0
    %298 = vmatpush2.bf16.xpose.msra.mxu0 0
    %299 = vmatprep.subr.bf16.mxu0 0
    %300 = vmatpush2.bf16.xpose.msra.mxu0 0
    %301 = vmatprep.subr.bf16.mxu0 0
    %302 = vmatpush2.bf16.xpose.msra.mxu0 0
    %303 = vmatprep.subr.bf16.mxu0 0
    %304 = vmatpush2.bf16.xpose.msra.mxu0 0
    %305 = vmatprep.mubr.bf16.mxu0 0
    %306 = vmatmul.mubr.bf16.gmra.mxu0 %v264
    %v307 = vpop.f32.mrf.mxu0
    %v308 = vadd.f32 0.0, %v307
    %v309 = vpop.f32.mrf.mxu0
    %v310 = vpop.f32.mrf.mxu0
    %v311 = vpop.f32.mrf.mxu0
    %312 = vdwg.mxu0
    %v313 = vstv %s29
    %v314 = vmul.f32 %v308, %v313
    %315 = vmatprep.subr.bf16.mxu0 0
    %316 = vmatpush1.bf16.xpose.msra.mxu0 0
    %317 = vmatprep.subr.bf16.mxu0 0
    %318 = vmatpush1.bf16.xpose.msra.mxu0 0
    %319 = vmatprep.subr.bf16.mxu0 0
    %320 = vmatpush1.bf16.xpose.msra.mxu0 0
    %321 = vmatprep.subr.bf16.mxu0 0
    %322 = vmatpush1.bf16.xpose.msra.mxu0 0
    %323 = vmatprep.subr.bf16.mxu0 0
    %324 = vmatpush1.bf16.xpose.msra.mxu0 0
    %325 = vmatprep.subr.bf16.mxu0 0
    %326 = vmatpush1.bf16.xpose.msra.mxu0 0
    %327 = vmatprep.subr.bf16.mxu0 0
    %328 = vmatpush1.bf16.xpose.msra.mxu0 0
    %329 = vmatprep.subr.bf16.mxu0 0
    %330 = vmatpush1.bf16.xpose.msra.mxu0 %v264
    %331 = vmatprep.subr.bf16.mxu0 0
    %332 = vmatpush2.bf16.xpose.msra.mxu0 0
    %333 = vmatprep.subr.bf16.mxu0 0
    %334 = vmatpush2.bf16.xpose.msra.mxu0 0
    %335 = vmatprep.subr.bf16.mxu0 0
    %336 = vmatpush2.bf16.xpose.msra.mxu0 0
    %337 = vmatprep.subr.bf16.mxu0 0
    %338 = vmatpush2.bf16.xpose.msra.mxu0 0
    %339 = vmatprep.subr.bf16.mxu0 0
    %340 = vmatpush2.bf16.xpose.msra.mxu0 0
    %341 = vmatprep.subr.bf16.mxu0 0
    %342 = vmatpush2.bf16.xpose.msra.mxu0 0
    %343 = vmatprep.subr.bf16.mxu0 0
    %344 = vmatpush2.bf16.xpose.msra.mxu0 0
    %345 = vmatprep.subr.bf16.mxu0 0
    %346 = vmatpush2.bf16.xpose.msra.mxu0 0
    %347 = vmatprep.mubr.bf16.mxu0 0
    %348 = vmatmul.mubr.bf16.gmra.mxu0 %v272
    %v349 = vpop.f32.mrf.mxu0
    %v350 = vadd.f32 0.0, %v349
    %v351 = vpop.f32.mrf.mxu0
    %v352 = vpop.f32.mrf.mxu0
    %v353 = vpop.f32.mrf.mxu0
    %354 = vdwg.mxu0
    %v355 = vmul.f32 %v350, %v313
    %v356 = vlaneseq
    %v357 = vshrl.u32 %v356, 7
    %v358 = vlaneseq
    %v359 = vand.u32 %v358, 127
    %vm360 = vcmp.eq.s32.totalorder %v357, %v359
    %v361 = vsel %vm360, 1, 0
    %v362 = vcvt.s32.f32 %v361
    %vm363 = vcmask 9216
    %v364 = vsel %vm363, %v314, -inf
    %365 = vmax.xlane.f32.xlu0 %v364
    %v366 = vpop.xlane.xlu0 %365
    %v367 = vsub.f32 %v314, %v366
    %v368 = vmul.f32 %v367, 1.442695
    %v369 = vpow.pop %v368
    %v370 = vsel %vm363, %v369, 0.0
    %371 = vadd.xlane.f32.xlu0 %v370
    %v372 = vpop.xlane.xlu0 %371
    %v373 = vlog2.pop %v372
    %v374 = vmul.f32 %v373, 0.6931472
    %v375 = vsub.f32 %v367, %v374
    %v376 = vmul.f32 %v375, %v362
    %v377 = vsel %vm363, %v376, 0.0
    %378 = vadd.xlane.f32.xlu0 %v377
    %v379 = vpop.xlane.xlu0 %378
    %v380 = vsub.f32 0.0, %v379
    %v381 = vsel %vm363, %v355, -inf
    %382 = vmax.xlane.f32.xlu0 %v381
    %v383 = vpop.xlane.xlu0 %382
    %v384 = vsub.f32 %v355, %v383
    %v385 = vmul.f32 %v384, 1.442695
    %v386 = vpow.pop %v385
    %v387 = vsel %vm363, %v386, 0.0
    %388 = vadd.xlane.f32.xlu0 %v387
    %v389 = vpop.xlane.xlu0 %388
    %v390 = vlog2.pop %v389
    %v391 = vmul.f32 %v390, 0.6931472
    %v392 = vsub.f32 %v384, %v391
    %v393 = vmul.f32 %v392, %v362
    %v394 = vsel %vm363, %v393, 0.0
    %395 = vadd.xlane.f32.xlu0 %v394
    %v396 = vpop.xlane.xlu0 %395
    %v397 = vsub.f32 0.0, %v396
    %v398 = vsel %vm257, %v380, 0.0
    %v399 = vrot.slane %v398, 4
    %v400 = vadd.f32 %v398, %v399
    %v401 = vrot.slane %v400, 2
    %v402 = vadd.f32 %v400, %v401
    %v403 = vrot.slane %v402, 1
    %v404 = vadd.f32 %v402, %v403
    %v405 = vsel %vm257, %v397, 0.0
    %v406 = vrot.slane %v405, 4
    %v407 = vadd.f32 %v405, %v406
    %v408 = vrot.slane %v407, 2
    %v409 = vadd.f32 %v407, %v408
    %v410 = vrot.slane %v409, 1
    %v411 = vadd.f32 %v409, %v410
    %v412 = vadd.f32 %v404, %v411
    %v413 = vmul.f32 %v412, 0.5
    %v414 = vrcp.pop 2.0
    %v415 = vmul.f32 %v413, %v414
    %vm416 = vcmask 0
    %417 = vst.msk [vmem:[#allocation3] sm:$0x1] %vm416, %v415
    // Predicated region
    $region30: #{blip_forward.5} parent=1 // pred_check
      _
    $region31: #{blip_forward.5} parent=1 // pred_check_branch
      %419 = sbr.rel (0) target = $region33
    $region32: #{blip_forward.5} parent=1 // pred_region
      %s421 = ssub.s32 16, 16
      %422 = vsyncadd [#allocation4], %s421
      %s424 = sshll.u32 [#allocation3], 4
      %s425 = int_to_ptr.vmem [resolvable:$true] %s424
      %427 = dma.vmem_to_hbm [thread:$0]  %s425, 16, %s7, [#allocation4]
    $region33: #{blip_forward.5} parent=1 // pred_fallthru
      _
    // Predicated region
    $region34: #{blip_forward.5} parent=1 // pred_check
      _
    $region35: #{blip_forward.5} parent=1 // pred_check_branch
      %429 = sbr.rel (0) target = $region37
    $region36: #{blip_forward.5} parent=1 // pred_region
      %430 = dma.done [#allocation4], 16
    $region37: #{blip_forward.5} parent=1 // pred_fallthru
      _
    %431 = vsyncpa [#allocation4], 1

// kernel: blip_forward.4
$region0: #{blip_forward.4}
  #allocation0 [shape = 'u32[]', space=smem, size = 0x4, offset = 0x4, fixed_abs, tag = 'smem constant byte address 0x4 - core index']
  #allocation1 [shape = 'u32[144,128]{1,0:T(1,128)}', space=vmem, size = 0x12000, scoped, tag = 'internal scratch']
  #allocation2 [shape = 'f32[8,128]{1,0:T(8,128)}', space=vmem, size = 0x1000, scoped, tag = 'scratch operand']
  %s0 = inlined_call_operand.vmem [shape: f32[2,8,128], index: 0, kind: input, shape index: {}]
  %s1 = inlined_call_operand.vmem [shape: f32[2,1,8], index: 1, kind: input, shape index: {}]
  %s2 = inlined_call_operand.vmem [shape: f32[2,128], index: 2, kind: input, shape index: {}]
  %s3 = inlined_call_operand.vmem [shape: bf16[2,128,384], index: 3, kind: input, shape index: {}]
  %s4 = inlined_call_operand.vmem [shape: bf16[2,128,128], index: 4, kind: input, shape index: {}]
  %s5 = inlined_call_operand.vmem [shape: bf16[2,128,512], index: 5, kind: input, shape index: {}]
  %s6 = inlined_call_operand.vmem [shape: bf16[2,512,128], index: 6, kind: input, shape index: {}]
  %s7 = inlined_call_operand.vmem [shape: f32[2,16,128], index: 7, kind: input, shape index: {}]
  %s8 = inlined_call_operand.vmem [shape: f32[2,8,128], index: 8, kind: output, shape index: {}]
  %s9 = sld [smem:[#allocation0]]
  $region69: #{blip_forward.4} parent=0
    _
  %s11 = ssub.s32 1, %s9
  %s12 = scalar_select 0, %s11, %s9
  loop: start=0, step=1, limit=6
  $region2: #{blip_forward.4} parent=0 // loop_pre_header
    _
  $region3: #{blip_forward.4} parent=0 // loop_header
    %s14 = sphi 0, %s18
    %p15 = scmp.ge.s32.totalorder %s14, 6
    %s21 = sphi 0, %s33
    %s22 = sphi 0, %s29
    %s23 = sphi 0, %s21
    %s24 = sphi 0, %s22
    %s25 = sphi 0, %s23
    %s26 = sphi 0, %s24
    %s36 = sphi 0, %s38
    %s39 = sphi 0, %s36
    %s40 = sphi 0, %s39
    %s56 = sphi 0, %s40
    %s62 = sphi 0, %s64
    %s65 = sphi 0, %s62
    %s66 = sphi 0, %s65
    %s82 = sphi 0, %s66
    %s86 = sphi 0, %s86
    %s88 = sphi 0, %s86
    %s89 = sphi 0, %s88
    %s103 = sphi 0, %s89
    %s109 = sphi 0, %s111
    %s112 = sphi 0, %s109
    %s113 = sphi 0, %s112
    %s129 = sphi 0, %s113
    %s135 = sphi 0, %s137
    %s138 = sphi 0, %s135
    %s139 = sphi 0, %s138
    %s155 = sphi 0, %s139
    %s161 = sphi 0, %s163
    %s164 = sphi 0, %s161
    %s165 = sphi 0, %s164
    %s181 = sphi 0, %s165
    %s187 = sphi 0, %s189
    %s190 = sphi 0, %s187
    %s191 = sphi 0, %s190
    %s207 = sphi 0, %s191
    %s213 = sphi 0, %s215
    %s216 = sphi 0, %s213
    %s217 = sphi 0, %s216
    %s233 = sphi 0, %s217
    %s239 = sphi 0, %s241
    %s242 = sphi 0, %s239
    %s243 = sphi 0, %s242
    %s259 = sphi 0, %s243
  $region4: #{blip_forward.4} parent=0 // loop_header_branch
    %17 = sbr.rel (%p15) target = $region8
  $region5: #{blip_forward.4} parent=0 // loop_body
    %s19 = ssub.s32 %s14, 1
    %s20 = ssub.s32 %s14, 2
    %s27 = sadd.s32 1, %s22
    %p28 = scmp.ge.s32.totalorder %s27, 2
    %s29 = scalar_select %p28, 0, %s27
    %s30 = sadd.s32 1, %s21
    %s31 = scalar_select %p28, %s30, %s21
    %p32 = scmp.ge.s32.totalorder %s31, 2
    %s33 = scalar_select %p32, 0, %s31
    %s34 = ssub.s32 %s21, %s33
    %p35 = scmp.eq.s32.totalorder %s34, 0
    %s37 = sadd.s32 %s36, 1
    %s38 = scalar_select %p35, %s36, %s37
    %p41 = pneg %p35
    %p42 = scmp.eq.s32.totalorder %s14, 3
    %p43 = por %p41, %p42
    %p44 = scmp.ne.s32.totalorder %s36, %s39
    %p45 = scmp.eq.s32.totalorder %s14, 0
    %p46 = por %p44, %p45
    %p47 = scmp.ne.s32.totalorder %s36, %s39
    %p48 = scmp.eq.s32.totalorder %s19, 3
    %p49 = por %p47, %p48
    %p50 = scmp.ne.s32.totalorder %s39, %s40
    %p51 = scmp.eq.s32.totalorder %s19, 0
    %p52 = por %p50, %p51
    %p53 = scmp.ne.s32.totalorder %s39, %s40
    %p54 = scmp.eq.s32.totalorder %s20, 3
    %p55 = por %p53, %p54
    %p57 = scmp.ne.s32.totalorder %s40, %s56
    %p58 = scmp.eq.s32.totalorder %s20, 0
    %p59 = por %p57, %p58
    %s60 = ssub.s32 %s21, %s33
    %p61 = scmp.eq.s32.totalorder %s60, 0
    %s63 = sadd.s32 %s62, 1
    %s64 = scalar_select %p61, %s62, %s63
    %p67 = pneg %p61
    %p68 = scmp.eq.s32.totalorder %s14, 3
    %p69 = por %p67, %p68
    %p70 = scmp.ne.s32.totalorder %s62, %s65
    %p71 = scmp.eq.s32.totalorder %s14, 0
    %p72 = por %p70, %p71
    %p73 = scmp.ne.s32.totalorder %s62, %s65
    %p74 = scmp.eq.s32.totalorder %s19, 3
    %p75 = por %p73, %p74
    %p76 = scmp.ne.s32.totalorder %s65, %s66
    %p77 = scmp.eq.s32.totalorder %s19, 0
    %p78 = por %p76, %p77
    %p79 = scmp.ne.s32.totalorder %s65, %s66
    %p80 = scmp.eq.s32.totalorder %s20, 3
    %p81 = por %p79, %p80
    %p83 = scmp.ne.s32.totalorder %s66, %s82
    %p84 = scmp.eq.s32.totalorder %s20, 0
    %p85 = por %p83, %p84
    %s87 = sadd.s32 %s86, 1
    %p90 = scmp.eq.s32.totalorder %s14, 3
    %p91 = scmp.ne.s32.totalorder %s86, %s88
    %p92 = scmp.eq.s32.totalorder %s14, 0
    %p93 = por %p91, %p92
    %p94 = scmp.ne.s32.totalorder %s86, %s88
    %p95 = scmp.eq.s32.totalorder %s19, 3
    %p96 = por %p94, %p95
    %p97 = scmp.ne.s32.totalorder %s88, %s89
    %p98 = scmp.eq.s32.totalorder %s19, 0
    %p99 = por %p97, %p98
    %p100 = scmp.ne.s32.totalorder %s88, %s89
    %p101 = scmp.eq.s32.totalorder %s20, 3
    %p102 = por %p100, %p101
    %p104 = scmp.ne.s32.totalorder %s89, %s103
    %p105 = scmp.eq.s32.totalorder %s20, 0
    %p106 = por %p104, %p105
    %s107 = ssub.s32 %s22, %s29
    %p108 = scmp.eq.s32.totalorder %s107, 0
    %s110 = sadd.s32 %s109, 1
    %s111 = scalar_select %p108, %s109, %s110
    %p114 = pneg %p108
    %p115 = scmp.eq.s32.totalorder %s14, 3
    %p116 = por %p114, %p115
    %p117 = scmp.ne.s32.totalorder %s109, %s112
    %p118 = scmp.eq.s32.totalorder %s14, 0
    %p119 = por %p117, %p118
    %p120 = scmp.ne.s32.totalorder %s109, %s112
    %p121 = scmp.eq.s32.totalorder %s19, 3
    %p122 = por %p120, %p121
    %p123 = scmp.ne.s32.totalorder %s112, %s113
    %p124 = scmp.eq.s32.totalorder %s19, 0
    %p125 = por %p123, %p124
    %p126 = scmp.ne.s32.totalorder %s112, %s113
    %p127 = scmp.eq.s32.totalorder %s20, 3
    %p128 = por %p126, %p127
    %p130 = scmp.ne.s32.totalorder %s113, %s129
    %p131 = scmp.eq.s32.totalorder %s20, 0
    %p132 = por %p130, %p131
    %s133 = ssub.s32 %s22, %s29
    %p134 = scmp.eq.s32.totalorder %s133, 0
    %s136 = sadd.s32 %s135, 1
    %s137 = scalar_select %p134, %s135, %s136
    %p140 = pneg %p134
    %p141 = scmp.eq.s32.totalorder %s14, 3
    %p142 = por %p140, %p141
    %p143 = scmp.ne.s32.totalorder %s135, %s138
    %p144 = scmp.eq.s32.totalorder %s14, 0
    %p145 = por %p143, %p144
    %p146 = scmp.ne.s32.totalorder %s135, %s138
    %p147 = scmp.eq.s32.totalorder %s19, 3
    %p148 = por %p146, %p147
    %p149 = scmp.ne.s32.totalorder %s138, %s139
    %p150 = scmp.eq.s32.totalorder %s19, 0
    %p151 = por %p149, %p150
    %p152 = scmp.ne.s32.totalorder %s138, %s139
    %p153 = scmp.eq.s32.totalorder %s20, 3
    %p154 = por %p152, %p153
    %p156 = scmp.ne.s32.totalorder %s139, %s155
    %p157 = scmp.eq.s32.totalorder %s20, 0
    %p158 = por %p156, %p157
    %s159 = ssub.s32 %s22, %s29
    %p160 = scmp.eq.s32.totalorder %s159, 0
    %s162 = sadd.s32 %s161, 1
    %s163 = scalar_select %p160, %s161, %s162
    %p166 = pneg %p160
    %p167 = scmp.eq.s32.totalorder %s14, 3
    %p168 = por %p166, %p167
    %p169 = scmp.ne.s32.totalorder %s161, %s164
    %p170 = scmp.eq.s32.totalorder %s14, 0
    %p171 = por %p169, %p170
    %p172 = scmp.ne.s32.totalorder %s161, %s164
    %p173 = scmp.eq.s32.totalorder %s19, 3
    %p174 = por %p172, %p173
    %p175 = scmp.ne.s32.totalorder %s164, %s165
    %p176 = scmp.eq.s32.totalorder %s19, 0
    %p177 = por %p175, %p176
    %p178 = scmp.ne.s32.totalorder %s164, %s165
    %p179 = scmp.eq.s32.totalorder %s20, 3
    %p180 = por %p178, %p179
    %p182 = scmp.ne.s32.totalorder %s165, %s181
    %p183 = scmp.eq.s32.totalorder %s20, 0
    %p184 = por %p182, %p183
    %s185 = ssub.s32 %s22, %s29
    %p186 = scmp.eq.s32.totalorder %s185, 0
    %s188 = sadd.s32 %s187, 1
    %s189 = scalar_select %p186, %s187, %s188
    %p192 = pneg %p186
    %p193 = scmp.eq.s32.totalorder %s14, 3
    %p194 = por %p192, %p193
    %p195 = scmp.ne.s32.totalorder %s187, %s190
    %p196 = scmp.eq.s32.totalorder %s14, 0
    %p197 = por %p195, %p196
    %p198 = scmp.ne.s32.totalorder %s187, %s190
    %p199 = scmp.eq.s32.totalorder %s19, 3
    %p200 = por %p198, %p199
    %p201 = scmp.ne.s32.totalorder %s190, %s191
    %p202 = scmp.eq.s32.totalorder %s19, 0
    %p203 = por %p201, %p202
    %p204 = scmp.ne.s32.totalorder %s190, %s191
    %p205 = scmp.eq.s32.totalorder %s20, 3
    %p206 = por %p204, %p205
    %p208 = scmp.ne.s32.totalorder %s191, %s207
    %p209 = scmp.eq.s32.totalorder %s20, 0
    %p210 = por %p208, %p209
    %s211 = ssub.s32 %s22, %s29
    %p212 = scmp.eq.s32.totalorder %s211, 0
    %s214 = sadd.s32 %s213, 1
    %s215 = scalar_select %p212, %s213, %s214
    %p218 = pneg %p212
    %p219 = scmp.eq.s32.totalorder %s14, 3
    %p220 = por %p218, %p219
    %p221 = scmp.ne.s32.totalorder %s213, %s216
    %p222 = scmp.eq.s32.totalorder %s14, 0
    %p223 = por %p221, %p222
    %p224 = scmp.ne.s32.totalorder %s213, %s216
    %p225 = scmp.eq.s32.totalorder %s19, 3
    %p226 = por %p224, %p225
    %p227 = scmp.ne.s32.totalorder %s216, %s217
    %p228 = scmp.eq.s32.totalorder %s19, 0
    %p229 = por %p227, %p228
    %p230 = scmp.ne.s32.totalorder %s216, %s217
    %p231 = scmp.eq.s32.totalorder %s20, 3
    %p232 = por %p230, %p231
    %p234 = scmp.ne.s32.totalorder %s217, %s233
    %p235 = scmp.eq.s32.totalorder %s20, 0
    %p236 = por %p234, %p235
    %s237 = ssub.s32 %s21, %s33
    %p238 = scmp.eq.s32.totalorder %s237, 0
    %s240 = sadd.s32 %s239, 1
    %s241 = scalar_select %p238, %s239, %s240
    %p244 = pneg %p238
    %p245 = scmp.eq.s32.totalorder %s14, 3
    %p246 = por %p244, %p245
    %p247 = scmp.ne.s32.totalorder %s239, %s242
    %p248 = scmp.eq.s32.totalorder %s14, 0
    %p249 = por %p247, %p248
    %p250 = scmp.ne.s32.totalorder %s239, %s242
    %p251 = scmp.eq.s32.totalorder %s19, 3
    %p252 = por %p250, %p251
    %p253 = scmp.ne.s32.totalorder %s242, %s243
    %p254 = scmp.eq.s32.totalorder %s19, 0
    %p255 = por %p253, %p254
    %p256 = scmp.ne.s32.totalorder %s242, %s243
    %p257 = scmp.eq.s32.totalorder %s20, 3
    %p258 = por %p256, %p257
    %p260 = scmp.ne.s32.totalorder %s243, %s259
    %p261 = scmp.eq.s32.totalorder %s20, 0
    %p262 = por %p260, %p261
    %p263 = scmp.le.s32.totalorder 1, %s14
    %p264 = scmp.lt.s32.totalorder %s14, 5
    %p265 = pnand %p263, %p264
    %p266 = pneg %p265
    // Predicated region
    $region9: #{blip_forward.4} parent=5 // pred_check
      _
    $region10: #{blip_forward.4} parent=5 // pred_check_branch
      %268 = sbr.rel (%p265) target = $region12
    $region11: #{blip_forward.4} parent=5 // pred_region
      %s269 = ssub.s32 %s14, 1
      // Predicated region
      $region13: #{blip_forward.4} parent=11 // pred_check
        %p270 = pneg %p99
      $region14: #{blip_forward.4} parent=11 // pred_check_branch
        %272 = sbr.rel (%p270) target = $region16
      $region15: #{blip_forward.4} parent=11 // pred_region
        _
      $region16: #{blip_forward.4} parent=11 // pred_fallthru
        _
    $region12: #{blip_forward.4} parent=5 // pred_fallthru
      _
    %p273 = scmp.lt.s32.totalorder %s14, 4
    // Predicated region
    $region17: #{blip_forward.4} parent=5 // pred_check
      %p274 = pneg %p273
    $region18: #{blip_forward.4} parent=5 // pred_check_branch
      %276 = sbr.rel (%p274) target = $region20
    $region19: #{blip_forward.4} parent=5 // pred_region
      // Predicated region
      $region21: #{blip_forward.4} parent=19 // pred_check
        %p277 = pneg %p46
      $region22: #{blip_forward.4} parent=19 // pred_check_branch
        %279 = sbr.rel (%p277) target = $region24
      $region23: #{blip_forward.4} parent=19 // pred_region
        %p280 = scmp.lt.s32.totalorder %s21, 1
        %s281 = scalar_select %p280, %s21, 1
        %s282 = smul.addr %s281, 8
        %s283 = scalar_lea.vmem %s0, %s282
      $region24: #{blip_forward.4} parent=19 // pred_fallthru
        _
      // Predicated region
      $region25: #{blip_forward.4} parent=19 // pred_check
        %p284 = pneg %p72
      $region26: #{blip_forward.4} parent=19 // pred_check_branch
        %286 = sbr.rel (%p284) target = $region28
      $region27: #{blip_forward.4} parent=19 // pred_region
        %p287 = scmp.lt.s32.totalorder %s21, 1
        %s288 = scalar_select %p287, %s21, 1
        %s289 = scalar_lea.vmem %s1, %s288
      $region28: #{blip_forward.4} parent=19 // pred_fallthru
        _
      // Predicated region
      $region29: #{blip_forward.4} parent=19 // pred_check
        %p290 = pneg %p119
      $region30: #{blip_forward.4} parent=19 // pred_check_branch
        %292 = sbr.rel (%p290) target = $region32
      $region31: #{blip_forward.4} parent=19 // pred_region
        %p293 = scmp.lt.s32.totalorder %s22, 1
        %s294 = scalar_select %p293, %s22, 1
        %s295 = smul.addr %s294, 48
        %s296 = smul.addr %s295, 4
        %s297 = scalar_lea.vmem %s3, %s296
      $region32: #{blip_forward.4} parent=19 // pred_fallthru
        _
      // Predicated region
      $region33: #{blip_forward.4} parent=19 // pred_check
        %p298 = pneg %p145
      $region34: #{blip_forward.4} parent=19 // pred_check_branch
        %300 = sbr.rel (%p298) target = $region36
      $region35: #{blip_forward.4} parent=19 // pred_region
        %p301 = scmp.lt.s32.totalorder %s22, 1
        %s302 = scalar_select %p301, %s22, 1
        %s303 = smul.addr %s302, 16
        %s304 = smul.addr %s303, 4
        %s305 = scalar_lea.vmem %s4, %s304
      $region36: #{blip_forward.4} parent=19 // pred_fallthru
        _
      // Predicated region
      $region37: #{blip_forward.4} parent=19 // pred_check
        %p306 = pneg %p171
      $region38: #{blip_forward.4} parent=19 // pred_check_branch
        %308 = sbr.rel (%p306) target = $region40
      $region39: #{blip_forward.4} parent=19 // pred_region
        %p309 = scmp.lt.s32.totalorder %s22, 1
        %s310 = scalar_select %p309, %s22, 1
        %s311 = smul.addr %s310, 64
        %s312 = smul.addr %s311, 4
        %s313 = scalar_lea.vmem %s5, %s312
      $region40: #{blip_forward.4} parent=19 // pred_fallthru
        _
      // Predicated region
      $region41: #{blip_forward.4} parent=19 // pred_check
        %p314 = pneg %p197
      $region42: #{blip_forward.4} parent=19 // pred_check_branch
        %316 = sbr.rel (%p314) target = $region44
      $region43: #{blip_forward.4} parent=19 // pred_region
        %p317 = scmp.lt.s32.totalorder %s22, 1
        %s318 = scalar_select %p317, %s22, 1
        %s319 = smul.addr %s318, 64
        %s320 = smul.addr %s319, 4
        %s321 = scalar_lea.vmem %s6, %s320
      $region44: #{blip_forward.4} parent=19 // pred_fallthru
        _
      // Predicated region
      $region45: #{blip_forward.4} parent=19 // pred_check
        %p322 = pneg %p223
      $region46: #{blip_forward.4} parent=19 // pred_check_branch
        %324 = sbr.rel (%p322) target = $region48
      $region47: #{blip_forward.4} parent=19 // pred_region
        %p325 = scmp.lt.s32.totalorder %s22, 1
        %s326 = scalar_select %p325, %s22, 1
        %s327 = smul.addr %s326, 2
        %s328 = smul.addr %s327, 8
        %s329 = scalar_lea.vmem %s7, %s328
      $region48: #{blip_forward.4} parent=19 // pred_fallthru
        _
    $region20: #{blip_forward.4} parent=5 // pred_fallthru
      _
    %p330 = scmp.le.s32.totalorder 1, %s14
    %p331 = scmp.lt.s32.totalorder %s14, 5
    %p332 = pnand %p330, %p331
    %p333 = pneg %p332
    // Predicated region
    $region49: #{blip_forward.4} parent=5 // pred_check
      _
    $region50: #{blip_forward.4} parent=5 // pred_check_branch
      %335 = sbr.rel (%p332) target = $region52
    $region51: #{blip_forward.4} parent=5 // pred_region
      %s336 = ssub.s32 %s14, 1
      %p337 = scmp.lt.s32.totalorder %s23, 1
      %s338 = scalar_select %p337, %s23, 1
      %s339 = smul.addr %s338, 8
      %s340 = scalar_lea.vmem %s0, %s339
      %p341 = pneg %p52
      %p342 = pneg %p49
      %p343 = scmp.lt.s32.totalorder %s23, 1
      %s344 = scalar_select %p343, %s23, 1
      %s345 = scalar_lea.vmem %s1, %s344
      %p346 = pneg %p78
      %p347 = pneg %p75
      %p348 = pneg %p99
      %p349 = pneg %p96
      %p350 = scmp.lt.s32.totalorder %s24, 1
      %s351 = scalar_select %p350, %s24, 1
      %s352 = smul.addr %s351, 48
      %s353 = smul.addr %s352, 4
      %s354 = scalar_lea.vmem %s3, %s353
      %p355 = pneg %p125
      %p356 = pneg %p122
      %p357 = scmp.lt.s32.totalorder %s24, 1
      %s358 = scalar_select %p357, %s24, 1
      %s359 = smul.addr %s358, 16
      %s360 = smul.addr %s359, 4
      %s361 = scalar_lea.vmem %s4, %s360
      %p362 = pneg %p151
      %p363 = pneg %p148
      %p364 = scmp.lt.s32.totalorder %s24, 1
      %s365 = scalar_select %p364, %s24, 1
      %s366 = smul.addr %s365, 64
      %s367 = smul.addr %s366, 4
      %s368 = scalar_lea.vmem %s5, %s367
      %p369 = pneg %p177
      %p370 = pneg %p174
      %p371 = scmp.lt.s32.totalorder %s24, 1
      %s372 = scalar_select %p371, %s24, 1
      %s373 = smul.addr %s372, 64
      %s374 = smul.addr %s373, 4
      %s375 = scalar_lea.vmem %s6, %s374
      %p376 = pneg %p203
      %p377 = pneg %p200
      %p378 = scmp.lt.s32.totalorder %s24, 1
      %s379 = scalar_select %p378, %s24, 1
      %s380 = smul.addr %s379, 2
      %s381 = smul.addr %s380, 8
      %s382 = scalar_lea.vmem %s7, %s381
      %p383 = pneg %p229
      %p384 = pneg %p226
      %p385 = pneg %p255
      %p386 = pneg %p252
      %p387 = scmp.lt.s32.totalorder %s23, 1
      %s388 = scalar_select %p387, %s23, 1
      %s389 = smul.addr %s388, 8
      %s390 = scalar_lea.vmem %s8, %s389
      %p391 = scmp.lt.s32.totalorder %s23, 1
      %s392 = scalar_select %p391, %s23, 1
      %s393 = smul.addr %s392, 8
      %s394 = scalar_lea.vmem %s0, %s393
      %p395 = scmp.lt.s32.totalorder %s23, 1
      %s396 = scalar_select %p395, %s23, 1
      %s397 = scalar_lea.vmem %s1, %s396
      %p398 = scmp.lt.s32.totalorder %s24, 1
      %s399 = scalar_select %p398, %s24, 1
      %s400 = smul.addr %s399, 48
      %s401 = smul.addr %s400, 4
      %s402 = scalar_lea.vmem %s3, %s401
      %p403 = scmp.lt.s32.totalorder %s24, 1
      %s404 = scalar_select %p403, %s24, 1
      %s405 = smul.addr %s404, 16
      %s406 = smul.addr %s405, 4
      %s407 = scalar_lea.vmem %s4, %s406
      %p408 = scmp.lt.s32.totalorder %s24, 1
      %s409 = scalar_select %p408, %s24, 1
      %s410 = smul.addr %s409, 64
      %s411 = smul.addr %s410, 4
      %s412 = scalar_lea.vmem %s5, %s411
      %p413 = scmp.lt.s32.totalorder %s24, 1
      %s414 = scalar_select %p413, %s24, 1
      %s415 = smul.addr %s414, 64
      %s416 = smul.addr %s415, 4
      %s417 = scalar_lea.vmem %s6, %s416
      %p418 = scmp.lt.s32.totalorder %s24, 1
      %s419 = scalar_select %p418, %s24, 1
      %s420 = smul.addr %s419, 2
      %s421 = smul.addr %s420, 8
      %s422 = scalar_lea.vmem %s7, %s421
      %p423 = scmp.lt.s32.totalorder %s23, 1
      %s424 = scalar_select %p423, %s23, 1
      %s425 = smul.addr %s424, 8
      %s426 = scalar_lea.vmem %s8, %s425
      %p428 = scmp.eq.s32.totalorder %s24, 0
      // Predicated region
      $region53: #{blip_forward.4} parent=51 // pred_check
        %p429 = pneg %p428
      $region54: #{blip_forward.4} parent=51 // pred_check_branch
        %431 = sbr.rel (%p429) target = $region56
      $region55: #{blip_forward.4} parent=51 // pred_region
        %v432 = vld [vmem:[%s394] sm:$0xff]
        %v433 = vld [vmem:[%s2] sm:$0x1]
        %v434 = vld [vmem:[%s2 + $0x1] sm:$0x1]
        %435 = vadd.xlane.f32.xlu0 %v432
        %v436 = vpop.xlane.xlu0 %435
        %v437 = vrcp.pop 128.0
        %v438 = vmul.f32 %v436, %v437
        %v439 = vsub.f32 %v432, %v438
        %v440 = vmul.f32 %v439, %v439
        %441 = vadd.xlane.f32.xlu0 %v440
        %v442 = vpop.xlane.xlu0 %441
        %v443 = vmul.f32 %v442, %v437
        %v444 = vadd.f32 %v443, 1e-12
        %v445 = vrsqrt.pop %v444
        %v446 = vmul.f32 %v439, %v445
        %v447 = vlaneseq
        %v448 = vshrl.u32 %v447, 7
        %v449 = vsub.s32 0, %v448
        %v450 = vrot.slane %v433, %v449
        %v451 = vmul.f32 %v446, %v450
        %v452 = vlaneseq
        %v453 = vshrl.u32 %v452, 7
        %v454 = vsub.s32 0, %v453
        %v455 = vrot.slane %v434, %v454
        %v456 = vadd.f32 %v451, %v455
        %457 = vst [vmem:[%s426] sm:$0xff] %v456
      $region56: #{blip_forward.4} parent=51 // pred_fallthru
        _
      %v458 = vld [vmem:[%s426] sm:$0xff]
      %v459 = vld [vmem:[%s397] sm:$0x1]
      %v460 = vsub.f32 %v459, 1.0
      %v461 = vmul.f32 %v460, 1e+09
      %v462 = vld [vmem:[%s422] sm:$0xff]
      %v463 = vld [vmem:[%s422 + $0x8] sm:$0xff]
      %v465 = vrot.slane %v462, 1
      %v468 = vrot.slane %v463, 2
      %v470 = vrot.slane %v463, 3
      %v472 = vld [vmem:[%s402] sm:$0xff]
      %v473 = vld [vmem:[%s402 + $0x8] sm:$0xf]
      %v474 = vld [vmem:[%s402 + $0xc] sm:$0xff]
      %v475 = vld [vmem:[%s402 + $0x14] sm:$0xf]
      %v476 = vld [vmem:[%s402 + $0x18] sm:$0xff]
      %v477 = vld [vmem:[%s402 + $0x20] sm:$0xf]
      %v478 = vld [vmem:[%s402 + $0x24] sm:$0xff]
      %v479 = vld [vmem:[%s402 + $0x2c] sm:$0xf]
      %v480 = vld [vmem:[%s402 + $0x30] sm:$0xff]
      %v481 = vld [vmem:[%s402 + $0x38] sm:$0xf]
      %v482 = vld [vmem:[%s402 + $0x3c] sm:$0xff]
      %v483 = vld [vmem:[%s402 + $0x44] sm:$0xf]
      %v484 = vld [vmem:[%s402 + $0x48] sm:$0xff]
      %v485 = vld [vmem:[%s402 + $0x50] sm:$0xf]
      %v486 = vld [vmem:[%s402 + $0x54] sm:$0xff]
      %v487 = vld [vmem:[%s402 + $0x5c] sm:$0xf]
      %v488 = vld [vmem:[%s402 + $0x60] sm:$0xff]
      %v489 = vld [vmem:[%s402 + $0x68] sm:$0xf]
      %v490 = vld [vmem:[%s402 + $0x6c] sm:$0xff]
      %v491 = vld [vmem:[%s402 + $0x74] sm:$0xf]
      %v492 = vld [vmem:[%s402 + $0x78] sm:$0xff]
      %v493 = vld [vmem:[%s402 + $0x80] sm:$0xf]
      %v494 = vld [vmem:[%s402 + $0x84] sm:$0xff]
      %v495 = vld [vmem:[%s402 + $0x8c] sm:$0xf]
      %v496 = vld [vmem:[%s402 + $0x90] sm:$0xff]
      %v497 = vld [vmem:[%s402 + $0x98] sm:$0xf]
      %v498 = vld [vmem:[%s402 + $0x9c] sm:$0xff]
      %v499 = vld [vmem:[%s402 + $0xa4] sm:$0xf]
      %v500 = vld [vmem:[%s402 + $0xa8] sm:$0xff]
      %v501 = vld [vmem:[%s402 + $0xb0] sm:$0xf]
      %v502 = vld [vmem:[%s402 + $0xb4] sm:$0xff]
      %v503 = vld [vmem:[%s402 + $0xbc] sm:$0xf]
      %v504 = vld [vmem:[%s407] sm:$0xf]
      %v505 = vld [vmem:[%s407 + $0x4] sm:$0xf]
      %v506 = vld [vmem:[%s407 + $0x8] sm:$0xf]
      %v507 = vld [vmem:[%s407 + $0xc] sm:$0xf]
      %v508 = vld [vmem:[%s407 + $0x10] sm:$0xf]
      %v509 = vld [vmem:[%s407 + $0x14] sm:$0xf]
      %v510 = vld [vmem:[%s407 + $0x18] sm:$0xf]
      %v511 = vld [vmem:[%s407 + $0x1c] sm:$0xf]
      %v512 = vld [vmem:[%s407 + $0x20] sm:$0xf]
      %v513 = vld [vmem:[%s407 + $0x24] sm:$0xf]
      %v514 = vld [vmem:[%s407 + $0x28] sm:$0xf]
      %v515 = vld [vmem:[%s407 + $0x2c] sm:$0xf]
      %v516 = vld [vmem:[%s407 + $0x30] sm:$0xf]
      %v517 = vld [vmem:[%s407 + $0x34] sm:$0xf]
      %v518 = vld [vmem:[%s407 + $0x38] sm:$0xf]
      %v519 = vld [vmem:[%s407 + $0x3c] sm:$0xf]
      %v520 = vpack.c.bf16 %v458, %v458
      %v553 = vunpack.c.l.b16 %v472
      %v554 = vunpack.c.h.b16 %v472
      %v555 = vunpack.c.l.b16 %v473
      %v556 = vunpack.c.l.b16 %v474
      %v557 = vunpack.c.h.b16 %v474
      %v558 = vunpack.c.l.b16 %v475
      %v559 = vunpack.c.l.b16 %v476
      %v560 = vunpack.c.h.b16 %v476
      %v561 = vunpack.c.l.b16 %v477
      %v562 = vunpack.c.l.b16 %v478
      %v563 = vunpack.c.h.b16 %v478
      %v564 = vunpack.c.l.b16 %v479
      %v565 = vunpack.c.l.b16 %v480
      %v566 = vunpack.c.h.b16 %v480
      %v567 = vunpack.c.l.b16 %v481
      %v568 = vunpack.c.l.b16 %v482
      %v569 = vunpack.c.h.b16 %v482
      %v570 = vunpack.c.l.b16 %v483
      %v571 = vunpack.c.l.b16 %v484
      %v572 = vunpack.c.h.b16 %v484
      %v573 = vunpack.c.l.b16 %v485
      %v574 = vunpack.c.l.b16 %v486
      %v575 = vunpack.c.h.b16 %v486
      %v576 = vunpack.c.l.b16 %v487
      %v577 = vunpack.c.l.b16 %v488
      %v578 = vunpack.c.h.b16 %v488
      %v579 = vunpack.c.l.b16 %v489
      %v580 = vunpack.c.l.b16 %v490
      %v581 = vunpack.c.h.b16 %v490
      %v582 = vunpack.c.l.b16 %v491
      %v583 = vunpack.c.l.b16 %v492
      %v584 = vunpack.c.h.b16 %v492
      %v585 = vunpack.c.l.b16 %v493
      %v586 = vunpack.c.l.b16 %v494
      %v587 = vunpack.c.h.b16 %v494
      %v588 = vunpack.c.l.b16 %v495
      %v589 = vunpack.c.l.b16 %v496
      %v590 = vunpack.c.h.b16 %v496
      %v591 = vunpack.c.l.b16 %v497
      %v592 = vunpack.c.l.b16 %v498
      %v593 = vunpack.c.h.b16 %v498
      %v594 = vunpack.c.l.b16 %v499
      %v595 = vunpack.c.l.b16 %v500
      %v596 = vunpack.c.h.b16 %v500
      %v597 = vunpack.c.l.b16 %v501
      %v598 = vunpack.c.l.b16 %v502
      %v599 = vunpack.c.h.b16 %v502
      %v600 = vunpack.c.l.b16 %v503
      %v601 = vpack.c.b16 %v556, %v553
      %v602 = vpack.c.b16 %v557, %v554
      %v603 = vpack.c.b16 %v558, %v555
      %v604 = vpack.c.b16 %v562, %v559
      %v605 = vpack.c.b16 %v563, %v560
      %v606 = vpack.c.b16 %v564, %v561
      %v607 = vpack.c.b16 %v568, %v565
      %v608 = vpack.c.b16 %v569, %v566
      %v609 = vpack.c.b16 %v570, %v567
      %v610 = vpack.c.b16 %v574, %v571
      %v611 = vpack.c.b16 %v575, %v572
      %v612 = vpack.c.b16 %v576, %v573
      %v613 = vpack.c.b16 %v580, %v577
      %v614 = vpack.c.b16 %v581, %v578
      %v615 = vpack.c.b16 %v582, %v579
      %v616 = vpack.c.b16 %v586, %v583
      %v617 = vpack.c.b16 %v587, %v584
      %v618 = vpack.c.b16 %v588, %v585
      %v619 = vpack.c.b16 %v592, %v589
      %v620 = vpack.c.b16 %v593, %v590
      %v621 = vpack.c.b16 %v594, %v591
      %v622 = vpack.c.b16 %v598, %v595
      %v623 = vpack.c.b16 %v599, %v596
      %v624 = vpack.c.b16 %v600, %v597
      %649 = vmatprep.subr.bf16.mxu0 %v623
      %650 = vmatpush1.bf16.msra.mxu0 %v622
      %651 = vmatprep.subr.bf16.mxu0 %v620
      %652 = vmatpush1.bf16.msra.mxu0 %v619
      %653 = vmatprep.subr.bf16.mxu0 %v617
      %654 = vmatpush1.bf16.msra.mxu0 %v616
      %655 = vmatprep.subr.bf16.mxu0 %v614
      %656 = vmatpush1.bf16.msra.mxu0 %v613
      %657 = vmatprep.subr.bf16.mxu0 %v611
      %658 = vmatpush1.bf16.msra.mxu0 %v610
      %659 = vmatprep.subr.bf16.mxu0 %v608
      %660 = vmatpush1.bf16.msra.mxu0 %v607
      %661 = vmatprep.subr.bf16.mxu0 %v605
      %662 = vmatpush1.bf16.msra.mxu0 %v604
      %663 = vmatprep.subr.bf16.mxu0 %v602
      %664 = vmatpush1.bf16.msra.mxu0 %v601
      %665 = vmatprep.subr.bf16.mxu0 0
      %666 = vmatpush2.bf16.msra.mxu0 0
      %667 = vmatprep.subr.bf16.mxu0 0
      %668 = vmatpush2.bf16.msra.mxu0 0
      %669 = vmatprep.subr.bf16.mxu0 0
      %670 = vmatpush2.bf16.msra.mxu0 0
      %671 = vmatprep.subr.bf16.mxu0 0
      %672 = vmatpush2.bf16.msra.mxu0 0
      %673 = vmatprep.subr.bf16.mxu0 0
      %674 = vmatpush2.bf16.msra.mxu0 0
      %675 = vmatprep.subr.bf16.mxu0 0
      %676 = vmatpush2.bf16.msra.mxu0 0
      %677 = vmatprep.subr.bf16.mxu0 0
      %678 = vmatpush2.bf16.msra.mxu0 0
      %679 = vmatprep.subr.bf16.mxu0 0
      %680 = vmatpush2.bf16.msra.mxu0 0
      %681 = vmatprep.mubr.bf16.mxu0 0
      %682 = vmatmul.mubr.bf16.gmra.mxu0 %v520
      %v683 = vpop.f32.mrf.mxu0
      %v684 = vadd.f32 0.0, %v683
      %v685 = vpop.f32.mrf.mxu0
      %v686 = vadd.f32 0.0, %v685
      %v687 = vpop.f32.mrf.mxu0
      %v688 = vpop.f32.mrf.mxu0
      %689 = vdwg.mxu0
      %690 = vmatprep.subr.bf16.mxu0 0
      %691 = vmatpush1.bf16.msra.mxu0 %v624
      %692 = vmatprep.subr.bf16.mxu0 0
      %693 = vmatpush1.bf16.msra.mxu0 %v621
      %694 = vmatprep.subr.bf16.mxu0 0
      %695 = vmatpush1.bf16.msra.mxu0 %v618
      %696 = vmatprep.subr.bf16.mxu0 0
      %697 = vmatpush1.bf16.msra.mxu0 %v615
      %698 = vmatprep.subr.bf16.mxu0 0
      %699 = vmatpush1.bf16.msra.mxu0 %v612
      %700 = vmatprep.subr.bf16.mxu0 0
      %701 = vmatpush1.bf16.msra.mxu0 %v609
      %702 = vmatprep.subr.bf16.mxu0 0
      %703 = vmatpush1.bf16.msra.mxu0 %v606
      %704 = vmatprep.subr.bf16.mxu0 0
      %705 = vmatpush1.bf16.msra.mxu0 %v603
      %706 = vmatprep.subr.bf16.mxu0 0
      %707 = vmatpush2.bf16.msra.mxu0 0
      %708 = vmatprep.subr.bf16.mxu0 0
      %709 = vmatpush2.bf16.msra.mxu0 0
      %710 = vmatprep.subr.bf16.mxu0 0
      %711 = vmatpush2.bf16.msra.mxu0 0
      %712 = vmatprep.subr.bf16.mxu0 0
      %713 = vmatpush2.bf16.msra.mxu0 0
      %714 = vmatprep.subr.bf16.mxu0 0
      %715 = vmatpush2.bf16.msra.mxu0 0
      %716 = vmatprep.subr.bf16.mxu0 0
      %717 = vmatpush2.bf16.msra.mxu0 0
      %718 = vmatprep.subr.bf16.mxu0 0
      %719 = vmatpush2.bf16.msra.mxu0 0
      %720 = vmatprep.subr.bf16.mxu0 0
      %721 = vmatpush2.bf16.msra.mxu0 0
      %722 = vmatprep.mubr.bf16.mxu0 0
      %723 = vmatmul.mubr.bf16.gmra.mxu0 %v520
      %v724 = vpop.f32.mrf.mxu0
      %v725 = vadd.f32 0.0, %v724
      %v726 = vpop.f32.mrf.mxu0
      %v727 = vpop.f32.mrf.mxu0
      %v728 = vpop.f32.mrf.mxu0
      %729 = vdwg.mxu0
      %v730 = vlaneseq
      %v731 = vshrl.u32 %v730, 7
      %v732 = vsub.s32 0, %v731
      %v733 = vrot.slane %v462, %v732
      %v734 = vadd.f32 %v684, %v733
      %v735 = vmul.f32 %v734, 0.17677669
      %v736 = vpack.c.bf16 %v735, %v735
      %v737 = vlaneseq
      %v738 = vshrl.u32 %v737, 7
      %v739 = vsub.s32 1, %v738
      %v740 = vrot.slane %v462, %v739
      %v741 = vadd.f32 %v686, %v740
      %v742 = vpack.c.bf16 %v741, %v741
      %v743 = vlaneseq
      %v744 = vshrl.u32 %v743, 7
      %v745 = vsub.s32 2, %v744
      %v746 = vrot.slane %v462, %v745
      %v747 = vadd.f32 %v725, %v746
      %v748 = vpack.c.bf16 %v747, %v747
      %v750 = vlaneseq
      %v751 = vshrl.u32 %v750, 7
      %v752 = vsub.s32 0, %v751
      %v753 = vrot.slane %v461, %v752
      %vm755 = vcmask 261120
      %v757 = vsel %vm755, %v736, 0
      %v760 = vsel %vm755, %v742, 0
      %762 = vmatprep.subr.bf16.mxu0 0
      %763 = vmatpush1.bf16.xpose.msra.mxu0 0
      %764 = vmatprep.subr.bf16.mxu0 0
      %765 = vmatpush1.bf16.xpose.msra.mxu0 0
      %766 = vmatprep.subr.bf16.mxu0 0
      %767 = vmatpush1.bf16.xpose.msra.mxu0 0
      %768 = vmatprep.subr.bf16.mxu0 0
      %769 = vmatpush1.bf16.xpose.msra.mxu0 0
      %770 = vmatprep.subr.bf16.mxu0 0
      %771 = vmatpush1.bf16.xpose.msra.mxu0 0
      %772 = vmatprep.subr.bf16.mxu0 0
      %773 = vmatpush1.bf16.xpose.msra.mxu0 0
      %774 = vmatprep.subr.bf16.mxu0 0
      %775 = vmatpush1.bf16.xpose.msra.mxu0 0
      %776 = vmatprep.subr.bf16.mxu0 0
      %777 = vmatpush1.bf16.xpose.msra.mxu0 %v760
      %778 = vmatprep.subr.bf16.mxu0 0
      %779 = vmatpush2.bf16.xpose.msra.mxu0 0
      %780 = vmatprep.subr.bf16.mxu0 0
      %781 = vmatpush2.bf16.xpose.msra.mxu0 0
      %782 = vmatprep.subr.bf16.mxu0 0
      %783 = vmatpush2.bf16.xpose.msra.mxu0 0
      %784 = vmatprep.subr.bf16.mxu0 0
      %785 = vmatpush2.bf16.xpose.msra.mxu0 0
      %786 = vmatprep.subr.bf16.mxu0 0
      %787 = vmatpush2.bf16.xpose.msra.mxu0 0
      %788 = vmatprep.subr.bf16.mxu0 0
      %789 = vmatpush2.bf16.xpose.msra.mxu0 0
      %790 = vmatprep.subr.bf16.mxu0 0
      %791 = vmatpush2.bf16.xpose.msra.mxu0 0
      %792 = vmatprep.subr.bf16.mxu0 0
      %793 = vmatpush2.bf16.xpose.msra.mxu0 0
      %794 = vmatprep.mubr.bf16.mxu0 0
      %795 = vmatmul.mubr.bf16.gmra.mxu0 %v757
      %v796 = vpop.f32.mrf.mxu0
      %v797 = vadd.f32 %v753, %v796
      %v798 = vpop.f32.mrf.mxu0
      %v799 = vpop.f32.mrf.mxu0
      %v800 = vpop.f32.mrf.mxu0
      %801 = vdwg.mxu0
      %vm802 = vcmask 64512
      %v803 = vsel %vm802, %v797, -inf
      %804 = vmax.xlane.f32.xlu0 %v803
      %v805 = vpop.xlane.xlu0 %804
      %v806 = vsub.f32 %v797, %v805
      %v807 = vmul.f32 %v806, 1.442695
      %v808 = vpow.pop %v807
      %v809 = vsel %vm802, %v808, 0.0
      %810 = vadd.xlane.f32.xlu0 %v809
      %v811 = vpop.xlane.xlu0 %810
      %v812 = vrcp.pop %v811
      %v813 = vmul.f32 %v808, %v812
      %v814 = vpack.c.bf16 %v813, %v813
      %v816 = vsel %vm802, %v814, 0
      %vm818 = vcmask 1043456
      %v820 = vsel %vm818, %v748, 0
      %822 = vmatprep.subr.bf16.mxu0 0
      %823 = vmatpush1.bf16.msra.mxu0 0
      %824 = vmatprep.subr.bf16.mxu0 0
      %825 = vmatpush1.bf16.msra.mxu0 0
      %826 = vmatprep.subr.bf16.mxu0 0
      %827 = vmatpush1.bf16.msra.mxu0 0
      %828 = vmatprep.subr.bf16.mxu0 0
      %829 = vmatpush1.bf16.msra.mxu0 0
      %830 = vmatprep.subr.bf16.mxu0 0
      %831 = vmatpush1.bf16.msra.mxu0 0
      %832 = vmatprep.subr.bf16.mxu0 0
      %833 = vmatpush1.bf16.msra.mxu0 0
      %834 = vmatprep.subr.bf16.mxu0 0
      %835 = vmatpush1.bf16.msra.mxu0 0
      %836 = vmatprep.subr.bf16.mxu0 0
      %837 = vmatpush1.bf16.msra.mxu0 %v820
      %838 = vmatprep.subr.bf16.mxu0 0
      %839 = vmatpush2.bf16.msra.mxu0 0
      %840 = vmatprep.subr.bf16.mxu0 0
      %841 = vmatpush2.bf16.msra.mxu0 0
      %842 = vmatprep.subr.bf16.mxu0 0
      %843 = vmatpush2.bf16.msra.mxu0 0
      %844 = vmatprep.subr.bf16.mxu0 0
      %845 = vmatpush2.bf16.msra.mxu0 0
      %846 = vmatprep.subr.bf16.mxu0 0
      %847 = vmatpush2.bf16.msra.mxu0 0
      %848 = vmatprep.subr.bf16.mxu0 0
      %849 = vmatpush2.bf16.msra.mxu0 0
      %850 = vmatprep.subr.bf16.mxu0 0
      %851 = vmatpush2.bf16.msra.mxu0 0
      %852 = vmatprep.subr.bf16.mxu0 0
      %853 = vmatpush2.bf16.msra.mxu0 0
      %854 = vmatprep.mubr.bf16.mxu0 0
      %855 = vmatmul.mubr.bf16.gmra.mxu0 %v816
      %v856 = vpop.f32.mrf.mxu0
      %v857 = vadd.f32 0.0, %v856
      %v858 = vpop.f32.mrf.mxu0
      %v859 = vpop.f32.mrf.mxu0
      %v860 = vpop.f32.mrf.mxu0
      %861 = vdwg.mxu0
      %862 = vst.msk [vmem:[#allocation2] sm:$0xff] %vm755, %v857
      %864 = vrot.lane.b32.xlu0 %v736, 96
      %v865 = vpop.permute.xlu0 %864
      %867 = vrot.lane.b32.xlu0 %v742, 96
      %v868 = vpop.permute.xlu0 %867
      %v870 = vsel %vm755, %v865, 0
      %v873 = vsel %vm755, %v868, 0
      %875 = vmatprep.subr.bf16.mxu0 0
      %876 = vmatpush1.bf16.xpose.msra.mxu0 0
      %877 = vmatprep.subr.bf16.mxu0 0
      %878 = vmatpush1.bf16.xpose.msra.mxu0 0
      %879 = vmatprep.subr.bf16.mxu0 0
      %880 = vmatpush1.bf16.xpose.msra.mxu0 0
      %881 = vmatprep.subr.bf16.mxu0 0
      %882 = vmatpush1.bf16.xpose.msra.mxu0 0
      %883 = vmatprep.subr.bf16.mxu0 0
      %884 = vmatpush1.bf16.xpose.msra.mxu0 0
      %885 = vmatprep.subr.bf16.mxu0 0
      %886 = vmatpush1.bf16.xpose.msra.mxu0 0
      %887 = vmatprep.subr.bf16.mxu0 0
      %888 = vmatpush1.bf16.xpose.msra.mxu0 0
      %889 = vmatprep.subr.bf16.mxu0 0
      %890 = vmatpush1.bf16.xpose.msra.mxu0 %v873
      %891 = vmatprep.subr.bf16.mxu0 0
      %892 = vmatpush2.bf16.xpose.msra.mxu0 0
      %893 = vmatprep.subr.bf16.mxu0 0
      %894 = vmatpush2.bf16.xpose.msra.mxu0 0
      %895 = vmatprep.subr.bf16.mxu0 0
      %896 = vmatpush2.bf16.xpose.msra.mxu0 0
      %897 = vmatprep.subr.bf16.mxu0 0
      %898 = vmatpush2.bf16.xpose.msra.mxu0 0
      %899 = vmatprep.subr.bf16.mxu0 0
      %900 = vmatpush2.bf16.xpose.msra.mxu0 0
      %901 = vmatprep.subr.bf16.mxu0 0
      %902 = vmatpush2.bf16.xpose.msra.mxu0 0
      %903 = vmatprep.subr.bf16.mxu0 0
      %904 = vmatpush2.bf16.xpose.msra.mxu0 0
      %905 = vmatprep.subr.bf16.mxu0 0
      %906 = vmatpush2.bf16.xpose.msra.mxu0 0
      %907 = vmatprep.mubr.bf16.mxu0 0
      %908 = vmatmul.mubr.bf16.gmra.mxu0 %v870
      %v909 = vpop.f32.mrf.mxu0
      %v910 = vadd.f32 %v753, %v909
      %v911 = vpop.f32.mrf.mxu0
      %v912 = vpop.f32.mrf.mxu0
      %v913 = vpop.f32.mrf.mxu0
      %914 = vdwg.mxu0
      %v915 = vsel %vm802, %v910, -inf
      %916 = vmax.xlane.f32.xlu0 %v915
      %v917 = vpop.xlane.xlu0 %916
      %v918 = vsub.f32 %v910, %v917
      %v919 = vmul.f32 %v918, 1.442695
      %v920 = vpow.pop %v919
      %v921 = vsel %vm802, %v920, 0.0
      %922 = vadd.xlane.f32.xlu0 %v921
      %v923 = vpop.xlane.xlu0 %922
      %v924 = vrcp.pop %v923
      %v925 = vmul.f32 %v920, %v924
      %v926 = vpack.c.bf16 %v925, %v925
      %928 = vrot.lane.b32.xlu0 %v748, 96
      %v929 = vpop.permute.xlu0 %928
      %v931 = vsel %vm802, %v926, 0
      %v934 = vsel %vm818, %v929, 0
      %936 = vmatprep.subr.bf16.mxu0 0
      %937 = vmatpush1.bf16.msra.mxu0 0
      %938 = vmatprep.subr.bf16.mxu0 0
      %939 = vmatpush1.bf16.msra.mxu0 0
      %940 = vmatprep.subr.bf16.mxu0 0
      %941 = vmatpush1.bf16.msra.mxu0 0
      %942 = vmatprep.subr.bf16.mxu0 0
      %943 = vmatpush1.bf16.msra.mxu0 0
      %944 = vmatprep.subr.bf16.mxu0 0
      %945 = vmatpush1.bf16.msra.mxu0 0
      %946 = vmatprep.subr.bf16.mxu0 0
      %947 = vmatpush1.bf16.msra.mxu0 0
      %948 = vmatprep.subr.bf16.mxu0 0
      %949 = vmatpush1.bf16.msra.mxu0 0
      %950 = vmatprep.subr.bf16.mxu0 0
      %951 = vmatpush1.bf16.msra.mxu0 %v934
      %952 = vmatprep.subr.bf16.mxu0 0
      %953 = vmatpush2.bf16.msra.mxu0 0
      %954 = vmatprep.subr.bf16.mxu0 0
      %955 = vmatpush2.bf16.msra.mxu0 0
      %956 = vmatprep.subr.bf16.mxu0 0
      %957 = vmatpush2.bf16.msra.mxu0 0
      %958 = vmatprep.subr.bf16.mxu0 0
      %959 = vmatpush2.bf16.msra.mxu0 0
      %960 = vmatprep.subr.bf16.mxu0 0
      %961 = vmatpush2.bf16.msra.mxu0 0
      %962 = vmatprep.subr.bf16.mxu0 0
      %963 = vmatpush2.bf16.msra.mxu0 0
      %964 = vmatprep.subr.bf16.mxu0 0
      %965 = vmatpush2.bf16.msra.mxu0 0
      %966 = vmatprep.subr.bf16.mxu0 0
      %967 = vmatpush2.bf16.msra.mxu0 0
      %968 = vmatprep.mubr.bf16.mxu0 0
      %969 = vmatmul.mubr.bf16.gmra.mxu0 %v931
      %v970 = vpop.f32.mrf.mxu0
      %v971 = vadd.f32 0.0, %v970
      %v972 = vpop.f32.mrf.mxu0
      %v973 = vpop.f32.mrf.mxu0
      %v974 = vpop.f32.mrf.mxu0
      %975 = vdwg.mxu0
      %977 = vrot.lane.b32.xlu0 %v971, 32
      %v978 = vpop.permute.xlu0 %977
      %vm980 = vcmask 523520
      %981 = vst.msk [vmem:[#allocation2] sm:$0xff] %vm980, %v978
      %982 = vrot.lane.b32.xlu0 %v736, 64
      %v983 = vpop.permute.xlu0 %982
      %984 = vrot.lane.b32.xlu0 %v742, 64
      %v985 = vpop.permute.xlu0 %984
      %v987 = vsel %vm755, %v983, 0
      %v990 = vsel %vm755, %v985, 0
      %992 = vmatprep.subr.bf16.mxu0 0
      %993 = vmatpush1.bf16.xpose.msra.mxu0 0
      %994 = vmatprep.subr.bf16.mxu0 0
      %995 = vmatpush1.bf16.xpose.msra.mxu0 0
      %996 = vmatprep.subr.bf16.mxu0 0
      %997 = vmatpush1.bf16.xpose.msra.mxu0 0
      %998 = vmatprep.subr.bf16.mxu0 0
      %999 = vmatpush1.bf16.xpose.msra.mxu0 0
      %1000 = vmatprep.subr.bf16.mxu0 0
      %1001 = vmatpush1.bf16.xpose.msra.mxu0 0
      %1002 = vmatprep.subr.bf16.mxu0 0
      %1003 = vmatpush1.bf16.xpose.msra.mxu0 0
      %1004 = vmatprep.subr.bf16.mxu0 0
      %1005 = vmatpush1.bf16.xpose.msra.mxu0 0
      %1006 = vmatprep.subr.bf16.mxu0 0
      %1007 = vmatpush1.bf16.xpose.msra.mxu0 %v990
      %1008 = vmatprep.subr.bf16.mxu0 0
      %1009 = vmatpush2.bf16.xpose.msra.mxu0 0
      %1010 = vmatprep.subr.bf16.mxu0 0
      %1011 = vmatpush2.bf16.xpose.msra.mxu0 0
      %1012 = vmatprep.subr.bf16.mxu0 0
      %1013 = vmatpush2.bf16.xpose.msra.mxu0 0
      %1014 = vmatprep.subr.bf16.mxu0 0
      %1015 = vmatpush2.bf16.xpose.msra.mxu0 0
      %1016 = vmatprep.subr.bf16.mxu0 0
      %1017 = vmatpush2.bf16.xpose.msra.mxu0 0
      %1018 = vmatprep.subr.bf16.mxu0 0
      %1019 = vmatpush2.bf16.xpose.msra.mxu0 0
      %1020 = vmatprep.subr.bf16.mxu0 0
      %1021 = vmatpush2.bf16.xpose.msra.mxu0 0
      %1022 = vmatprep.subr.bf16.mxu0 0
      %1023 = vmatpush2.bf16.xpose.msra.mxu0 0
      %1024 = vmatprep.mubr.bf16.mxu0 0
      %1025 = vmatmul.mubr.bf16.gmra.mxu0 %v987
      %v1026 = vpop.f32.mrf.mxu0
      %v1027 = vadd.f32 %v753, %v1026
      %v1028 = vpop.f32.mrf.mxu0
      %v1029 = vpop.f32.mrf.mxu0
      %v1030 = vpop.f32.mrf.mxu0
      %1031 = vdwg.mxu0
      %v1032 = vsel %vm802, %v1027, -inf
      %1033 = vmax.xlane.f32.xlu0 %v1032
      %v1034 = vpop.xlane.xlu0 %1033
      %v1035 = vsub.f32 %v1027, %v1034
      %v1036 = vmul.f32 %v1035, 1.442695
      %v1037 = vpow.pop %v1036
      %v1038 = vsel %vm802, %v1037, 0.0
      %1039 = vadd.xlane.f32.xlu0 %v1038
      %v1040 = vpop.xlane.xlu0 %1039
      %v1041 = vrcp.pop %v1040
      %v1042 = vmul.f32 %v1037, %v1041
      %v1043 = vpack.c.bf16 %v1042, %v1042
      %1044 = vrot.lane.b32.xlu0 %v748, 64
      %v1045 = vpop.permute.xlu0 %1044
      %v1047 = vsel %vm802, %v1043, 0
      %v1050 = vsel %vm818, %v1045, 0
      %1052 = vmatprep.subr.bf16.mxu0 0
      %1053 = vmatpush1.bf16.msra.mxu0 0
      %1054 = vmatprep.subr.bf16.mxu0 0
      %1055 = vmatpush1.bf16.msra.mxu0 0
      %1056 = vmatprep.subr.bf16.mxu0 0
      %1057 = vmatpush1.bf16.msra.mxu0 0
      %1058 = vmatprep.subr.bf16.mxu0 0
      %1059 = vmatpush1.bf16.msra.mxu0 0
      %1060 = vmatprep.subr.bf16.mxu0 0
      %1061 = vmatpush1.bf16.msra.mxu0 0
      %1062 = vmatprep.subr.bf16.mxu0 0
      %1063 = vmatpush1.bf16.msra.mxu0 0
      %1064 = vmatprep.subr.bf16.mxu0 0
      %1065 = vmatpush1.bf16.msra.mxu0 0
      %1066 = vmatprep.subr.bf16.mxu0 0
      %1067 = vmatpush1.bf16.msra.mxu0 %v1050
      %1068 = vmatprep.subr.bf16.mxu0 0
      %1069 = vmatpush2.bf16.msra.mxu0 0
      %1070 = vmatprep.subr.bf16.mxu0 0
      %1071 = vmatpush2.bf16.msra.mxu0 0
      %1072 = vmatprep.subr.bf16.mxu0 0
      %1073 = vmatpush2.bf16.msra.mxu0 0
      %1074 = vmatprep.subr.bf16.mxu0 0
      %1075 = vmatpush2.bf16.msra.mxu0 0
      %1076 = vmatprep.subr.bf16.mxu0 0
      %1077 = vmatpush2.bf16.msra.mxu0 0
      %1078 = vmatprep.subr.bf16.mxu0 0
      %1079 = vmatpush2.bf16.msra.mxu0 0
      %1080 = vmatprep.subr.bf16.mxu0 0
      %1081 = vmatpush2.bf16.msra.mxu0 0
      %1082 = vmatprep.subr.bf16.mxu0 0
      %1083 = vmatpush2.bf16.msra.mxu0 0
      %1084 = vmatprep.mubr.bf16.mxu0 0
      %1085 = vmatmul.mubr.bf16.gmra.mxu0 %v1047
      %v1086 = vpop.f32.mrf.mxu0
      %v1087 = vadd.f32 0.0, %v1086
      %v1088 = vpop.f32.mrf.mxu0
      %v1089 = vpop.f32.mrf.mxu0
      %v1090 = vpop.f32.mrf.mxu0
      %1091 = vdwg.mxu0
      %1093 = vrot.lane.b32.xlu0 %v1087, 64
      %v1094 = vpop.permute.xlu0 %1093
      %vm1096 = vcmask 785920
      %1097 = vst.msk [vmem:[#allocation2] sm:$0xff] %vm1096, %v1094
      %1098 = vrot.lane.b32.xlu0 %v736, 32
      %v1099 = vpop.permute.xlu0 %1098
      %1100 = vrot.lane.b32.xlu0 %v742, 32
      %v1101 = vpop.permute.xlu0 %1100
      %v1103 = vsel %vm755, %v1099, 0
      %v1106 = vsel %vm755, %v1101, 0
      %1108 = vmatprep.subr.bf16.mxu0 0
      %1109 = vmatpush1.bf16.xpose.msra.mxu0 0
      %1110 = vmatprep.subr.bf16.mxu0 0
      %1111 = vmatpush1.bf16.xpose.msra.mxu0 0
      %1112 = vmatprep.subr.bf16.mxu0 0
      %1113 = vmatpush1.bf16.xpose.msra.mxu0 0
      %1114 = vmatprep.subr.bf16.mxu0 0
      %1115 = vmatpush1.bf16.xpose.msra.mxu0 0
      %1116 = vmatprep.subr.bf16.mxu0 0
      %1117 = vmatpush1.bf16.xpose.msra.mxu0 0
      %1118 = vmatprep.subr.bf16.mxu0 0
      %1119 = vmatpush1.bf16.xpose.msra.mxu0 0
      %1120 = vmatprep.subr.bf16.mxu0 0
      %1121 = vmatpush1.bf16.xpose.msra.mxu0 0
      %1122 = vmatprep.subr.bf16.mxu0 0
      %1123 = vmatpush1.bf16.xpose.msra.mxu0 %v1106
      %1124 = vmatprep.subr.bf16.mxu0 0
      %1125 = vmatpush2.bf16.xpose.msra.mxu0 0
      %1126 = vmatprep.subr.bf16.mxu0 0
      %1127 = vmatpush2.bf16.xpose.msra.mxu0 0
      %1128 = vmatprep.subr.bf16.mxu0 0
      %1129 = vmatpush2.bf16.xpose.msra.mxu0 0
      %1130 = vmatprep.subr.bf16.mxu0 0
      %1131 = vmatpush2.bf16.xpose.msra.mxu0 0
      %1132 = vmatprep.subr.bf16.mxu0 0
      %1133 = vmatpush2.bf16.xpose.msra.mxu0 0
      %1134 = vmatprep.subr.bf16.mxu0 0
      %1135 = vmatpush2.bf16.xpose.msra.mxu0 0
      %1136 = vmatprep.subr.bf16.mxu0 0
      %1137 = vmatpush2.bf16.xpose.msra.mxu0 0
      %1138 = vmatprep.subr.bf16.mxu0 0
      %1139 = vmatpush2.bf16.xpose.msra.mxu0 0
      %1140 = vmatprep.mubr.bf16.mxu0 0
      %1141 = vmatmul.mubr.bf16.gmra.mxu0 %v1103
      %v1142 = vpop.f32.mrf.mxu0
      %v1143 = vadd.f32 %v753, %v1142
      %v1144 = vpop.f32.mrf.mxu0
      %v1145 = vpop.f32.mrf.mxu0
      %v1146 = vpop.f32.mrf.mxu0
      %1147 = vdwg.mxu0
      %v1148 = vsel %vm802, %v1143, -inf
      %1149 = vmax.xlane.f32.xlu0 %v1148
      %v1150 = vpop.xlane.xlu0 %1149
      %v1151 = vsub.f32 %v1143, %v1150
      %v1152 = vmul.f32 %v1151, 1.442695
      %v1153 = vpow.pop %v1152
      %v1154 = vsel %vm802, %v1153, 0.0
      %1155 = vadd.xlane.f32.xlu0 %v1154
      %v1156 = vpop.xlane.xlu0 %1155
      %v1157 = vrcp.pop %v1156
      %v1158 = vmul.f32 %v1153, %v1157
      %v1159 = vpack.c.bf16 %v1158, %v1158
      %1160 = vrot.lane.b32.xlu0 %v748, 32
      %v1161 = vpop.permute.xlu0 %1160
      %v1163 = vsel %vm802, %v1159, 0
      %v1166 = vsel %vm818, %v1161, 0
      %1168 = vmatprep.subr.bf16.mxu0 0
      %1169 = vmatpush1.bf16.msra.mxu0 0
      %1170 = vmatprep.subr.bf16.mxu0 0
      %1171 = vmatpush1.bf16.msra.mxu0 0
      %1172 = vmatprep.subr.bf16.mxu0 0
      %1173 = vmatpush1.bf16.msra.mxu0 0
      %1174 = vmatprep.subr.bf16.mxu0 0
      %1175 = vmatpush1.bf16.msra.mxu0 0
      %1176 = vmatprep.subr.bf16.mxu0 0
      %1177 = vmatpush1.bf16.msra.mxu0 0
      %1178 = vmatprep.subr.bf16.mxu0 0
      %1179 = vmatpush1.bf16.msra.mxu0 0
      %1180 = vmatprep.subr.bf16.mxu0 0
      %1181 = vmatpush1.bf16.msra.mxu0 0
      %1182 = vmatprep.subr.bf16.mxu0 0
      %1183 = vmatpush1.bf16.msra.mxu0 %v1166
      %1184 = vmatprep.subr.bf16.mxu0 0
      %1185 = vmatpush2.bf16.msra.mxu0 0
      %1186 = vmatprep.subr.bf16.mxu0 0
      %1187 = vmatpush2.bf16.msra.mxu0 0
      %1188 = vmatprep.subr.bf16.mxu0 0
      %1189 = vmatpush2.bf16.msra.mxu0 0
      %1190 = vmatprep.subr.bf16.mxu0 0
      %1191 = vmatpush2.bf16.msra.mxu0 0
      %1192 = vmatprep.subr.bf16.mxu0 0
      %1193 = vmatpush2.bf16.msra.mxu0 0
      %1194 = vmatprep.subr.bf16.mxu0 0
      %1195 = vmatpush2.bf16.msra.mxu0 0
      %1196 = vmatprep.subr.bf16.mxu0 0
      %1197 = vmatpush2.bf16.msra.mxu0 0
      %1198 = vmatprep.subr.bf16.mxu0 0
      %1199 = vmatpush2.bf16.msra.mxu0 0
      %1200 = vmatprep.mubr.bf16.mxu0 0
      %1201 = vmatmul.mubr.bf16.gmra.mxu0 %v1163
      %v1202 = vpop.f32.mrf.mxu0
      %v1203 = vadd.f32 0.0, %v1202
      %v1204 = vpop.f32.mrf.mxu0
      %v1205 = vpop.f32.mrf.mxu0
      %v1206 = vpop.f32.mrf.mxu0
      %1207 = vdwg.mxu0
      %1209 = vrot.lane.b32.xlu0 %v1203, 96
      %v1210 = vpop.permute.xlu0 %1209
      %vm1212 = vcmask 1048320
      %1213 = vst.msk [vmem:[#allocation2] sm:$0xff] %vm1212, %v1210
      %v1214 = vld [vmem:[#allocation2] sm:$0xff]
      %v1215 = vpack.c.bf16 %v1214, %v1214
      %v1216 = vlaneseq
      %v1217 = vshrl.u32 %v1216, 7
      %v1218 = vsub.s32 3, %v1217
      %v1219 = vrot.slane %v462, %v1218
      %v1236 = vunpack.c.l.b16 %v504
      %v1237 = vunpack.c.l.b16 %v505
      %v1238 = vunpack.c.l.b16 %v506
      %v1239 = vunpack.c.l.b16 %v507
      %v1240 = vunpack.c.l.b16 %v508
      %v1241 = vunpack.c.l.b16 %v509
      %v1242 = vunpack.c.l.b16 %v510
      %v1243 = vunpack.c.l.b16 %v511
      %v1244 = vunpack.c.l.b16 %v512
      %v1245 = vunpack.c.l.b16 %v513
      %v1246 = vunpack.c.l.b16 %v514
      %v1247 = vunpack.c.l.b16 %v515
      %v1248 = vunpack.c.l.b16 %v516
      %v1249 = vunpack.c.l.b16 %v517
      %v1250 = vunpack.c.l.b16 %v518
      %v1251 = vunpack.c.l.b16 %v519
      %v1252 = vpack.c.b16 %v1237, %v1236
      %v1253 = vpack.c.b16 %v1239, %v1238
      %v1254 = vpack.c.b16 %v1241, %v1240
      %v1255 = vpack.c.b16 %v1243, %v1242
      %v1256 = vpack.c.b16 %v1245, %v1244
      %v1257 = vpack.c.b16 %v1247, %v1246
      %v1258 = vpack.c.b16 %v1249, %v1248
      %v1259 = vpack.c.b16 %v1251, %v1250
      %1268 = vmatprep.subr.bf16.mxu0 0
      %1269 = vmatpush1.bf16.msra.mxu0 %v1259
      %1270 = vmatprep.subr.bf16.mxu0 0
      %1271 = vmatpush1.bf16.msra.mxu0 %v1258
      %1272 = vmatprep.subr.bf16.mxu0 0
      %1273 = vmatpush1.bf16.msra.mxu0 %v1257
      %1274 = vmatprep.subr.bf16.mxu0 0
      %1275 = vmatpush1.bf16.msra.mxu0 %v1256
      %1276 = vmatprep.subr.bf16.mxu0 0
      %1277 = vmatpush1.bf16.msra.mxu0 %v1255
      %1278 = vmatprep.subr.bf16.mxu0 0
      %1279 = vmatpush1.bf16.msra.mxu0 %v1254
      %1280 = vmatprep.subr.bf16.mxu0 0
      %1281 = vmatpush1.bf16.msra.mxu0 %v1253
      %1282 = vmatprep.subr.bf16.mxu0 0
      %1283 = vmatpush1.bf16.msra.mxu0 %v1252
      %1284 = vmatprep.subr.bf16.mxu0 0
      %1285 = vmatpush2.bf16.msra.mxu0 0
      %1286 = vmatprep.subr.bf16.mxu0 0
      %1287 = vmatpush2.bf16.msra.mxu0 0
      %1288 = vmatprep.subr.bf16.mxu0 0
      %1289 = vmatpush2.bf16.msra.mxu0 0
      %1290 = vmatprep.subr.bf16.mxu0 0
      %1291 = vmatpush2.bf16.msra.mxu0 0
      %1292 = vmatprep.subr.bf16.mxu0 0
      %1293 = vmatpush2.bf16.msra.mxu0 0
      %1294 = vmatprep.subr.bf16.mxu0 0
      %1295 = vmatpush2.bf16.msra.mxu0 0
      %1296 = vmatprep.subr.bf16.mxu0 0
      %1297 = vmatpush2.bf16.msra.mxu0 0
      %1298 = vmatprep.subr.bf16.mxu0 0
      %1299 = vmatpush2.bf16.msra.mxu0 0
      %1300 = vmatprep.mubr.bf16.mxu0 0
      %1301 = vmatmul.mubr.bf16.gmra.mxu0 %v1215
      %v1302 = vpop.f32.mrf.mxu0
      %v1303 = vadd.f32 %v1219, %v1302
      %v1304 = vpop.f32.mrf.mxu0
      %v1305 = vpop.f32.mrf.mxu0
      %v1306 = vpop.f32.mrf.mxu0
      %1307 = vdwg.mxu0
      %v1308 = vadd.f32 %v458, %v1303
      %1309 = vadd.xlane.f32.xlu0 %v1308
      %v1310 = vpop.xlane.xlu0 %1309
      %v1311 = vrcp.pop 128.0
      %v1312 = vmul.f32 %v1310, %v1311
      %v1313 = vsub.f32 %v1308, %v1312
      %v1314 = vmul.f32 %v1313, %v1313
      %1315 = vadd.xlane.f32.xlu0 %v1314
      %v1316 = vpop.xlane.xlu0 %1315
      %v1317 = vmul.f32 %v1316, %v1311
      %v1318 = vadd.f32 %v1317, 1e-12
      %v1319 = vrsqrt.pop %v1318
      %v1320 = vmul.f32 %v1313, %v1319
      %v1321 = vlaneseq
      %v1322 = vshrl.u32 %v1321, 7
      %v1323 = vsub.s32 4, %v1322
      %v1324 = vrot.slane %v462, %v1323
      %v1325 = vmul.f32 %v1320, %v1324
      %v1326 = vlaneseq
      %v1327 = vshrl.u32 %v1326, 7
      %v1328 = vsub.s32 5, %v1327
      %v1329 = vrot.slane %v462, %v1328
      %v1330 = vadd.f32 %v1325, %v1329
      %v1331 = vld [vmem:[%s412] sm:$0xff]
      %v1332 = vld [vmem:[%s412 + $0x8] sm:$0xff]
      %v1333 = vld [vmem:[%s412 + $0x10] sm:$0xff]
      %v1334 = vld [vmem:[%s412 + $0x18] sm:$0xff]
      %v1335 = vld [vmem:[%s412 + $0x20] sm:$0xff]
      %v1336 = vld [vmem:[%s412 + $0x28] sm:$0xff]
      %v1337 = vld [vmem:[%s412 + $0x30] sm:$0xff]
      %v1338 = vld [vmem:[%s412 + $0x38] sm:$0xff]
      %v1339 = vld [vmem:[%s412 + $0x40] sm:$0xff]
      %v1340 = vld [vmem:[%s412 + $0x48] sm:$0xff]
      %v1341 = vld [vmem:[%s412 + $0x50] sm:$0xff]
      %v1342 = vld [vmem:[%s412 + $0x58] sm:$0xff]
      %v1343 = vld [vmem:[%s412 + $0x60] sm:$0xff]
      %v1344 = vld [vmem:[%s412 + $0x68] sm:$0xff]
      %v1345 = vld [vmem:[%s412 + $0x70] sm:$0xff]
      %v1346 = vld [vmem:[%s412 + $0x78] sm:$0xff]
      %v1347 = vld [vmem:[%s412 + $0x80] sm:$0xff]
      %v1348 = vld [vmem:[%s412 + $0x88] sm:$0xff]
      %v1349 = vld [vmem:[%s412 + $0x90] sm:$0xff]
      %v1350 = vld [vmem:[%s412 + $0x98] sm:$0xff]
      %v1351 = vld [vmem:[%s412 + $0xa0] sm:$0xff]
      %v1352 = vld [vmem:[%s412 + $0xa8] sm:$0xff]
      %v1353 = vld [vmem:[%s412 + $0xb0] sm:$0xff]
      %v1354 = vld [vmem:[%s412 + $0xb8] sm:$0xff]
      %v1355 = vld [vmem:[%s412 + $0xc0] sm:$0xff]
      %v1356 = vld [vmem:[%s412 + $0xc8] sm:$0xff]
      %v1357 = vld [vmem:[%s412 + $0xd0] sm:$0xff]
      %v1358 = vld [vmem:[%s412 + $0xd8] sm:$0xff]
      %v1359 = vld [vmem:[%s412 + $0xe0] sm:$0xff]
      %v1360 = vld [vmem:[%s412 + $0xe8] sm:$0xff]
      %v1361 = vld [vmem:[%s412 + $0xf0] sm:$0xff]
      %v1362 = vld [vmem:[%s412 + $0xf8] sm:$0xff]
      %v1363 = vpack.c.bf16 %v1330, %v1330
      %v1364 = vlaneseq
      %v1365 = vshrl.u32 %v1364, 7
      %v1366 = vsub.s32 6, %v1365
      %v1367 = vrot.slane %v462, %v1366
      %v1368 = vlaneseq
      %v1369 = vshrl.u32 %v1368, 7
      %v1370 = vsub.s32 6, %v1369
      %v1371 = vrot.slane %v465, %v1370
      %v1372 = vlaneseq
      %v1373 = vshrl.u32 %v1372, 7
      %v1374 = vsub.s32 6, %v1373
      %v1375 = vrot.slane %v468, %v1374
      %v1376 = vlaneseq
      %v1377 = vshrl.u32 %v1376, 7
      %v1378 = vsub.s32 6, %v1377
      %v1379 = vrot.slane %v470, %v1378
      %v1412 = vunpack.c.l.b16 %v1331
      %v1413 = vunpack.c.h.b16 %v1331
      %v1414 = vunpack.c.l.b16 %v1332
      %v1415 = vunpack.c.h.b16 %v1332
      %v1416 = vunpack.c.l.b16 %v1333
      %v1417 = vunpack.c.h.b16 %v1333
      %v1418 = vunpack.c.l.b16 %v1334
      %v1419 = vunpack.c.h.b16 %v1334
      %v1420 = vunpack.c.l.b16 %v1335
      %v1421 = vunpack.c.h.b16 %v1335
      %v1422 = vunpack.c.l.b16 %v1336
      %v1423 = vunpack.c.h.b16 %v1336
      %v1424 = vunpack.c.l.b16 %v1337
      %v1425 = vunpack.c.h.b16 %v1337
      %v1426 = vunpack.c.l.b16 %v1338
      %v1427 = vunpack.c.h.b16 %v1338
      %v1428 = vunpack.c.l.b16 %v1339
      %v1429 = vunpack.c.h.b16 %v1339
      %v1430 = vunpack.c.l.b16 %v1340
      %v1431 = vunpack.c.h.b16 %v1340
      %v1432 = vunpack.c.l.b16 %v1341
      %v1433 = vunpack.c.h.b16 %v1341
      %v1434 = vunpack.c.l.b16 %v1342
      %v1435 = vunpack.c.h.b16 %v1342
      %v1436 = vunpack.c.l.b16 %v1343
      %v1437 = vunpack.c.h.b16 %v1343
      %v1438 = vunpack.c.l.b16 %v1344
      %v1439 = vunpack.c.h.b16 %v1344
      %v1440 = vunpack.c.l.b16 %v1345
      %v1441 = vunpack.c.h.b16 %v1345
      %v1442 = vunpack.c.l.b16 %v1346
      %v1443 = vunpack.c.h.b16 %v1346
      %v1444 = vunpack.c.l.b16 %v1347
      %v1445 = vunpack.c.h.b16 %v1347
      %v1446 = vunpack.c.l.b16 %v1348
      %v1447 = vunpack.c.h.b16 %v1348
      %v1448 = vunpack.c.l.b16 %v1349
      %v1449 = vunpack.c.h.b16 %v1349
      %v1450 = vunpack.c.l.b16 %v1350
      %v1451 = vunpack.c.h.b16 %v1350
      %v1452 = vunpack.c.l.b16 %v1351
      %v1453 = vunpack.c.h.b16 %v1351
      %v1454 = vunpack.c.l.b16 %v1352
      %v1455 = vunpack.c.h.b16 %v1352
      %v1456 = vunpack.c.l.b16 %v1353
      %v1457 = vunpack.c.h.b16 %v1353
      %v1458 = vunpack.c.l.b16 %v1354
      %v1459 = vunpack.c.h.b16 %v1354
      %v1460 = vunpack.c.l.b16 %v1355
      %v1461 = vunpack.c.h.b16 %v1355
      %v1462 = vunpack.c.l.b16 %v1356
      %v1463 = vunpack.c.h.b16 %v1356
      %v1464 = vunpack.c.l.b16 %v1357
      %v1465 = vunpack.c.h.b16 %v1357
      %v1466 = vunpack.c.l.b16 %v1358
      %v1467 = vunpack.c.h.b16 %v1358
      %v1468 = vunpack.c.l.b16 %v1359
      %v1469 = vunpack.c.h.b16 %v1359
      %v1470 = vunpack.c.l.b16 %v1360
      %v1471 = vunpack.c.h.b16 %v1360
      %v1472 = vunpack.c.l.b16 %v1361
      %v1473 = vunpack.c.h.b16 %v1361
      %v1474 = vunpack.c.l.b16 %v1362
      %v1475 = vunpack.c.h.b16 %v1362
      %v1476 = vpack.c.b16 %v1416, %v1412
      %v1477 = vpack.c.b16 %v1417, %v1413
      %v1478 = vpack.c.b16 %v1418, %v1414
      %v1479 = vpack.c.b16 %v1419, %v1415
      %v1480 = vpack.c.b16 %v1424, %v1420
      %v1481 = vpack.c.b16 %v1425, %v1421
      %v1482 = vpack.c.b16 %v1426, %v1422
      %v1483 = vpack.c.b16 %v1427, %v1423
      %v1484 = vpack.c.b16 %v1432, %v1428
      %v1485 = vpack.c.b16 %v1433, %v1429
      %v1486 = vpack.c.b16 %v1434, %v1430
      %v1487 = vpack.c.b16 %v1435, %v1431
      %v1488 = vpack.c.b16 %v1440, %v1436
      %v1489 = vpack.c.b16 %v1441, %v1437
      %v1490 = vpack.c.b16 %v1442, %v1438
      %v1491 = vpack.c.b16 %v1443, %v1439
      %v1492 = vpack.c.b16 %v1448, %v1444
      %v1493 = vpack.c.b16 %v1449, %v1445
      %v1494 = vpack.c.b16 %v1450, %v1446
      %v1495 = vpack.c.b16 %v1451, %v1447
      %v1496 = vpack.c.b16 %v1456, %v1452
      %v1497 = vpack.c.b16 %v1457, %v1453
      %v1498 = vpack.c.b16 %v1458, %v1454
      %v1499 = vpack.c.b16 %v1459, %v1455
      %v1500 = vpack.c.b16 %v1464, %v1460
      %v1501 = vpack.c.b16 %v1465, %v1461
      %v1502 = vpack.c.b16 %v1466, %v1462
      %v1503 = vpack.c.b16 %v1467, %v1463
      %v1504 = vpack.c.b16 %v1472, %v1468
      %v1505 = vpack.c.b16 %v1473, %v1469
      %v1506 = vpack.c.b16 %v1474, %v1470
      %v1507 = vpack.c.b16 %v1475, %v1471
      %1540 = vmatprep.subr.bf16.mxu0 %v1505
      %1541 = vmatpush1.bf16.msra.mxu0 %v1504
      %1542 = vmatprep.subr.bf16.mxu0 %v1501
      %1543 = vmatpush1.bf16.msra.mxu0 %v1500
      %1544 = vmatprep.subr.bf16.mxu0 %v1497
      %1545 = vmatpush1.bf16.msra.mxu0 %v1496
      %1546 = vmatprep.subr.bf16.mxu0 %v1493
      %1547 = vmatpush1.bf16.msra.mxu0 %v1492
      %1548 = vmatprep.subr.bf16.mxu0 %v1489
      %1549 = vmatpush1.bf16.msra.mxu0 %v1488
      %1550 = vmatprep.subr.bf16.mxu0 %v1485
      %1551 = vmatpush1.bf16.msra.mxu0 %v1484
      %1552 = vmatprep.subr.bf16.mxu0 %v1481
      %1553 = vmatpush1.bf16.msra.mxu0 %v1480
      %1554 = vmatprep.subr.bf16.mxu0 %v1477
      %1555 = vmatpush1.bf16.msra.mxu0 %v1476
      %1556 = vmatprep.subr.bf16.mxu0 0
      %1557 = vmatpush2.bf16.msra.mxu0 0
      %1558 = vmatprep.subr.bf16.mxu0 0
      %1559 = vmatpush2.bf16.msra.mxu0 0
      %1560 = vmatprep.subr.bf16.mxu0 0
      %1561 = vmatpush2.bf16.msra.mxu0 0
      %1562 = vmatprep.subr.bf16.mxu0 0
      %1563 = vmatpush2.bf16.msra.mxu0 0
      %1564 = vmatprep.subr.bf16.mxu0 0
      %1565 = vmatpush2.bf16.msra.mxu0 0
      %1566 = vmatprep.subr.bf16.mxu0 0
      %1567 = vmatpush2.bf16.msra.mxu0 0
      %1568 = vmatprep.subr.bf16.mxu0 0
      %1569 = vmatpush2.bf16.msra.mxu0 0
      %1570 = vmatprep.subr.bf16.mxu0 0
      %1571 = vmatpush2.bf16.msra.mxu0 0
      %1572 = vmatprep.mubr.bf16.mxu0 0
      %1573 = vmatmul.mubr.bf16.gmra.mxu0 %v1363
      %v1574 = vpop.f32.mrf.mxu0
      %v1575 = vadd.f32 %v1367, %v1574
      %v1576 = vpop.f32.mrf.mxu0
      %v1577 = vadd.f32 %v1371, %v1576
      %v1578 = vpop.f32.mrf.mxu0
      %v1579 = vpop.f32.mrf.mxu0
      %1580 = vdwg.mxu0
      %1581 = vmatprep.subr.bf16.mxu0 %v1507
      %1582 = vmatpush1.bf16.msra.mxu0 %v1506
      %1583 = vmatprep.subr.bf16.mxu0 %v1503
      %1584 = vmatpush1.bf16.msra.mxu0 %v1502
      %1585 = vmatprep.subr.bf16.mxu0 %v1499
      %1586 = vmatpush1.bf16.msra.mxu0 %v1498
      %1587 = vmatprep.subr.bf16.mxu0 %v1495
      %1588 = vmatpush1.bf16.msra.mxu0 %v1494
      %1589 = vmatprep.subr.bf16.mxu0 %v1491
      %1590 = vmatpush1.bf16.msra.mxu0 %v1490
      %1591 = vmatprep.subr.bf16.mxu0 %v1487
      %1592 = vmatpush1.bf16.msra.mxu0 %v1486
      %1593 = vmatprep.subr.bf16.mxu0 %v1483
      %1594 = vmatpush1.bf16.msra.mxu0 %v1482
      %1595 = vmatprep.subr.bf16.mxu0 %v1479
      %1596 = vmatpush1.bf16.msra.mxu0 %v1478
      %1597 = vmatprep.subr.bf16.mxu0 0
      %1598 = vmatpush2.bf16.msra.mxu0 0
      %1599 = vmatprep.subr.bf16.mxu0 0
      %1600 = vmatpush2.bf16.msra.mxu0 0
      %1601 = vmatprep.subr.bf16.mxu0 0
      %1602 = vmatpush2.bf16.msra.mxu0 0
      %1603 = vmatprep.subr.bf16.mxu0 0
      %1604 = vmatpush2.bf16.msra.mxu0 0
      %1605 = vmatprep.subr.bf16.mxu0 0
      %1606 = vmatpush2.bf16.msra.mxu0 0
      %1607 = vmatprep.subr.bf16.mxu0 0
      %1608 = vmatpush2.bf16.msra.mxu0 0
      %1609 = vmatprep.subr.bf16.mxu0 0
      %1610 = vmatpush2.bf16.msra.mxu0 0
      %1611 = vmatprep.subr.bf16.mxu0 0
      %1612 = vmatpush2.bf16.msra.mxu0 0
      %1613 = vmatprep.mubr.bf16.mxu0 0
      %1614 = vmatmul.mubr.bf16.gmra.mxu0 %v1363
      %v1615 = vpop.f32.mrf.mxu0
      %v1616 = vadd.f32 %v1375, %v1615
      %v1617 = vpop.f32.mrf.mxu0
      %v1618 = vadd.f32 %v1379, %v1617
      %v1619 = vpop.f32.mrf.mxu0
      %v1620 = vpop.f32.mrf.mxu0
      %1621 = vdwg.mxu0
      %v1622 = vmul.f32 %v1575, %v1575
      %v1623 = vmul.f32 %v1577, %v1577
      %v1624 = vmul.f32 %v1616, %v1616
      %v1625 = vmul.f32 %v1618, %v1618
      %v1626 = vmul.f32 %v1575, %v1622
      %v1627 = vmul.f32 %v1577, %v1623
      %v1628 = vmul.f32 %v1616, %v1624
      %v1629 = vmul.f32 %v1618, %v1625
      %v1630 = vmul.f32 %v1626, 0.044715
      %v1631 = vmul.f32 %v1627, 0.044715
      %v1632 = vmul.f32 %v1628, 0.044715
      %v1633 = vmul.f32 %v1629, 0.044715
      %v1634 = vadd.f32 %v1575, %v1630
      %v1635 = vadd.f32 %v1577, %v1631
      %v1636 = vadd.f32 %v1616, %v1632
      %v1637 = vadd.f32 %v1618, %v1633
      %v1638 = vmul.f32 %v1634, 0.7978846
      %v1639 = vmul.f32 %v1635, 0.7978846
      %v1640 = vmul.f32 %v1636, 0.7978846
      %v1641 = vmul.f32 %v1637, 0.7978846
      %v1642 = vtanh.pop %v1638
      %v1643 = vtanh.pop %v1639
      %v1644 = vtanh.pop %v1640
      %v1645 = vtanh.pop %v1641
      %v1646 = vadd.f32 %v1642, 1.0
      %v1647 = vadd.f32 %v1643, 1.0
      %v1648 = vadd.f32 %v1644, 1.0
      %v1649 = vadd.f32 %v1645, 1.0
      %v1650 = vmul.f32 %v1646, 0.5
      %v1651 = vmul.f32 %v1647, 0.5
      %v1652 = vmul.f32 %v1648, 0.5
      %v1653 = vmul.f32 %v1649, 0.5
      %v1654 = vmul.f32 %v1575, %v1650
      %v1655 = vmul.f32 %v1577, %v1651
      %v1656 = vmul.f32 %v1616, %v1652
      %v1657 = vmul.f32 %v1618, %v1653
      %v1658 = vld [vmem:[%s417] sm:$0xf]
      %v1659 = vld [vmem:[%s417 + $0x4] sm:$0xf]
      %v1660 = vld [vmem:[%s417 + $0x8] sm:$0xf]
      %v1661 = vld [vmem:[%s417 + $0xc] sm:$0xf]
      %v1662 = vld [vmem:[%s417 + $0x10] sm:$0xf]
      %v1663 = vld [vmem:[%s417 + $0x14] sm:$0xf]
      %v1664 = vld [vmem:[%s417 + $0x18] sm:$0xf]
      %v1665 = vld [vmem:[%s417 + $0x1c] sm:$0xf]
      %v1666 = vld [vmem:[%s417 + $0x20] sm:$0xf]
      %v1667 = vld [vmem:[%s417 + $0x24] sm:$0xf]
      %v1668 = vld [vmem:[%s417 + $0x28] sm:$0xf]
      %v1669 = vld [vmem:[%s417 + $0x2c] sm:$0xf]
      %v1670 = vld [vmem:[%s417 + $0x30] sm:$0xf]
      %v1671 = vld [vmem:[%s417 + $0x34] sm:$0xf]
      %v1672 = vld [vmem:[%s417 + $0x38] sm:$0xf]
      %v1673 = vld [vmem:[%s417 + $0x3c] sm:$0xf]
      %v1674 = vld [vmem:[%s417 + $0x40] sm:$0xf]
      %v1675 = vld [vmem:[%s417 + $0x44] sm:$0xf]
      %v1676 = vld [vmem:[%s417 + $0x48] sm:$0xf]
      %v1677 = vld [vmem:[%s417 + $0x4c] sm:$0xf]
      %v1678 = vld [vmem:[%s417 + $0x50] sm:$0xf]
      %v1679 = vld [vmem:[%s417 + $0x54] sm:$0xf]
      %v1680 = vld [vmem:[%s417 + $0x58] sm:$0xf]
      %v1681 = vld [vmem:[%s417 + $0x5c] sm:$0xf]
      %v1682 = vld [vmem:[%s417 + $0x60] sm:$0xf]
      %v1683 = vld [vmem:[%s417 + $0x64] sm:$0xf]
      %v1684 = vld [vmem:[%s417 + $0x68] sm:$0xf]
      %v1685 = vld [vmem:[%s417 + $0x6c] sm:$0xf]
      %v1686 = vld [vmem:[%s417 + $0x70] sm:$0xf]
      %v1687 = vld [vmem:[%s417 + $0x74] sm:$0xf]
      %v1688 = vld [vmem:[%s417 + $0x78] sm:$0xf]
      %v1689 = vld [vmem:[%s417 + $0x7c] sm:$0xf]
      %v1690 = vld [vmem:[%s417 + $0x80] sm:$0xf]
      %v1691 = vld [vmem:[%s417 + $0x84] sm:$0xf]
      %v1692 = vld [vmem:[%s417 + $0x88] sm:$0xf]
      %v1693 = vld [vmem:[%s417 + $0x8c] sm:$0xf]
      %v1694 = vld [vmem:[%s417 + $0x90] sm:$0xf]
      %v1695 = vld [vmem:[%s417 + $0x94] sm:$0xf]
      %v1696 = vld [vmem:[%s417 + $0x98] sm:$0xf]
      %v1697 = vld [vmem:[%s417 + $0x9c] sm:$0xf]
      %v1698 = vld [vmem:[%s417 + $0xa0] sm:$0xf]
      %v1699 = vld [vmem:[%s417 + $0xa4] sm:$0xf]
      %v1700 = vld [vmem:[%s417 + $0xa8] sm:$0xf]
      %v1701 = vld [vmem:[%s417 + $0xac] sm:$0xf]
      %v1702 = vld [vmem:[%s417 + $0xb0] sm:$0xf]
      %v1703 = vld [vmem:[%s417 + $0xb4] sm:$0xf]
      %v1704 = vld [vmem:[%s417 + $0xb8] sm:$0xf]
      %v1705 = vld [vmem:[%s417 + $0xbc] sm:$0xf]
      %v1706 = vld [vmem:[%s417 + $0xc0] sm:$0xf]
      %v1707 = vld [vmem:[%s417 + $0xc4] sm:$0xf]
      %v1708 = vld [vmem:[%s417 + $0xc8] sm:$0xf]
      %v1709 = vld [vmem:[%s417 + $0xcc] sm:$0xf]
      %v1710 = vld [vmem:[%s417 + $0xd0] sm:$0xf]
      %v1711 = vld [vmem:[%s417 + $0xd4] sm:$0xf]
      %v1712 = vld [vmem:[%s417 + $0xd8] sm:$0xf]
      %v1713 = vld [vmem:[%s417 + $0xdc] sm:$0xf]
      %v1714 = vld [vmem:[%s417 + $0xe0] sm:$0xf]
      %v1715 = vld [vmem:[%s417 + $0xe4] sm:$0xf]
      %v1716 = vld [vmem:[%s417 + $0xe8] sm:$0xf]
      %v1717 = vld [vmem:[%s417 + $0xec] sm:$0xf]
      %v1718 = vld [vmem:[%s417 + $0xf0] sm:$0xf]
      %v1719 = vld [vmem:[%s417 + $0xf4] sm:$0xf]
      %v1720 = vld [vmem:[%s417 + $0xf8] sm:$0xf]
      %v1721 = vld [vmem:[%s417 + $0xfc] sm:$0xf]
      %v1722 = vpack.c.bf16 %v1654, %v1654
      %v1723 = vpack.c.bf16 %v1655, %v1655
      %v1724 = vpack.c.bf16 %v1656, %v1656
      %v1725 = vpack.c.bf16 %v1657, %v1657
      %v1790 = vunpack.c.l.b16 %v1658
      %v1791 = vunpack.c.l.b16 %v1659
      %v1792 = vunpack.c.l.b16 %v1660
      %v1793 = vunpack.c.l.b16 %v1661
      %v1794 = vunpack.c.l.b16 %v1662
      %v1795 = vunpack.c.l.b16 %v1663
      %v1796 = vunpack.c.l.b16 %v1664
      %v1797 = vunpack.c.l.b16 %v1665
      %v1798 = vunpack.c.l.b16 %v1666
      %v1799 = vunpack.c.l.b16 %v1667
      %v1800 = vunpack.c.l.b16 %v1668
      %v1801 = vunpack.c.l.b16 %v1669
      %v1802 = vunpack.c.l.b16 %v1670
      %v1803 = vunpack.c.l.b16 %v1671
      %v1804 = vunpack.c.l.b16 %v1672
      %v1805 = vunpack.c.l.b16 %v1673
      %v1806 = vunpack.c.l.b16 %v1674
      %v1807 = vunpack.c.l.b16 %v1675
      %v1808 = vunpack.c.l.b16 %v1676
      %v1809 = vunpack.c.l.b16 %v1677
      %v1810 = vunpack.c.l.b16 %v1678
      %v1811 = vunpack.c.l.b16 %v1679
      %v1812 = vunpack.c.l.b16 %v1680
      %v1813 = vunpack.c.l.b16 %v1681
      %v1814 = vunpack.c.l.b16 %v1682
      %v1815 = vunpack.c.l.b16 %v1683
      %v1816 = vunpack.c.l.b16 %v1684
      %v1817 = vunpack.c.l.b16 %v1685
      %v1818 = vunpack.c.l.b16 %v1686
      %v1819 = vunpack.c.l.b16 %v1687
      %v1820 = vunpack.c.l.b16 %v1688
      %v1821 = vunpack.c.l.b16 %v1689
      %v1822 = vunpack.c.l.b16 %v1690
      %v1823 = vunpack.c.l.b16 %v1691
      %v1824 = vunpack.c.l.b16 %v1692
      %v1825 = vunpack.c.l.b16 %v1693
      %v1826 = vunpack.c.l.b16 %v1694
      %v1827 = vunpack.c.l.b16 %v1695
      %v1828 = vunpack.c.l.b16 %v1696
      %v1829 = vunpack.c.l.b16 %v1697
      %v1830 = vunpack.c.l.b16 %v1698
      %v1831 = vunpack.c.l.b16 %v1699
      %v1832 = vunpack.c.l.b16 %v1700
      %v1833 = vunpack.c.l.b16 %v1701
      %v1834 = vunpack.c.l.b16 %v1702
      %v1835 = vunpack.c.l.b16 %v1703
      %v1836 = vunpack.c.l.b16 %v1704
      %v1837 = vunpack.c.l.b16 %v1705
      %v1838 = vunpack.c.l.b16 %v1706
      %v1839 = vunpack.c.l.b16 %v1707
      %v1840 = vunpack.c.l.b16 %v1708
      %v1841 = vunpack.c.l.b16 %v1709
      %v1842 = vunpack.c.l.b16 %v1710
      %v1843 = vunpack.c.l.b16 %v1711
      %v1844 = vunpack.c.l.b16 %v1712
      %v1845 = vunpack.c.l.b16 %v1713
      %v1846 = vunpack.c.l.b16 %v1714
      %v1847 = vunpack.c.l.b16 %v1715
      %v1848 = vunpack.c.l.b16 %v1716
      %v1849 = vunpack.c.l.b16 %v1717
      %v1850 = vunpack.c.l.b16 %v1718
      %v1851 = vunpack.c.l.b16 %v1719
      %v1852 = vunpack.c.l.b16 %v1720
      %v1853 = vunpack.c.l.b16 %v1721
      %v1854 = vpack.c.b16 %v1791, %v1790
      %v1855 = vpack.c.b16 %v1793, %v1792
      %v1856 = vpack.c.b16 %v1795, %v1794
      %v1857 = vpack.c.b16 %v1797, %v1796
      %v1858 = vpack.c.b16 %v1799, %v1798
      %v1859 = vpack.c.b16 %v1801, %v1800
      %v1860 = vpack.c.b16 %v1803, %v1802
      %v1861 = vpack.c.b16 %v1805, %v1804
      %v1862 = vpack.c.b16 %v1807, %v1806
      %v1863 = vpack.c.b16 %v1809, %v1808
      %v1864 = vpack.c.b16 %v1811, %v1810
      %v1865 = vpack.c.b16 %v1813, %v1812
      %v1866 = vpack.c.b16 %v1815, %v1814
      %v1867 = vpack.c.b16 %v1817, %v1816
      %v1868 = vpack.c.b16 %v1819, %v1818
      %v1869 = vpack.c.b16 %v1821, %v1820
      %v1870 = vpack.c.b16 %v1823, %v1822
      %v1871 = vpack.c.b16 %v1825, %v1824
      %v1872 = vpack.c.b16 %v1827, %v1826
      %v1873 = vpack.c.b16 %v1829, %v1828
      %v1874 = vpack.c.b16 %v1831, %v1830
      %v1875 = vpack.c.b16 %v1833, %v1832
      %v1876 = vpack.c.b16 %v1835, %v1834
      %v1877 = vpack.c.b16 %v1837, %v1836
      %v1878 = vpack.c.b16 %v1839, %v1838
      %v1879 = vpack.c.b16 %v1841, %v1840
      %v1880 = vpack.c.b16 %v1843, %v1842
      %v1881 = vpack.c.b16 %v1845, %v1844
      %v1882 = vpack.c.b16 %v1847, %v1846
      %v1883 = vpack.c.b16 %v1849, %v1848
      %v1884 = vpack.c.b16 %v1851, %v1850
      %v1885 = vpack.c.b16 %v1853, %v1852
      %1918 = vmatprep.subr.bf16.mxu0 0
      %1919 = vmatpush1.bf16.msra.mxu0 %v1861
      %1920 = vmatprep.subr.bf16.mxu0 0
      %1921 = vmatpush1.bf16.msra.mxu0 %v1860
      %1922 = vmatprep.subr.bf16.mxu0 0
      %1923 = vmatpush1.bf16.msra.mxu0 %v1859
      %1924 = vmatprep.subr.bf16.mxu0 0
      %1925 = vmatpush1.bf16.msra.mxu0 %v1858
      %1926 = vmatprep.subr.bf16.mxu0 0
      %1927 = vmatpush1.bf16.msra.mxu0 %v1857
      %1928 = vmatprep.subr.bf16.mxu0 0
      %1929 = vmatpush1.bf16.msra.mxu0 %v1856
      %1930 = vmatprep.subr.bf16.mxu0 0
      %1931 = vmatpush1.bf16.msra.mxu0 %v1855
      %1932 = vmatprep.subr.bf16.mxu0 0
      %1933 = vmatpush1.bf16.msra.mxu0 %v1854
      %1934 = vmatprep.subr.bf16.mxu0 0
      %1935 = vmatpush2.bf16.msra.mxu0 %v1869
      %1936 = vmatprep.subr.bf16.mxu0 0
      %1937 = vmatpush2.bf16.msra.mxu0 %v1868
      %1938 = vmatprep.subr.bf16.mxu0 0
      %1939 = vmatpush2.bf16.msra.mxu0 %v1867
      %1940 = vmatprep.subr.bf16.mxu0 0
      %1941 = vmatpush2.bf16.msra.mxu0 %v1866
      %1942 = vmatprep.subr.bf16.mxu0 0
      %1943 = vmatpush2.bf16.msra.mxu0 %v1865
      %1944 = vmatprep.subr.bf16.mxu0 0
      %1945 = vmatpush2.bf16.msra.mxu0 %v1864
      %1946 = vmatprep.subr.bf16.mxu0 0
      %1947 = vmatpush2.bf16.msra.mxu0 %v1863
      %1948 = vmatprep.subr.bf16.mxu0 0
      %1949 = vmatpush2.bf16.msra.mxu0 %v1862
      %1950 = vmatprep.mubr.bf16.mxu0 %v1723
      %1951 = vmatmul.mubr.bf16.gmra.mxu0 %v1722
      %v1952 = vpop.f32.mrf.mxu0
      %v1953 = vadd.f32 0.0, %v1952
      %v1954 = vpop.f32.mrf.mxu0
      %v1955 = vpop.f32.mrf.mxu0
      %v1956 = vpop.f32.mrf.mxu0
      %1957 = vdwg.mxu0
      %1958 = vmatprep.subr.bf16.mxu0 0
      %1959 = vmatpush1.bf16.msra.mxu0 %v1877
      %1960 = vmatprep.subr.bf16.mxu0 0
      %1961 = vmatpush1.bf16.msra.mxu0 %v1876
      %1962 = vmatprep.subr.bf16.mxu0 0
      %1963 = vmatpush1.bf16.msra.mxu0 %v1875
      %1964 = vmatprep.subr.bf16.mxu0 0
      %1965 = vmatpush1.bf16.msra.mxu0 %v1874
      %1966 = vmatprep.subr.bf16.mxu0 0
      %1967 = vmatpush1.bf16.msra.mxu0 %v1873
      %1968 = vmatprep.subr.bf16.mxu0 0
      %1969 = vmatpush1.bf16.msra.mxu0 %v1872
      %1970 = vmatprep.subr.bf16.mxu0 0
      %1971 = vmatpush1.bf16.msra.mxu0 %v1871
      %1972 = vmatprep.subr.bf16.mxu0 0
      %1973 = vmatpush1.bf16.msra.mxu0 %v1870
      %1974 = vmatprep.subr.bf16.mxu0 0
      %1975 = vmatpush2.bf16.msra.mxu0 %v1885
      %1976 = vmatprep.subr.bf16.mxu0 0
      %1977 = vmatpush2.bf16.msra.mxu0 %v1884
      %1978 = vmatprep.subr.bf16.mxu0 0
      %1979 = vmatpush2.bf16.msra.mxu0 %v1883
      %1980 = vmatprep.subr.bf16.mxu0 0
      %1981 = vmatpush2.bf16.msra.mxu0 %v1882
      %1982 = vmatprep.subr.bf16.mxu0 0
      %1983 = vmatpush2.bf16.msra.mxu0 %v1881
      %1984 = vmatprep.subr.bf16.mxu0 0
      %1985 = vmatpush2.bf16.msra.mxu0 %v1880
      %1986 = vmatprep.subr.bf16.mxu0 0
      %1987 = vmatpush2.bf16.msra.mxu0 %v1879
      %1988 = vmatprep.subr.bf16.mxu0 0
      %1989 = vmatpush2.bf16.msra.mxu0 %v1878
      %1990 = vmatprep.mubr.bf16.mxu0 %v1725
      %1991 = vmatmul.mubr.bf16.gmra.mxu0 %v1724
      %v1992 = vpop.f32.mrf.mxu0
      %v1993 = vadd.f32 %v1953, %v1992
      %v1994 = vpop.f32.mrf.mxu0
      %v1995 = vpop.f32.mrf.mxu0
      %v1996 = vpop.f32.mrf.mxu0
      %1997 = vdwg.mxu0
      %v1998 = vadd.f32 %v1330, %v1993
      %v1999 = vlaneseq
      %v2000 = vshrl.u32 %v1999, 7
      %v2001 = vsub.s32 2, %v2000
      %v2002 = vrot.slane %v463, %v2001
      %v2003 = vadd.f32 %v1998, %v2002
      %2004 = vadd.xlane.f32.xlu0 %v2003
      %v2005 = vpop.xlane.xlu0 %2004
      %v2006 = vmul.f32 %v2005, %v1311
      %v2007 = vsub.f32 %v2003, %v2006
      %v2008 = vmul.f32 %v2007, %v2007
      %2009 = vadd.xlane.f32.xlu0 %v2008
      %v2010 = vpop.xlane.xlu0 %2009
      %v2011 = vmul.f32 %v2010, %v1311
      %v2012 = vadd.f32 %v2011, 1e-12
      %v2013 = vrsqrt.pop %v2012
      %v2014 = vmul.f32 %v2007, %v2013
      %v2015 = vlaneseq
      %v2016 = vshrl.u32 %v2015, 7
      %v2017 = vsub.s32 3, %v2016
      %v2018 = vrot.slane %v463, %v2017
      %v2019 = vmul.f32 %v2014, %v2018
      %v2020 = vlaneseq
      %v2021 = vshrl.u32 %v2020, 7
      %v2022 = vsub.s32 4, %v2021
      %v2023 = vrot.slane %v463, %v2022
      %v2024 = vadd.f32 %v2019, %v2023
      %2025 = vst [vmem:[%s426] sm:$0xff] %v2024
      %p2026 = scmp.lt.s32.totalorder %s23, 1
      %s2027 = scalar_select %p2026, %s23, 1
      %s2028 = smul.addr %s2027, 8
      %s2029 = scalar_lea.vmem %s8, %s2028
      // Predicated region
      $region57: #{blip_forward.4} parent=51 // pred_check
        %p2030 = pneg %p252
      $region58: #{blip_forward.4} parent=51 // pred_check_branch
        %2032 = sbr.rel (%p2030) target = $region60
      $region59: #{blip_forward.4} parent=51 // pred_region
        _
      $region60: #{blip_forward.4} parent=51 // pred_fallthru
        _
    $region52: #{blip_forward.4} parent=5 // pred_fallthru
      _
    %p2033 = scmp.le.s32.totalorder 2, %s14
    // Predicated region
    $region61: #{blip_forward.4} parent=5 // pred_check
      %p2034 = pneg %p2033
    $region62: #{blip_forward.4} parent=5 // pred_check_branch
      %2036 = sbr.rel (%p2034) target = $region64
    $region63: #{blip_forward.4} parent=5 // pred_region
      %s2037 = ssub.s32 %s14, 2
      // Predicated region
      $region65: #{blip_forward.4} parent=63 // pred_check
        %p2038 = pneg %p258
      $region66: #{blip_forward.4} parent=63 // pred_check_branch
        %2040 = sbr.rel (%p2038) target = $region68
      $region67: #{blip_forward.4} parent=63 // pred_region
        %p2041 = scmp.lt.s32.totalorder %s25, 1
        %s2042 = scalar_select %p2041, %s25, 1
        %s2043 = smul.addr %s2042, 8
        %s2044 = scalar_lea.vmem %s8, %s2043
      $region68: #{blip_forward.4} parent=63 // pred_fallthru
        _
    $region64: #{blip_forward.4} parent=5 // pred_fallthru
      _
  $region6: #{blip_forward.4} parent=0 // loop_footer
    %s18 = sadd.s32 1, %s14
  $region7: #{blip_forward.4} parent=0 // loop_footer_branch
    %13 = sbr.rel target = $region3
  $region8: #{blip_forward.4} parent=0 // loop_exit
    _

// kernel: blip_forward.3
$region0: #{blip_forward.3}
  #allocation0 [shape = 'u32[]', space=smem, size = 0x4, offset = 0x4, fixed_abs, tag = 'smem constant byte address 0x4 - core index']
  #allocation1 [shape = 'u32[144,128]{1,0:T(1,128)}', space=vmem, size = 0x12000, scoped, tag = 'internal scratch']
  #allocation2 [shape = 'f32[5,128]{1,0:T(8,128)}', space=vmem, size = 0x1000, scoped, tag = 'scratch operand']
  %s0 = inlined_call_operand.vmem [shape: f32[2,5,192], index: 0, kind: input, shape index: {}]
  %s1 = inlined_call_operand.vmem [shape: bf16[192,128], index: 1, kind: input, shape index: {}]
  %s2 = inlined_call_operand.vmem [shape: f32[5,128], index: 2, kind: input, shape index: {}]
  %s3 = inlined_call_operand.vmem [shape: bf16[2,128,384], index: 3, kind: input, shape index: {}]
  %s4 = inlined_call_operand.hbm [shape: bf16[2,128,128], index: 4, kind: input, shape index: {}]
  %s5 = inlined_call_operand.vmem [shape: bf16[2,128,512], index: 5, kind: input, shape index: {}]
  %s6 = inlined_call_operand.hbm [shape: bf16[2,512,128], index: 6, kind: input, shape index: {}]
  %s7 = inlined_call_operand.hbm [shape: f32[2,16,128], index: 7, kind: input, shape index: {}]
  %s8 = inlined_call_operand.vmem [shape: f32[2,128], index: 8, kind: input, shape index: {}]
  %s9 = inlined_call_operand.vmem [shape: f32[2,5,128], index: 9, kind: output, shape index: {}]
  %s10 = sld [smem:[#allocation0]]
  $region89: #{blip_forward.3} parent=0
    _
  %s12 = ssub.s32 1, %s10
  %s13 = scalar_select 0, %s12, %s10
  $region1: #{blip_forward.3} parent=0
    #allocation3 [shape = 'u8[65536]{0}', space=vmem, size = 0x10000, scoped, tag = 'input window, operand 4']
    #allocation4 [shape = 's32[2]{0}', space=sflag, size = 0x8, scoped, tag = 'scoped memory for blip_forward.3']
    #allocation5 [shape = 'u8[262144]{0}', space=vmem, size = 0x40000, scoped, tag = 'input window, operand 6']
    #allocation6 [shape = 's32[2]{0}', space=sflag, size = 0x8, scoped, tag = 'scoped memory for blip_forward.3']
    #allocation7 [shape = 'u8[16384]{0}', space=vmem, size = 0x4000, scoped, tag = 'input window, operand 7']
    %14 = vsyncpa [#allocation4], 0
    %s15 = scalar_lea.sflag [#allocation4], 1
    %16 = vsyncpa %s15, 0
    %17 = vsyncpa [#allocation6], 0
    %s18 = scalar_lea.sflag [#allocation6], 1
    %19 = vsyncpa %s18, 0
    loop: start=0, step=1, limit=6
    $region2: #{blip_forward.3} parent=1 // loop_pre_header
      _
    $region3: #{blip_forward.3} parent=1 // loop_header
      %s21 = sphi 0, %s25
      %p22 = scmp.ge.s32.totalorder %s21, 6
      %s28 = sphi 0, %s40
      %s29 = sphi 0, %s36
      %s30 = sphi 0, %s28
      %s31 = sphi 0, %s29
      %s32 = sphi 0, %s30
      %s33 = sphi 0, %s31
      %s43 = sphi 0, %s45
      %s46 = sphi 0, %s43
      %s47 = sphi 0, %s46
      %s63 = sphi 0, %s47
      %s67 = sphi 0, %s67
      %s69 = sphi 0, %s67
      %s70 = sphi 0, %s69
      %s84 = sphi 0, %s70
      %s88 = sphi 0, %s88
      %s90 = sphi 0, %s88
      %s91 = sphi 0, %s90
      %s105 = sphi 0, %s91
      %s111 = sphi 0, %s113
      %s114 = sphi 0, %s111
      %s115 = sphi 0, %s114
      %s131 = sphi 0, %s115
      %s137 = sphi 0, %s139
      %s140 = sphi 0, %s137
      %s141 = sphi 0, %s140
      %s157 = sphi 0, %s141
      %s163 = sphi 0, %s165
      %s166 = sphi 0, %s163
      %s167 = sphi 0, %s166
      %s183 = sphi 0, %s167
      %s189 = sphi 0, %s191
      %s192 = sphi 0, %s189
      %s193 = sphi 0, %s192
      %s209 = sphi 0, %s193
      %s215 = sphi 0, %s217
      %s218 = sphi 0, %s215
      %s219 = sphi 0, %s218
      %s235 = sphi 0, %s219
      %s239 = sphi 0, %s239
      %s241 = sphi 0, %s239
      %s242 = sphi 0, %s241
      %s256 = sphi 0, %s242
      %s262 = sphi 0, %s264
      %s265 = sphi 0, %s262
      %s266 = sphi 0, %s265
      %s282 = sphi 0, %s266
    $region4: #{blip_forward.3} parent=1 // loop_header_branch
      %24 = sbr.rel (%p22) target = $region8
    $region5: #{blip_forward.3} parent=1 // loop_body
      %s26 = ssub.s32 %s21, 1
      %s27 = ssub.s32 %s21, 2
      %s34 = sadd.s32 1, %s29
      %p35 = scmp.ge.s32.totalorder %s34, 2
      %s36 = scalar_select %p35, 0, %s34
      %s37 = sadd.s32 1, %s28
      %s38 = scalar_select %p35, %s37, %s28
      %p39 = scmp.ge.s32.totalorder %s38, 2
      %s40 = scalar_select %p39, 0, %s38
      %s41 = ssub.s32 %s28, %s40
      %p42 = scmp.eq.s32.totalorder %s41, 0
      %s44 = sadd.s32 %s43, 1
      %s45 = scalar_select %p42, %s43, %s44
      %p48 = pneg %p42
      %p49 = scmp.eq.s32.totalorder %s21, 3
      %p50 = por %p48, %p49
      %p51 = scmp.ne.s32.totalorder %s43, %s46
      %p52 = scmp.eq.s32.totalorder %s21, 0
      %p53 = por %p51, %p52
      %p54 = scmp.ne.s32.totalorder %s43, %s46
      %p55 = scmp.eq.s32.totalorder %s26, 3
      %p56 = por %p54, %p55
      %p57 = scmp.ne.s32.totalorder %s46, %s47
      %p58 = scmp.eq.s32.totalorder %s26, 0
      %p59 = por %p57, %p58
      %p60 = scmp.ne.s32.totalorder %s46, %s47
      %p61 = scmp.eq.s32.totalorder %s27, 3
      %p62 = por %p60, %p61
      %p64 = scmp.ne.s32.totalorder %s47, %s63
      %p65 = scmp.eq.s32.totalorder %s27, 0
      %p66 = por %p64, %p65
      %s68 = sadd.s32 %s67, 1
      %p71 = scmp.eq.s32.totalorder %s21, 3
      %p72 = scmp.ne.s32.totalorder %s67, %s69
      %p73 = scmp.eq.s32.totalorder %s21, 0
      %p74 = por %p72, %p73
      %p75 = scmp.ne.s32.totalorder %s67, %s69
      %p76 = scmp.eq.s32.totalorder %s26, 3
      %p77 = por %p75, %p76
      %p78 = scmp.ne.s32.totalorder %s69, %s70
      %p79 = scmp.eq.s32.totalorder %s26, 0
      %p80 = por %p78, %p79
      %p81 = scmp.ne.s32.totalorder %s69, %s70
      %p82 = scmp.eq.s32.totalorder %s27, 3
      %p83 = por %p81, %p82
      %p85 = scmp.ne.s32.totalorder %s70, %s84
      %p86 = scmp.eq.s32.totalorder %s27, 0
      %p87 = por %p85, %p86
      %s89 = sadd.s32 %s88, 1
      %p92 = scmp.eq.s32.totalorder %s21, 3
      %p93 = scmp.ne.s32.totalorder %s88, %s90
      %p94 = scmp.eq.s32.totalorder %s21, 0
      %p95 = por %p93, %p94
      %p96 = scmp.ne.s32.totalorder %s88, %s90
      %p97 = scmp.eq.s32.totalorder %s26, 3
      %p98 = por %p96, %p97
      %p99 = scmp.ne.s32.totalorder %s90, %s91
      %p100 = scmp.eq.s32.totalorder %s26, 0
      %p101 = por %p99, %p100
      %p102 = scmp.ne.s32.totalorder %s90, %s91
      %p103 = scmp.eq.s32.totalorder %s27, 3
      %p104 = por %p102, %p103
      %p106 = scmp.ne.s32.totalorder %s91, %s105
      %p107 = scmp.eq.s32.totalorder %s27, 0
      %p108 = por %p106, %p107
      %s109 = ssub.s32 %s29, %s36
      %p110 = scmp.eq.s32.totalorder %s109, 0
      %s112 = sadd.s32 %s111, 1
      %s113 = scalar_select %p110, %s111, %s112
      %p116 = pneg %p110
      %p117 = scmp.eq.s32.totalorder %s21, 3
      %p118 = por %p116, %p117
      %p119 = scmp.ne.s32.totalorder %s111, %s114
      %p120 = scmp.eq.s32.totalorder %s21, 0
      %p121 = por %p119, %p120
      %p122 = scmp.ne.s32.totalorder %s111, %s114
      %p123 = scmp.eq.s32.totalorder %s26, 3
      %p124 = por %p122, %p123
      %p125 = scmp.ne.s32.totalorder %s114, %s115
      %p126 = scmp.eq.s32.totalorder %s26, 0
      %p127 = por %p125, %p126
      %p128 = scmp.ne.s32.totalorder %s114, %s115
      %p129 = scmp.eq.s32.totalorder %s27, 3
      %p130 = por %p128, %p129
      %p132 = scmp.ne.s32.totalorder %s115, %s131
      %p133 = scmp.eq.s32.totalorder %s27, 0
      %p134 = por %p132, %p133
      %s135 = ssub.s32 %s29, %s36
      %p136 = scmp.eq.s32.totalorder %s135, 0
      %s138 = sadd.s32 %s137, 1
      %s139 = scalar_select %p136, %s137, %s138
      %p142 = pneg %p136
      %p143 = scmp.eq.s32.totalorder %s21, 3
      %p144 = por %p142, %p143
      %p145 = scmp.ne.s32.totalorder %s137, %s140
      %p146 = scmp.eq.s32.totalorder %s21, 0
      %p147 = por %p145, %p146
      %p148 = scmp.ne.s32.totalorder %s137, %s140
      %p149 = scmp.eq.s32.totalorder %s26, 3
      %p150 = por %p148, %p149
      %p151 = scmp.ne.s32.totalorder %s140, %s141
      %p152 = scmp.eq.s32.totalorder %s26, 0
      %p153 = por %p151, %p152
      %p154 = scmp.ne.s32.totalorder %s140, %s141
      %p155 = scmp.eq.s32.totalorder %s27, 3
      %p156 = por %p154, %p155
      %p158 = scmp.ne.s32.totalorder %s141, %s157
      %p159 = scmp.eq.s32.totalorder %s27, 0
      %p160 = por %p158, %p159
      %s161 = ssub.s32 %s29, %s36
      %p162 = scmp.eq.s32.totalorder %s161, 0
      %s164 = sadd.s32 %s163, 1
      %s165 = scalar_select %p162, %s163, %s164
      %p168 = pneg %p162
      %p169 = scmp.eq.s32.totalorder %s21, 3
      %p170 = por %p168, %p169
      %p171 = scmp.ne.s32.totalorder %s163, %s166
      %p172 = scmp.eq.s32.totalorder %s21, 0
      %p173 = por %p171, %p172
      %p174 = scmp.ne.s32.totalorder %s163, %s166
      %p175 = scmp.eq.s32.totalorder %s26, 3
      %p176 = por %p174, %p175
      %p177 = scmp.ne.s32.totalorder %s166, %s167
      %p178 = scmp.eq.s32.totalorder %s26, 0
      %p179 = por %p177, %p178
      %p180 = scmp.ne.s32.totalorder %s166, %s167
      %p181 = scmp.eq.s32.totalorder %s27, 3
      %p182 = por %p180, %p181
      %p184 = scmp.ne.s32.totalorder %s167, %s183
      %p185 = scmp.eq.s32.totalorder %s27, 0
      %p186 = por %p184, %p185
      %s187 = ssub.s32 %s29, %s36
      %p188 = scmp.eq.s32.totalorder %s187, 0
      %s190 = sadd.s32 %s189, 1
      %s191 = scalar_select %p188, %s189, %s190
      %p194 = pneg %p188
      %p195 = scmp.eq.s32.totalorder %s21, 3
      %p196 = por %p194, %p195
      %p197 = scmp.ne.s32.totalorder %s189, %s192
      %p198 = scmp.eq.s32.totalorder %s21, 0
      %p199 = por %p197, %p198
      %p200 = scmp.ne.s32.totalorder %s189, %s192
      %p201 = scmp.eq.s32.totalorder %s26, 3
      %p202 = por %p200, %p201
      %p203 = scmp.ne.s32.totalorder %s192, %s193
      %p204 = scmp.eq.s32.totalorder %s26, 0
      %p205 = por %p203, %p204
      %p206 = scmp.ne.s32.totalorder %s192, %s193
      %p207 = scmp.eq.s32.totalorder %s27, 3
      %p208 = por %p206, %p207
      %p210 = scmp.ne.s32.totalorder %s193, %s209
      %p211 = scmp.eq.s32.totalorder %s27, 0
      %p212 = por %p210, %p211
      %s213 = ssub.s32 %s29, %s36
      %p214 = scmp.eq.s32.totalorder %s213, 0
      %s216 = sadd.s32 %s215, 1
      %s217 = scalar_select %p214, %s215, %s216
      %p220 = pneg %p214
      %p221 = scmp.eq.s32.totalorder %s21, 3
      %p222 = por %p220, %p221
      %p223 = scmp.ne.s32.totalorder %s215, %s218
      %p224 = scmp.eq.s32.totalorder %s21, 0
      %p225 = por %p223, %p224
      %p226 = scmp.ne.s32.totalorder %s215, %s218
      %p227 = scmp.eq.s32.totalorder %s26, 3
      %p228 = por %p226, %p227
      %p229 = scmp.ne.s32.totalorder %s218, %s219
      %p230 = scmp.eq.s32.totalorder %s26, 0
      %p231 = por %p229, %p230
      %p232 = scmp.ne.s32.totalorder %s218, %s219
      %p233 = scmp.eq.s32.totalorder %s27, 3
      %p234 = por %p232, %p233
      %p236 = scmp.ne.s32.totalorder %s219, %s235
      %p237 = scmp.eq.s32.totalorder %s27, 0
      %p238 = por %p236, %p237
      %s240 = sadd.s32 %s239, 1
      %p243 = scmp.eq.s32.totalorder %s21, 3
      %p244 = scmp.ne.s32.totalorder %s239, %s241
      %p245 = scmp.eq.s32.totalorder %s21, 0
      %p246 = por %p244, %p245
      %p247 = scmp.ne.s32.totalorder %s239, %s241
      %p248 = scmp.eq.s32.totalorder %s26, 3
      %p249 = por %p247, %p248
      %p250 = scmp.ne.s32.totalorder %s241, %s242
      %p251 = scmp.eq.s32.totalorder %s26, 0
      %p252 = por %p250, %p251
      %p253 = scmp.ne.s32.totalorder %s241, %s242
      %p254 = scmp.eq.s32.totalorder %s27, 3
      %p255 = por %p253, %p254
      %p257 = scmp.ne.s32.totalorder %s242, %s256
      %p258 = scmp.eq.s32.totalorder %s27, 0
      %p259 = por %p257, %p258
      %s260 = ssub.s32 %s28, %s40
      %p261 = scmp.eq.s32.totalorder %s260, 0
      %s263 = sadd.s32 %s262, 1
      %s264 = scalar_select %p261, %s262, %s263
      %p267 = pneg %p261
      %p268 = scmp.eq.s32.totalorder %s21, 3
      %p269 = por %p267, %p268
      %p270 = scmp.ne.s32.totalorder %s262, %s265
      %p271 = scmp.eq.s32.totalorder %s21, 0
      %p272 = por %p270, %p271
      %p273 = scmp.ne.s32.totalorder %s262, %s265
      %p274 = scmp.eq.s32.totalorder %s26, 3
      %p275 = por %p273, %p274
      %p276 = scmp.ne.s32.totalorder %s265, %s266
      %p277 = scmp.eq.s32.totalorder %s26, 0
      %p278 = por %p276, %p277
      %p279 = scmp.ne.s32.totalorder %s265, %s266
      %p280 = scmp.eq.s32.totalorder %s27, 3
      %p281 = por %p279, %p280
      %p283 = scmp.ne.s32.totalorder %s266, %s282
      %p284 = scmp.eq.s32.totalorder %s27, 0
      %p285 = por %p283, %p284
      %p286 = scmp.le.s32.totalorder 1, %s21
      %p287 = scmp.lt.s32.totalorder %s21, 5
      %p288 = pnand %p286, %p287
      %p289 = pneg %p288
      // Predicated region
      $region9: #{blip_forward.3} parent=5 // pred_check
        _
      $region10: #{blip_forward.3} parent=5 // pred_check_branch
        %291 = sbr.rel (%p288) target = $region12
      $region11: #{blip_forward.3} parent=5 // pred_region
        %s292 = ssub.s32 %s21, 1
        // Predicated region
        $region13: #{blip_forward.3} parent=11 // pred_check
          %p293 = pneg %p80
        $region14: #{blip_forward.3} parent=11 // pred_check_branch
          %295 = sbr.rel (%p293) target = $region16
        $region15: #{blip_forward.3} parent=11 // pred_region
          _
        $region16: #{blip_forward.3} parent=11 // pred_fallthru
          _
        // Predicated region
        $region17: #{blip_forward.3} parent=11 // pred_check
          %p296 = pneg %p101
        $region18: #{blip_forward.3} parent=11 // pred_check_branch
          %298 = sbr.rel (%p296) target = $region20
        $region19: #{blip_forward.3} parent=11 // pred_region
          _
        $region20: #{blip_forward.3} parent=11 // pred_fallthru
          _
        // Predicated region
        $region21: #{blip_forward.3} parent=11 // pred_check
          %p299 = pneg %p252
        $region22: #{blip_forward.3} parent=11 // pred_check_branch
          %301 = sbr.rel (%p299) target = $region24
        $region23: #{blip_forward.3} parent=11 // pred_region
          _
        $region24: #{blip_forward.3} parent=11 // pred_fallthru
          _
      $region12: #{blip_forward.3} parent=5 // pred_fallthru
        _
      %p302 = scmp.lt.s32.totalorder %s21, 4
      // Predicated region
      $region25: #{blip_forward.3} parent=5 // pred_check
        %p303 = pneg %p302
      $region26: #{blip_forward.3} parent=5 // pred_check_branch
        %305 = sbr.rel (%p303) target = $region28
      $region27: #{blip_forward.3} parent=5 // pred_region
        // Predicated region
        $region29: #{blip_forward.3} parent=27 // pred_check
          %p306 = pneg %p53
        $region30: #{blip_forward.3} parent=27 // pred_check_branch
          %308 = sbr.rel (%p306) target = $region32
        $region31: #{blip_forward.3} parent=27 // pred_region
          %p309 = scmp.lt.s32.totalorder %s28, 1
          %s310 = scalar_select %p309, %s28, 1
          %s311 = smul.addr %s310, 2
          %s312 = smul.addr %s311, 8
          %s313 = scalar_lea.vmem %s0, %s312
        $region32: #{blip_forward.3} parent=27 // pred_fallthru
          _
        // Predicated region
        $region33: #{blip_forward.3} parent=27 // pred_check
          %p314 = pneg %p121
        $region34: #{blip_forward.3} parent=27 // pred_check_branch
          %316 = sbr.rel (%p314) target = $region36
        $region35: #{blip_forward.3} parent=27 // pred_region
          %p317 = scmp.lt.s32.totalorder %s29, 1
          %s318 = scalar_select %p317, %s29, 1
          %s319 = smul.addr %s318, 48
          %s320 = smul.addr %s319, 4
          %s321 = scalar_lea.vmem %s3, %s320
        $region36: #{blip_forward.3} parent=27 // pred_fallthru
          _
        // Predicated region
        $region37: #{blip_forward.3} parent=27 // pred_check
          %p322 = pneg %p147
        $region38: #{blip_forward.3} parent=27 // pred_check_branch
          %324 = sbr.rel (%p322) target = $region40
        $region39: #{blip_forward.3} parent=27 // pred_region
          %s325 = sand.u32 %s137, 1
          %s326 = scalar_lea.sflag [#allocation4], %s325
          %s327 = sand.u32 %s137, 1
          %s328 = smul.addr %s327, 64
          %s329 = scalar_lea.vmem [#allocation3], %s328
          %s331 = ssub.s32 1024, 1024
          %332 = vsyncadd %s326, %s331
          %s333 = smul.addr %s29, 16
          %s334 = smul.addr %s333, 64
          %s335 = scalar_lea.hbm %s4, %s334
          %s336 = sshll.u32 %s329, 4
          %s337 = int_to_ptr.vmem [resolvable:$true] %s336
          %342 = dma.hbm_to_vmem [thread:$0]  %s335, 1024, %s337, %s326, 64, 64, 4
        $region40: #{blip_forward.3} parent=27 // pred_fallthru
          _
        // Predicated region
        $region41: #{blip_forward.3} parent=27 // pred_check
          %p343 = pneg %p173
        $region42: #{blip_forward.3} parent=27 // pred_check_branch
          %345 = sbr.rel (%p343) target = $region44
        $region43: #{blip_forward.3} parent=27 // pred_region
          %p346 = scmp.lt.s32.totalorder %s29, 1
          %s347 = scalar_select %p346, %s29, 1
          %s348 = smul.addr %s347, 64
          %s349 = smul.addr %s348, 4
          %s350 = scalar_lea.vmem %s5, %s349
        $region44: #{blip_forward.3} parent=27 // pred_fallthru
          _
        // Predicated region
        $region45: #{blip_forward.3} parent=27 // pred_check
          %p351 = pneg %p199
        $region46: #{blip_forward.3} parent=27 // pred_check_branch
          %353 = sbr.rel (%p351) target = $region48
        $region47: #{blip_forward.3} parent=27 // pred_region
          %s354 = sand.u32 %s21, 1
          %s355 = scalar_lea.sflag [#allocation6], %s354
          %s356 = sand.u32 %s189, 1
          %s357 = smul.addr %s356, 256
          %s358 = scalar_lea.vmem [#allocation5], %s357
          %s360 = ssub.s32 4096, 4096
          %361 = vsyncadd %s355, %s360
          %s362 = smul.addr %s29, 64
          %s363 = smul.addr %s362, 64
          %s364 = scalar_lea.hbm %s6, %s363
          %s365 = sshll.u32 %s358, 4
          %s366 = int_to_ptr.vmem [resolvable:$true] %s365
          %371 = dma.hbm_to_vmem [thread:$0]  %s364, 4096, %s366, %s355, 64, 64, 4
        $region48: #{blip_forward.3} parent=27 // pred_fallthru
          _
        // Predicated region
        $region49: #{blip_forward.3} parent=27 // pred_check
          %p372 = pneg %p225
        $region50: #{blip_forward.3} parent=27 // pred_check_branch
          %374 = sbr.rel (%p372) target = $region52
        $region51: #{blip_forward.3} parent=27 // pred_region
          %s375 = sand.u32 %s21, 1
          %s376 = scalar_lea.sflag [#allocation6], %s375
          %s377 = sand.u32 %s215, 1
          %s378 = smul.addr %s377, 16
          %s379 = scalar_lea.vmem [#allocation7], %s378
          %s381 = ssub.s32 256, 256
          %382 = vsyncadd %s376, %s381
          %s383 = smul.addr %s29, 2
          %s384 = smul.addr %s383, 128
          %s385 = scalar_lea.hbm %s7, %s384
          %s386 = sshll.u32 %s379, 4
          %s387 = int_to_ptr.vmem [resolvable:$true] %s386
          %392 = dma.hbm_to_vmem [thread:$0]  %s385, 256, %s387, %s376, 128, 128, 8
        $region52: #{blip_forward.3} parent=27 // pred_fallthru
          _
      $region28: #{blip_forward.3} parent=5 // pred_fallthru
        _
      %p393 = scmp.le.s32.totalorder 1, %s21
      %p394 = scmp.lt.s32.totalorder %s21, 5
      %p395 = pnand %p393, %p394
      %p396 = pneg %p395
      // Predicated region
      $region53: #{blip_forward.3} parent=5 // pred_check
        _
      $region54: #{blip_forward.3} parent=5 // pred_check_branch
        %398 = sbr.rel (%p395) target = $region56
      $region55: #{blip_forward.3} parent=5 // pred_region
        %s399 = ssub.s32 %s21, 1
        %s400 = sand.u32 %s140, 1
        %s401 = scalar_lea.sflag [#allocation4], %s400
        %s402 = sand.u32 %s140, 1
        %s403 = smul.addr %s402, 64
        %s404 = scalar_lea.vmem [#allocation3], %s403
        // Predicated region
        $region57: #{blip_forward.3} parent=55 // pred_check
          %p405 = pneg %p153
        $region58: #{blip_forward.3} parent=55 // pred_check_branch
          %407 = sbr.rel (%p405) target = $region60
        $region59: #{blip_forward.3} parent=55 // pred_region
          %408 = dma.done %s401, 1024
        $region60: #{blip_forward.3} parent=55 // pred_fallthru
          _
        %s409 = sand.u32 %s26, 1
        %s410 = scalar_lea.sflag [#allocation6], %s409
        %s411 = sand.u32 %s192, 1
        %s412 = smul.addr %s411, 256
        %s413 = scalar_lea.vmem [#allocation5], %s412
        // Predicated region
        $region61: #{blip_forward.3} parent=55 // pred_check
          %p414 = pneg %p205
        $region62: #{blip_forward.3} parent=55 // pred_check_branch
          %416 = sbr.rel (%p414) target = $region64
        $region63: #{blip_forward.3} parent=55 // pred_region
          %417 = dma.done %s410, 4096
        $region64: #{blip_forward.3} parent=55 // pred_fallthru
          _
        %s418 = sand.u32 %s26, 1
        %s419 = scalar_lea.sflag [#allocation6], %s418
        %s420 = sand.u32 %s218, 1
        %s421 = smul.addr %s420, 16
        %s422 = scalar_lea.vmem [#allocation7], %s421
        // Predicated region
        $region65: #{blip_forward.3} parent=55 // pred_check
          %p423 = pneg %p231
        $region66: #{blip_forward.3} parent=55 // pred_check_branch
          %425 = sbr.rel (%p423) target = $region68
        $region67: #{blip_forward.3} parent=55 // pred_region
          %426 = dma.done %s419, 256
        $region68: #{blip_forward.3} parent=55 // pred_fallthru
          _
        %p427 = scmp.lt.s32.totalorder %s30, 1
        %s428 = scalar_select %p427, %s30, 1
        %s429 = smul.addr %s428, 2
        %s430 = smul.addr %s429, 8
        %s431 = scalar_lea.vmem %s0, %s430
        %p432 = pneg %p59
        %p433 = pneg %p56
        %p434 = pneg %p80
        %p435 = pneg %p77
        %p436 = pneg %p101
        %p437 = pneg %p98
        %p438 = scmp.lt.s32.totalorder %s31, 1
        %s439 = scalar_select %p438, %s31, 1
        %s440 = smul.addr %s439, 48
        %s441 = smul.addr %s440, 4
        %s442 = scalar_lea.vmem %s3, %s441
        %p443 = pneg %p127
        %p444 = pneg %p124
        %s445 = sand.u32 %s140, 1
        %s446 = scalar_lea.sflag [#allocation4], %s445
        %s447 = sand.u32 %s140, 1
        %s448 = smul.addr %s447, 64
        %s449 = scalar_lea.vmem [#allocation3], %s448
        %p450 = pneg %p153
        %p451 = pneg %p150
        %p452 = scmp.lt.s32.totalorder %s31, 1
        %s453 = scalar_select %p452, %s31, 1
        %s454 = smul.addr %s453, 64
        %s455 = smul.addr %s454, 4
        %s456 = scalar_lea.vmem %s5, %s455
        %p457 = pneg %p179
        %p458 = pneg %p176
        %s459 = sand.u32 %s26, 1
        %s460 = scalar_lea.sflag [#allocation6], %s459
        %s461 = sand.u32 %s192, 1
        %s462 = smul.addr %s461, 256
        %s463 = scalar_lea.vmem [#allocation5], %s462
        %p464 = pneg %p205
        %p465 = pneg %p202
        %s466 = sand.u32 %s26, 1
        %s467 = scalar_lea.sflag [#allocation6], %s466
        %s468 = sand.u32 %s218, 1
        %s469 = smul.addr %s468, 16
        %s470 = scalar_lea.vmem [#allocation7], %s469
        %p471 = pneg %p231
        %p472 = pneg %p228
        %p473 = pneg %p252
        %p474 = pneg %p249
        %p475 = pneg %p278
        %p476 = pneg %p275
        %p477 = scmp.lt.s32.totalorder %s30, 1
        %s478 = scalar_select %p477, %s30, 1
        %s479 = smul.addr %s478, 8
        %s480 = scalar_lea.vmem %s9, %s479
        %p481 = scmp.lt.s32.totalorder %s30, 1
        %s482 = scalar_select %p481, %s30, 1
        %s483 = smul.addr %s482, 2
        %s484 = smul.addr %s483, 8
        %s485 = scalar_lea.vmem %s0, %s484
        %p486 = scmp.lt.s32.totalorder %s31, 1
        %s487 = scalar_select %p486, %s31, 1
        %s488 = smul.addr %s487, 48
        %s489 = smul.addr %s488, 4
        %s490 = scalar_lea.vmem %s3, %s489
        %p491 = scmp.lt.s32.totalorder %s31, 1
        %s492 = scalar_select %p491, %s31, 1
        %s493 = smul.addr %s492, 64
        %s494 = smul.addr %s493, 4
        %s495 = scalar_lea.vmem %s5, %s494
        %p496 = scmp.lt.s32.totalorder %s30, 1
        %s497 = scalar_select %p496, %s30, 1
        %s498 = smul.addr %s497, 8
        %s499 = scalar_lea.vmem %s9, %s498
        %p501 = scmp.eq.s32.totalorder %s31, 0
        // Predicated region
        $region69: #{blip_forward.3} parent=55 // pred_check
          %p502 = pneg %p501
        $region70: #{blip_forward.3} parent=55 // pred_check_branch
          %504 = sbr.rel (%p502) target = $region72
        $region71: #{blip_forward.3} parent=55 // pred_region
          %v505 = vld [vmem:[%s2] sm:$0x1f]
          %v506 = vld [vmem:[%s485] sm:$0x1f]
          %v507 = vld [vmem:[%s485 + $0x8] sm:$0x1f]
          %v508 = vld [vmem:[%s1] sm:$0xf]
          %v509 = vld [vmem:[%s1 + $0x4] sm:$0xf]
          %v510 = vld [vmem:[%s1 + $0x8] sm:$0xf]
          %v511 = vld [vmem:[%s1 + $0xc] sm:$0xf]
          %v512 = vld [vmem:[%s1 + $0x10] sm:$0xf]
          %v513 = vld [vmem:[%s1 + $0x14] sm:$0xf]
          %v514 = vld [vmem:[%s1 + $0x18] sm:$0xf]
          %v515 = vld [vmem:[%s1 + $0x1c] sm:$0xf]
          %v516 = vld [vmem:[%s1 + $0x20] sm:$0xf]
          %v517 = vld [vmem:[%s1 + $0x24] sm:$0xf]
          %v518 = vld [vmem:[%s1 + $0x28] sm:$0xf]
          %v519 = vld [vmem:[%s1 + $0x2c] sm:$0xf]
          %v520 = vld [vmem:[%s1 + $0x30] sm:$0xf]
          %v521 = vld [vmem:[%s1 + $0x34] sm:$0xf]
          %v522 = vld [vmem:[%s1 + $0x38] sm:$0xf]
          %v523 = vld [vmem:[%s1 + $0x3c] sm:$0xf]
          %v524 = vld [vmem:[%s1 + $0x40] sm:$0xf]
          %v525 = vld [vmem:[%s1 + $0x44] sm:$0xf]
          %v526 = vld [vmem:[%s1 + $0x48] sm:$0xf]
          %v527 = vld [vmem:[%s1 + $0x4c] sm:$0xf]
          %v528 = vld [vmem:[%s1 + $0x50] sm:$0xf]
          %v529 = vld [vmem:[%s1 + $0x54] sm:$0xf]
          %v530 = vld [vmem:[%s1 + $0x58] sm:$0xf]
          %v531 = vld [vmem:[%s1 + $0x5c] sm:$0xf]
          %v532 = vpack.c.bf16 %v506, %v506
          %v533 = vpack.c.bf16 %v507, %v507
          %v558 = vunpack.c.l.b16 %v508
          %v559 = vunpack.c.l.b16 %v509
          %v560 = vunpack.c.l.b16 %v510
          %v561 = vunpack.c.l.b16 %v511
          %v562 = vunpack.c.l.b16 %v512
          %v563 = vunpack.c.l.b16 %v513
          %v564 = vunpack.c.l.b16 %v514
          %v565 = vunpack.c.l.b16 %v515
          %v566 = vunpack.c.l.b16 %v516
          %v567 = vunpack.c.l.b16 %v517
          %v568 = vunpack.c.l.b16 %v518
          %v569 = vunpack.c.l.b16 %v519
          %v570 = vunpack.c.l.b16 %v520
          %v571 = vunpack.c.l.b16 %v521
          %v572 = vunpack.c.l.b16 %v522
          %v573 = vunpack.c.l.b16 %v523
          %v574 = vunpack.c.l.b16 %v524
          %v575 = vunpack.c.l.b16 %v525
          %v576 = vunpack.c.l.b16 %v526
          %v577 = vunpack.c.l.b16 %v527
          %v578 = vunpack.c.l.b16 %v528
          %v579 = vunpack.c.l.b16 %v529
          %v580 = vunpack.c.l.b16 %v530
          %v581 = vunpack.c.l.b16 %v531
          %v582 = vpack.c.b16 %v559, %v558
          %v583 = vpack.c.b16 %v561, %v560
          %v584 = vpack.c.b16 %v563, %v562
          %v585 = vpack.c.b16 %v565, %v564
          %v586 = vpack.c.b16 %v567, %v566
          %v587 = vpack.c.b16 %v569, %v568
          %v588 = vpack.c.b16 %v571, %v570
          %v589 = vpack.c.b16 %v573, %v572
          %v590 = vpack.c.b16 %v575, %v574
          %v591 = vpack.c.b16 %v577, %v576
          %v592 = vpack.c.b16 %v579, %v578
          %v593 = vpack.c.b16 %v581, %v580
          %vm606 = vcmask 523264
          %v608 = vsel %vm606, %v533, 0
          %610 = vmatprep.subr.bf16.mxu0 0
          %611 = vmatpush1.bf16.msra.mxu0 %v589
          %612 = vmatprep.subr.bf16.mxu0 0
          %613 = vmatpush1.bf16.msra.mxu0 %v588
          %614 = vmatprep.subr.bf16.mxu0 0
          %615 = vmatpush1.bf16.msra.mxu0 %v587
          %616 = vmatprep.subr.bf16.mxu0 0
          %617 = vmatpush1.bf16.msra.mxu0 %v586
          %618 = vmatprep.subr.bf16.mxu0 0
          %619 = vmatpush1.bf16.msra.mxu0 %v585
          %620 = vmatprep.subr.bf16.mxu0 0
          %621 = vmatpush1.bf16.msra.mxu0 %v584
          %622 = vmatprep.subr.bf16.mxu0 0
          %623 = vmatpush1.bf16.msra.mxu0 %v583
          %624 = vmatprep.subr.bf16.mxu0 0
          %625 = vmatpush1.bf16.msra.mxu0 %v582
          %626 = vmatprep.subr.bf16.mxu0 0
          %627 = vmatpush2.bf16.msra.mxu0 0
          %628 = vmatprep.subr.bf16.mxu0 0
          %629 = vmatpush2.bf16.msra.mxu0 0
          %630 = vmatprep.subr.bf16.mxu0 0
          %631 = vmatpush2.bf16.msra.mxu0 0
          %632 = vmatprep.subr.bf16.mxu0 0
          %633 = vmatpush2.bf16.msra.mxu0 0
          %634 = vmatprep.subr.bf16.mxu0 0
          %635 = vmatpush2.bf16.msra.mxu0 %v593
          %636 = vmatprep.subr.bf16.mxu0 0
          %637 = vmatpush2.bf16.msra.mxu0 %v592
          %638 = vmatprep.subr.bf16.mxu0 0
          %639 = vmatpush2.bf16.msra.mxu0 %v591
          %640 = vmatprep.subr.bf16.mxu0 0
          %641 = vmatpush2.bf16.msra.mxu0 %v590
          %642 = vmatprep.mubr.bf16.mxu0 %v608
          %643 = vmatmul.mubr.bf16.gmra.mxu0 %v532
          %v644 = vpop.f32.mrf.mxu0
          %v645 = vadd.f32 0.0, %v644
          %v646 = vpop.f32.mrf.mxu0
          %v647 = vpop.f32.mrf.mxu0
          %v648 = vpop.f32.mrf.mxu0
          %649 = vdwg.mxu0
          %v650 = vadd.f32 %v505, %v645
          %651 = vst [vmem:[%s499] sm:$0x1f] %v650
        $region72: #{blip_forward.3} parent=55 // pred_fallthru
          _
        %v652 = vld [vmem:[%s499] sm:$0x1f]
        %v653 = vld [vmem:[%s422] sm:$0xff]
        %v654 = vld [vmem:[%s422 + $0x8] sm:$0xff]
        %v656 = vrot.slane %v654, 1
        %v658 = vrot.slane %v654, 2
        %v660 = vrot.slane %v654, 3
        %vm662 = vcmask 1044480
        %v663 = vsel %vm662, %v652, 0.0
        %664 = vadd.xlane.f32.xlu0 %v663
        %v665 = vpop.xlane.xlu0 %664
        %v666 = vrcp.pop 128.0
        %v667 = vmul.f32 %v665, %v666
        %v668 = vsub.f32 %v652, %v667
        %v669 = vmul.f32 %v668, %v668
        %v670 = vsel %vm662, %v669, 0.0
        %671 = vadd.xlane.f32.xlu0 %v670
        %v672 = vpop.xlane.xlu0 %671
        %v673 = vmul.f32 %v672, %v666
        %v674 = vadd.f32 %v673, 1e-06
        %v675 = vrsqrt.pop %v674
        %v676 = vmul.f32 %v668, %v675
        %v677 = vlaneseq
        %v678 = vshrl.u32 %v677, 7
        %v679 = vsub.s32 0, %v678
        %v680 = vrot.slane %v653, %v679
        %v681 = vmul.f32 %v676, %v680
        %v682 = vlaneseq
        %v683 = vshrl.u32 %v682, 7
        %v684 = vsub.s32 1, %v683
        %v685 = vrot.slane %v653, %v684
        %v686 = vadd.f32 %v681, %v685
        %v687 = vld [vmem:[%s490] sm:$0xff]
        %v688 = vld [vmem:[%s490 + $0x8] sm:$0xf]
        %v689 = vld [vmem:[%s490 + $0xc] sm:$0xff]
        %v690 = vld [vmem:[%s490 + $0x14] sm:$0xf]
        %v691 = vld [vmem:[%s490 + $0x18] sm:$0xff]
        %v692 = vld [vmem:[%s490 + $0x20] sm:$0xf]
        %v693 = vld [vmem:[%s490 + $0x24] sm:$0xff]
        %v694 = vld [vmem:[%s490 + $0x2c] sm:$0xf]
        %v695 = vld [vmem:[%s490 + $0x30] sm:$0xff]
        %v696 = vld [vmem:[%s490 + $0x38] sm:$0xf]
        %v697 = vld [vmem:[%s490 + $0x3c] sm:$0xff]
        %v698 = vld [vmem:[%s490 + $0x44] sm:$0xf]
        %v699 = vld [vmem:[%s490 + $0x48] sm:$0xff]
        %v700 = vld [vmem:[%s490 + $0x50] sm:$0xf]
        %v701 = vld [vmem:[%s490 + $0x54] sm:$0xff]
        %v702 = vld [vmem:[%s490 + $0x5c] sm:$0xf]
        %v703 = vld [vmem:[%s490 + $0x60] sm:$0xff]
        %v704 = vld [vmem:[%s490 + $0x68] sm:$0xf]
        %v705 = vld [vmem:[%s490 + $0x6c] sm:$0xff]
        %v706 = vld [vmem:[%s490 + $0x74] sm:$0xf]
        %v707 = vld [vmem:[%s490 + $0x78] sm:$0xff]
        %v708 = vld [vmem:[%s490 + $0x80] sm:$0xf]
        %v709 = vld [vmem:[%s490 + $0x84] sm:$0xff]
        %v710 = vld [vmem:[%s490 + $0x8c] sm:$0xf]
        %v711 = vld [vmem:[%s490 + $0x90] sm:$0xff]
        %v712 = vld [vmem:[%s490 + $0x98] sm:$0xf]
        %v713 = vld [vmem:[%s490 + $0x9c] sm:$0xff]
        %v714 = vld [vmem:[%s490 + $0xa4] sm:$0xf]
        %v715 = vld [vmem:[%s490 + $0xa8] sm:$0xff]
        %v716 = vld [vmem:[%s490 + $0xb0] sm:$0xf]
        %v717 = vld [vmem:[%s490 + $0xb4] sm:$0xff]
        %v718 = vld [vmem:[%s490 + $0xbc] sm:$0xf]
        %v719 = vld [vmem:[%s404] sm:$0xf]
        %v720 = vld [vmem:[%s404 + $0x4] sm:$0xf]
        %v721 = vld [vmem:[%s404 + $0x8] sm:$0xf]
        %v722 = vld [vmem:[%s404 + $0xc] sm:$0xf]
        %v723 = vld [vmem:[%s404 + $0x10] sm:$0xf]
        %v724 = vld [vmem:[%s404 + $0x14] sm:$0xf]
        %v725 = vld [vmem:[%s404 + $0x18] sm:$0xf]
        %v726 = vld [vmem:[%s404 + $0x1c] sm:$0xf]
        %v727 = vld [vmem:[%s404 + $0x20] sm:$0xf]
        %v728 = vld [vmem:[%s404 + $0x24] sm:$0xf]
        %v729 = vld [vmem:[%s404 + $0x28] sm:$0xf]
        %v730 = vld [vmem:[%s404 + $0x2c] sm:$0xf]
        %v731 = vld [vmem:[%s404 + $0x30] sm:$0xf]
        %v732 = vld [vmem:[%s404 + $0x34] sm:$0xf]
        %v733 = vld [vmem:[%s404 + $0x38] sm:$0xf]
        %v734 = vld [vmem:[%s404 + $0x3c] sm:$0xf]
        %v735 = vpack.c.bf16 %v686, %v686
        %v768 = vunpack.c.l.b16 %v687
        %v769 = vunpack.c.h.b16 %v687
        %v770 = vunpack.c.l.b16 %v688
        %v771 = vunpack.c.l.b16 %v689
        %v772 = vunpack.c.h.b16 %v689
        %v773 = vunpack.c.l.b16 %v690
        %v774 = vunpack.c.l.b16 %v691
        %v775 = vunpack.c.h.b16 %v691
        %v776 = vunpack.c.l.b16 %v692
        %v777 = vunpack.c.l.b16 %v693
        %v778 = vunpack.c.h.b16 %v693
        %v779 = vunpack.c.l.b16 %v694
        %v780 = vunpack.c.l.b16 %v695
        %v781 = vunpack.c.h.b16 %v695
        %v782 = vunpack.c.l.b16 %v696
        %v783 = vunpack.c.l.b16 %v697
        %v784 = vunpack.c.h.b16 %v697
        %v785 = vunpack.c.l.b16 %v698
        %v786 = vunpack.c.l.b16 %v699
        %v787 = vunpack.c.h.b16 %v699
        %v788 = vunpack.c.l.b16 %v700
        %v789 = vunpack.c.l.b16 %v701
        %v790 = vunpack.c.h.b16 %v701
        %v791 = vunpack.c.l.b16 %v702
        %v792 = vunpack.c.l.b16 %v703
        %v793 = vunpack.c.h.b16 %v703
        %v794 = vunpack.c.l.b16 %v704
        %v795 = vunpack.c.l.b16 %v705
        %v796 = vunpack.c.h.b16 %v705
        %v797 = vunpack.c.l.b16 %v706
        %v798 = vunpack.c.l.b16 %v707
        %v799 = vunpack.c.h.b16 %v707
        %v800 = vunpack.c.l.b16 %v708
        %v801 = vunpack.c.l.b16 %v709
        %v802 = vunpack.c.h.b16 %v709
        %v803 = vunpack.c.l.b16 %v710
        %v804 = vunpack.c.l.b16 %v711
        %v805 = vunpack.c.h.b16 %v711
        %v806 = vunpack.c.l.b16 %v712
        %v807 = vunpack.c.l.b16 %v713
        %v808 = vunpack.c.h.b16 %v713
        %v809 = vunpack.c.l.b16 %v714
        %v810 = vunpack.c.l.b16 %v715
        %v811 = vunpack.c.h.b16 %v715
        %v812 = vunpack.c.l.b16 %v716
        %v813 = vunpack.c.l.b16 %v717
        %v814 = vunpack.c.h.b16 %v717
        %v815 = vunpack.c.l.b16 %v718
        %v816 = vpack.c.b16 %v771, %v768
        %v817 = vpack.c.b16 %v772, %v769
        %v818 = vpack.c.b16 %v773, %v770
        %v819 = vpack.c.b16 %v777, %v774
        %v820 = vpack.c.b16 %v778, %v775
        %v821 = vpack.c.b16 %v779, %v776
        %v822 = vpack.c.b16 %v783, %v780
        %v823 = vpack.c.b16 %v784, %v781
        %v824 = vpack.c.b16 %v785, %v782
        %v825 = vpack.c.b16 %v789, %v786
        %v826 = vpack.c.b16 %v790, %v787
        %v827 = vpack.c.b16 %v791, %v788
        %v828 = vpack.c.b16 %v795, %v792
        %v829 = vpack.c.b16 %v796, %v793
        %v830 = vpack.c.b16 %v797, %v794
        %v831 = vpack.c.b16 %v801, %v798
        %v832 = vpack.c.b16 %v802, %v799
        %v833 = vpack.c.b16 %v803, %v800
        %v834 = vpack.c.b16 %v807, %v804
        %v835 = vpack.c.b16 %v808, %v805
        %v836 = vpack.c.b16 %v809, %v806
        %v837 = vpack.c.b16 %v813, %v810
        %v838 = vpack.c.b16 %v814, %v811
        %v839 = vpack.c.b16 %v815, %v812
        %864 = vmatprep.subr.bf16.mxu0 %v838
        %865 = vmatpush1.bf16.msra.mxu0 %v837
        %866 = vmatprep.subr.bf16.mxu0 %v835
        %867 = vmatpush1.bf16.msra.mxu0 %v834
        %868 = vmatprep.subr.bf16.mxu0 %v832
        %869 = vmatpush1.bf16.msra.mxu0 %v831
        %870 = vmatprep.subr.bf16.mxu0 %v829
        %871 = vmatpush1.bf16.msra.mxu0 %v828
        %872 = vmatprep.subr.bf16.mxu0 %v826
        %873 = vmatpush1.bf16.msra.mxu0 %v825
        %874 = vmatprep.subr.bf16.mxu0 %v823
        %875 = vmatpush1.bf16.msra.mxu0 %v822
        %876 = vmatprep.subr.bf16.mxu0 %v820
        %877 = vmatpush1.bf16.msra.mxu0 %v819
        %878 = vmatprep.subr.bf16.mxu0 %v817
        %879 = vmatpush1.bf16.msra.mxu0 %v816
        %880 = vmatprep.subr.bf16.mxu0 0
        %881 = vmatpush2.bf16.msra.mxu0 0
        %882 = vmatprep.subr.bf16.mxu0 0
        %883 = vmatpush2.bf16.msra.mxu0 0
        %884 = vmatprep.subr.bf16.mxu0 0
        %885 = vmatpush2.bf16.msra.mxu0 0
        %886 = vmatprep.subr.bf16.mxu0 0
        %887 = vmatpush2.bf16.msra.mxu0 0
        %888 = vmatprep.subr.bf16.mxu0 0
        %889 = vmatpush2.bf16.msra.mxu0 0
        %890 = vmatprep.subr.bf16.mxu0 0
        %891 = vmatpush2.bf16.msra.mxu0 0
        %892 = vmatprep.subr.bf16.mxu0 0
        %893 = vmatpush2.bf16.msra.mxu0 0
        %894 = vmatprep.subr.bf16.mxu0 0
        %895 = vmatpush2.bf16.msra.mxu0 0
        %896 = vmatprep.mubr.bf16.mxu0 0
        %897 = vmatmul.mubr.bf16.gmra.mxu0 %v735
        %v898 = vpop.f32.mrf.mxu0
        %v899 = vadd.f32 0.0, %v898
        %v900 = vpop.f32.mrf.mxu0
        %v901 = vadd.f32 0.0, %v900
        %v902 = vpop.f32.mrf.mxu0
        %v903 = vpop.f32.mrf.mxu0
        %904 = vdwg.mxu0
        %905 = vmatprep.subr.bf16.mxu0 0
        %906 = vmatpush1.bf16.msra.mxu0 %v839
        %907 = vmatprep.subr.bf16.mxu0 0
        %908 = vmatpush1.bf16.msra.mxu0 %v836
        %909 = vmatprep.subr.bf16.mxu0 0
        %910 = vmatpush1.bf16.msra.mxu0 %v833
        %911 = vmatprep.subr.bf16.mxu0 0
        %912 = vmatpush1.bf16.msra.mxu0 %v830
        %913 = vmatprep.subr.bf16.mxu0 0
        %914 = vmatpush1.bf16.msra.mxu0 %v827
        %915 = vmatprep.subr.bf16.mxu0 0
        %916 = vmatpush1.bf16.msra.mxu0 %v824
        %917 = vmatprep.subr.bf16.mxu0 0
        %918 = vmatpush1.bf16.msra.mxu0 %v821
        %919 = vmatprep.subr.bf16.mxu0 0
        %920 = vmatpush1.bf16.msra.mxu0 %v818
        %921 = vmatprep.subr.bf16.mxu0 0
        %922 = vmatpush2.bf16.msra.mxu0 0
        %923 = vmatprep.subr.bf16.mxu0 0
        %924 = vmatpush2.bf16.msra.mxu0 0
        %925 = vmatprep.subr.bf16.mxu0 0
        %926 = vmatpush2.bf16.msra.mxu0 0
        %927 = vmatprep.subr.bf16.mxu0 0
        %928 = vmatpush2.bf16.msra.mxu0 0
        %929 = vmatprep.subr.bf16.mxu0 0
        %930 = vmatpush2.bf16.msra.mxu0 0
        %931 = vmatprep.subr.bf16.mxu0 0
        %932 = vmatpush2.bf16.msra.mxu0 0
        %933 = vmatprep.subr.bf16.mxu0 0
        %934 = vmatpush2.bf16.msra.mxu0 0
        %935 = vmatprep.subr.bf16.mxu0 0
        %936 = vmatpush2.bf16.msra.mxu0 0
        %937 = vmatprep.mubr.bf16.mxu0 0
        %938 = vmatmul.mubr.bf16.gmra.mxu0 %v735
        %v939 = vpop.f32.mrf.mxu0
        %v940 = vadd.f32 0.0, %v939
        %v941 = vpop.f32.mrf.mxu0
        %v942 = vpop.f32.mrf.mxu0
        %v943 = vpop.f32.mrf.mxu0
        %944 = vdwg.mxu0
        %v945 = vlaneseq
        %v946 = vshrl.u32 %v945, 7
        %v947 = vsub.s32 2, %v946
        %v948 = vrot.slane %v653, %v947
        %v949 = vadd.f32 %v899, %v948
        %v950 = vmul.f32 %v949, 0.17677669
        %v951 = vpack.c.bf16 %v950, %v950
        %v952 = vlaneseq
        %v953 = vshrl.u32 %v952, 7
        %v954 = vsub.s32 3, %v953
        %v955 = vrot.slane %v653, %v954
        %v956 = vadd.f32 %v901, %v955
        %v957 = vpack.c.bf16 %v956, %v956
        %v958 = vlaneseq
        %v959 = vshrl.u32 %v958, 7
        %v960 = vsub.s32 4, %v959
        %v961 = vrot.slane %v653, %v960
        %v962 = vadd.f32 %v940, %v961
        %v963 = vpack.c.bf16 %v962, %v962
        %vm964 = vcmask 261120
        %v966 = vsel %vm964, %v951, 0
        %v969 = vsel %vm964, %v957, 0
        %971 = vmatprep.subr.bf16.mxu0 0
        %972 = vmatpush1.bf16.xpose.msra.mxu0 0
        %973 = vmatprep.subr.bf16.mxu0 0
        %974 = vmatpush1.bf16.xpose.msra.mxu0 0
        %975 = vmatprep.subr.bf16.mxu0 0
        %976 = vmatpush1.bf16.xpose.msra.mxu0 0
        %977 = vmatprep.subr.bf16.mxu0 0
        %978 = vmatpush1.bf16.xpose.msra.mxu0 0
        %979 = vmatprep.subr.bf16.mxu0 0
        %980 = vmatpush1.bf16.xpose.msra.mxu0 0
        %981 = vmatprep.subr.bf16.mxu0 0
        %982 = vmatpush1.bf16.xpose.msra.mxu0 0
        %983 = vmatprep.subr.bf16.mxu0 0
        %984 = vmatpush1.bf16.xpose.msra.mxu0 0
        %985 = vmatprep.subr.bf16.mxu0 0
        %986 = vmatpush1.bf16.xpose.msra.mxu0 %v969
        %987 = vmatprep.subr.bf16.mxu0 0
        %988 = vmatpush2.bf16.xpose.msra.mxu0 0
        %989 = vmatprep.subr.bf16.mxu0 0
        %990 = vmatpush2.bf16.xpose.msra.mxu0 0
        %991 = vmatprep.subr.bf16.mxu0 0
        %992 = vmatpush2.bf16.xpose.msra.mxu0 0
        %993 = vmatprep.subr.bf16.mxu0 0
        %994 = vmatpush2.bf16.xpose.msra.mxu0 0
        %995 = vmatprep.subr.bf16.mxu0 0
        %996 = vmatpush2.bf16.xpose.msra.mxu0 0
        %997 = vmatprep.subr.bf16.mxu0 0
        %998 = vmatpush2.bf16.xpose.msra.mxu0 0
        %999 = vmatprep.subr.bf16.mxu0 0
        %1000 = vmatpush2.bf16.xpose.msra.mxu0 0
        %1001 = vmatprep.subr.bf16.mxu0 0
        %1002 = vmatpush2.bf16.xpose.msra.mxu0 0
        %1003 = vmatprep.mubr.bf16.mxu0 0
        %1004 = vmatmul.mubr.bf16.gmra.mxu0 %v966
        %v1005 = vpop.f32.mrf.mxu0
        %v1006 = vadd.f32 0.0, %v1005
        %v1007 = vpop.f32.mrf.mxu0
        %v1008 = vpop.f32.mrf.mxu0
        %v1009 = vpop.f32.mrf.mxu0
        %1010 = vdwg.mxu0
        %vm1011 = vcmask 36864
        %v1012 = vsel %vm1011, %v1006, -inf
        %1013 = vmax.xlane.f32.xlu0 %v1012
        %v1014 = vpop.xlane.xlu0 %1013
        %v1015 = vsub.f32 %v1006, %v1014
        %v1016 = vmul.f32 %v1015, 1.442695
        %v1017 = vpow.pop %v1016
        %v1018 = vsel %vm1011, %v1017, 0.0
        %1019 = vadd.xlane.f32.xlu0 %v1018
        %v1020 = vpop.xlane.xlu0 %1019
        %v1021 = vrcp.pop %v1020
        %v1022 = vmul.f32 %v1017, %v1021
        %v1023 = vpack.c.bf16 %v1022, %v1022
        %vm1024 = vcmask 39936
        %v1026 = vsel %vm1024, %v1023, 0
        %vm1028 = vcmask 1041408
        %vm1029 = vcmask 1042432
        %v1030 = vsel %vm1028, 4294967295, 65535
        %v1031 = vsel %vm1029, %v1030, 0
        %v1033 = vand.u32 %v963, %v1031
        %1035 = vmatprep.subr.bf16.mxu0 0
        %1036 = vmatpush1.bf16.msra.mxu0 0
        %1037 = vmatprep.subr.bf16.mxu0 0
        %1038 = vmatpush1.bf16.msra.mxu0 0
        %1039 = vmatprep.subr.bf16.mxu0 0
        %1040 = vmatpush1.bf16.msra.mxu0 0
        %1041 = vmatprep.subr.bf16.mxu0 0
        %1042 = vmatpush1.bf16.msra.mxu0 0
        %1043 = vmatprep.subr.bf16.mxu0 0
        %1044 = vmatpush1.bf16.msra.mxu0 0
        %1045 = vmatprep.subr.bf16.mxu0 0
        %1046 = vmatpush1.bf16.msra.mxu0 0
        %1047 = vmatprep.subr.bf16.mxu0 0
        %1048 = vmatpush1.bf16.msra.mxu0 0
        %1049 = vmatprep.subr.bf16.mxu0 0
        %1050 = vmatpush1.bf16.msra.mxu0 %v1033
        %1051 = vmatprep.subr.bf16.mxu0 0
        %1052 = vmatpush2.bf16.msra.mxu0 0
        %1053 = vmatprep.subr.bf16.mxu0 0
        %1054 = vmatpush2.bf16.msra.mxu0 0
        %1055 = vmatprep.subr.bf16.mxu0 0
        %1056 = vmatpush2.bf16.msra.mxu0 0
        %1057 = vmatprep.subr.bf16.mxu0 0
        %1058 = vmatpush2.bf16.msra.mxu0 0
        %1059 = vmatprep.subr.bf16.mxu0 0
        %1060 = vmatpush2.bf16.msra.mxu0 0
        %1061 = vmatprep.subr.bf16.mxu0 0
        %1062 = vmatpush2.bf16.msra.mxu0 0
        %1063 = vmatprep.subr.bf16.mxu0 0
        %1064 = vmatpush2.bf16.msra.mxu0 0
        %1065 = vmatprep.subr.bf16.mxu0 0
        %1066 = vmatpush2.bf16.msra.mxu0 0
        %1067 = vmatprep.mubr.bf16.mxu0 0
        %1068 = vmatmul.mubr.bf16.gmra.mxu0 %v1026
        %v1069 = vpop.f32.mrf.mxu0
        %v1070 = vadd.f32 0.0, %v1069
        %v1071 = vpop.f32.mrf.mxu0
        %v1072 = vpop.f32.mrf.mxu0
        %v1073 = vpop.f32.mrf.mxu0
        %1074 = vdwg.mxu0
        %vm1075 = vcmask 258048
        %1076 = vst.msk [vmem:[#allocation2] sm:$0x1f] %vm1075, %v1070
        %1078 = vrot.lane.b32.xlu0 %v951, 96
        %v1079 = vpop.permute.xlu0 %1078
        %1081 = vrot.lane.b32.xlu0 %v957, 96
        %v1082 = vpop.permute.xlu0 %1081
        %v1084 = vsel %vm964, %v1079, 0
        %v1087 = vsel %vm964, %v1082, 0
        %1089 = vmatprep.subr.bf16.mxu0 0
        %1090 = vmatpush1.bf16.xpose.msra.mxu0 0
        %1091 = vmatprep.subr.bf16.mxu0 0
        %1092 = vmatpush1.bf16.xpose.msra.mxu0 0
        %1093 = vmatprep.subr.bf16.mxu0 0
        %1094 = vmatpush1.bf16.xpose.msra.mxu0 0
        %1095 = vmatprep.subr.bf16.mxu0 0
        %1096 = vmatpush1.bf16.xpose.msra.mxu0 0
        %1097 = vmatprep.subr.bf16.mxu0 0
        %1098 = vmatpush1.bf16.xpose.msra.mxu0 0
        %1099 = vmatprep.subr.bf16.mxu0 0
        %1100 = vmatpush1.bf16.xpose.msra.mxu0 0
        %1101 = vmatprep.subr.bf16.mxu0 0
        %1102 = vmatpush1.bf16.xpose.msra.mxu0 0
        %1103 = vmatprep.subr.bf16.mxu0 0
        %1104 = vmatpush1.bf16.xpose.msra.mxu0 %v1087
        %1105 = vmatprep.subr.bf16.mxu0 0
        %1106 = vmatpush2.bf16.xpose.msra.mxu0 0
        %1107 = vmatprep.subr.bf16.mxu0 0
        %1108 = vmatpush2.bf16.xpose.msra.mxu0 0
        %1109 = vmatprep.subr.bf16.mxu0 0
        %1110 = vmatpush2.bf16.xpose.msra.mxu0 0
        %1111 = vmatprep.subr.bf16.mxu0 0
        %1112 = vmatpush2.bf16.xpose.msra.mxu0 0
        %1113 = vmatprep.subr.bf16.mxu0 0
        %1114 = vmatpush2.bf16.xpose.msra.mxu0 0
        %1115 = vmatprep.subr.bf16.mxu0 0
        %1116 = vmatpush2.bf16.xpose.msra.mxu0 0
        %1117 = vmatprep.subr.bf16.mxu0 0
        %1118 = vmatpush2.bf16.xpose.msra.mxu0 0
        %1119 = vmatprep.subr.bf16.mxu0 0
        %1120 = vmatpush2.bf16.xpose.msra.mxu0 0
        %1121 = vmatprep.mubr.bf16.mxu0 0
        %1122 = vmatmul.mubr.bf16.gmra.mxu0 %v1084
        %v1123 = vpop.f32.mrf.mxu0
        %v1124 = vadd.f32 0.0, %v1123
        %v1125 = vpop.f32.mrf.mxu0
        %v1126 = vpop.f32.mrf.mxu0
        %v1127 = vpop.f32.mrf.mxu0
        %1128 = vdwg.mxu0
        %v1129 = vsel %vm1011, %v1124, -inf
        %1130 = vmax.xlane.f32.xlu0 %v1129
        %v1131 = vpop.xlane.xlu0 %1130
        %v1132 = vsub.f32 %v1124, %v1131
        %v1133 = vmul.f32 %v1132, 1.442695
        %v1134 = vpow.pop %v1133
        %v1135 = vsel %vm1011, %v1134, 0.0
        %1136 = vadd.xlane.f32.xlu0 %v1135
        %v1137 = vpop.xlane.xlu0 %1136
        %v1138 = vrcp.pop %v1137
        %v1139 = vmul.f32 %v1134, %v1138
        %v1140 = vpack.c.bf16 %v1139, %v1139
        %1142 = vrot.lane.b32.xlu0 %v963, 96
        %v1143 = vpop.permute.xlu0 %1142
        %v1145 = vsel %vm1024, %v1140, 0
        %v1148 = vand.u32 %v1143, %v1031
        %1150 = vmatprep.subr.bf16.mxu0 0
        %1151 = vmatpush1.bf16.msra.mxu0 0
        %1152 = vmatprep.subr.bf16.mxu0 0
        %1153 = vmatpush1.bf16.msra.mxu0 0
        %1154 = vmatprep.subr.bf16.mxu0 0
        %1155 = vmatpush1.bf16.msra.mxu0 0
        %1156 = vmatprep.subr.bf16.mxu0 0
        %1157 = vmatpush1.bf16.msra.mxu0 0
        %1158 = vmatprep.subr.bf16.mxu0 0
        %1159 = vmatpush1.bf16.msra.mxu0 0
        %1160 = vmatprep.subr.bf16.mxu0 0
        %1161 = vmatpush1.bf16.msra.mxu0 0
        %1162 = vmatprep.subr.bf16.mxu0 0
        %1163 = vmatpush1.bf16.msra.mxu0 0
        %1164 = vmatprep.subr.bf16.mxu0 0
        %1165 = vmatpush1.bf16.msra.mxu0 %v1148
        %1166 = vmatprep.subr.bf16.mxu0 0
        %1167 = vmatpush2.bf16.msra.mxu0 0
        %1168 = vmatprep.subr.bf16.mxu0 0
        %1169 = vmatpush2.bf16.msra.mxu0 0
        %1170 = vmatprep.subr.bf16.mxu0 0
        %1171 = vmatpush2.bf16.msra.mxu0 0
        %1172 = vmatprep.subr.bf16.mxu0 0
        %1173 = vmatpush2.bf16.msra.mxu0 0
        %1174 = vmatprep.subr.bf16.mxu0 0
        %1175 = vmatpush2.bf16.msra.mxu0 0
        %1176 = vmatprep.subr.bf16.mxu0 0
        %1177 = vmatpush2.bf16.msra.mxu0 0
        %1178 = vmatprep.subr.bf16.mxu0 0
        %1179 = vmatpush2.bf16.msra.mxu0 0
        %1180 = vmatprep.subr.bf16.mxu0 0
        %1181 = vmatpush2.bf16.msra.mxu0 0
        %1182 = vmatprep.mubr.bf16.mxu0 0
        %1183 = vmatmul.mubr.bf16.gmra.mxu0 %v1145
        %v1184 = vpop.f32.mrf.mxu0
        %v1185 = vadd.f32 0.0, %v1184
        %v1186 = vpop.f32.mrf.mxu0
        %v1187 = vpop.f32.mrf.mxu0
        %v1188 = vpop.f32.mrf.mxu0
        %1189 = vdwg.mxu0
        %1191 = vrot.lane.b32.xlu0 %v1185, 32
        %v1192 = vpop.permute.xlu0 %1191
        %vm1194 = vcmask 520448
        %1195 = vst.msk [vmem:[#allocation2] sm:$0x1f] %vm1194, %v1192
        %1196 = vrot.lane.b32.xlu0 %v951, 64
        %v1197 = vpop.permute.xlu0 %1196
        %1198 = vrot.lane.b32.xlu0 %v957, 64
        %v1199 = vpop.permute.xlu0 %1198
        %v1201 = vsel %vm964, %v1197, 0
        %v1204 = vsel %vm964, %v1199, 0
        %1206 = vmatprep.subr.bf16.mxu0 0
        %1207 = vmatpush1.bf16.xpose.msra.mxu0 0
        %1208 = vmatprep.subr.bf16.mxu0 0
        %1209 = vmatpush1.bf16.xpose.msra.mxu0 0
        %1210 = vmatprep.subr.bf16.mxu0 0
        %1211 = vmatpush1.bf16.xpose.msra.mxu0 0
        %1212 = vmatprep.subr.bf16.mxu0 0
        %1213 = vmatpush1.bf16.xpose.msra.mxu0 0
        %1214 = vmatprep.subr.bf16.mxu0 0
        %1215 = vmatpush1.bf16.xpose.msra.mxu0 0
        %1216 = vmatprep.subr.bf16.mxu0 0
        %1217 = vmatpush1.bf16.xpose.msra.mxu0 0
        %1218 = vmatprep.subr.bf16.mxu0 0
        %1219 = vmatpush1.bf16.xpose.msra.mxu0 0
        %1220 = vmatprep.subr.bf16.mxu0 0
        %1221 = vmatpush1.bf16.xpose.msra.mxu0 %v1204
        %1222 = vmatprep.subr.bf16.mxu0 0
        %1223 = vmatpush2.bf16.xpose.msra.mxu0 0
        %1224 = vmatprep.subr.bf16.mxu0 0
        %1225 = vmatpush2.bf16.xpose.msra.mxu0 0
        %1226 = vmatprep.subr.bf16.mxu0 0
        %1227 = vmatpush2.bf16.xpose.msra.mxu0 0
        %1228 = vmatprep.subr.bf16.mxu0 0
        %1229 = vmatpush2.bf16.xpose.msra.mxu0 0
        %1230 = vmatprep.subr.bf16.mxu0 0
        %1231 = vmatpush2.bf16.xpose.msra.mxu0 0
        %1232 = vmatprep.subr.bf16.mxu0 0
        %1233 = vmatpush2.bf16.xpose.msra.mxu0 0
        %1234 = vmatprep.subr.bf16.mxu0 0
        %1235 = vmatpush2.bf16.xpose.msra.mxu0 0
        %1236 = vmatprep.subr.bf16.mxu0 0
        %1237 = vmatpush2.bf16.xpose.msra.mxu0 0
        %1238 = vmatprep.mubr.bf16.mxu0 0
        %1239 = vmatmul.mubr.bf16.gmra.mxu0 %v1201
        %v1240 = vpop.f32.mrf.mxu0
        %v1241 = vadd.f32 0.0, %v1240
        %v1242 = vpop.f32.mrf.mxu0
        %v1243 = vpop.f32.mrf.mxu0
        %v1244 = vpop.f32.mrf.mxu0
        %1245 = vdwg.mxu0
        %v1246 = vsel %vm1011, %v1241, -inf
        %1247 = vmax.xlane.f32.xlu0 %v1246
        %v1248 = vpop.xlane.xlu0 %1247
        %v1249 = vsub.f32 %v1241, %v1248
        %v1250 = vmul.f32 %v1249, 1.442695
        %v1251 = vpow.pop %v1250
        %v1252 = vsel %vm1011, %v1251, 0.0
        %1253 = vadd.xlane.f32.xlu0 %v1252
        %v1254 = vpop.xlane.xlu0 %1253
        %v1255 = vrcp.pop %v1254
        %v1256 = vmul.f32 %v1251, %v1255
        %v1257 = vpack.c.bf16 %v1256, %v1256
        %1258 = vrot.lane.b32.xlu0 %v963, 64
        %v1259 = vpop.permute.xlu0 %1258
        %v1261 = vsel %vm1024, %v1257, 0
        %v1264 = vand.u32 %v1259, %v1031
        %1266 = vmatprep.subr.bf16.mxu0 0
        %1267 = vmatpush1.bf16.msra.mxu0 0
        %1268 = vmatprep.subr.bf16.mxu0 0
        %1269 = vmatpush1.bf16.msra.mxu0 0
        %1270 = vmatprep.subr.bf16.mxu0 0
        %1271 = vmatpush1.bf16.msra.mxu0 0
        %1272 = vmatprep.subr.bf16.mxu0 0
        %1273 = vmatpush1.bf16.msra.mxu0 0
        %1274 = vmatprep.subr.bf16.mxu0 0
        %1275 = vmatpush1.bf16.msra.mxu0 0
        %1276 = vmatprep.subr.bf16.mxu0 0
        %1277 = vmatpush1.bf16.msra.mxu0 0
        %1278 = vmatprep.subr.bf16.mxu0 0
        %1279 = vmatpush1.bf16.msra.mxu0 0
        %1280 = vmatprep.subr.bf16.mxu0 0
        %1281 = vmatpush1.bf16.msra.mxu0 %v1264
        %1282 = vmatprep.subr.bf16.mxu0 0
        %1283 = vmatpush2.bf16.msra.mxu0 0
        %1284 = vmatprep.subr.bf16.mxu0 0
        %1285 = vmatpush2.bf16.msra.mxu0 0
        %1286 = vmatprep.subr.bf16.mxu0 0
        %1287 = vmatpush2.bf16.msra.mxu0 0
        %1288 = vmatprep.subr.bf16.mxu0 0
        %1289 = vmatpush2.bf16.msra.mxu0 0
        %1290 = vmatprep.subr.bf16.mxu0 0
        %1291 = vmatpush2.bf16.msra.mxu0 0
        %1292 = vmatprep.subr.bf16.mxu0 0
        %1293 = vmatpush2.bf16.msra.mxu0 0
        %1294 = vmatprep.subr.bf16.mxu0 0
        %1295 = vmatpush2.bf16.msra.mxu0 0
        %1296 = vmatprep.subr.bf16.mxu0 0
        %1297 = vmatpush2.bf16.msra.mxu0 0
        %1298 = vmatprep.mubr.bf16.mxu0 0
        %1299 = vmatmul.mubr.bf16.gmra.mxu0 %v1261
        %v1300 = vpop.f32.mrf.mxu0
        %v1301 = vadd.f32 0.0, %v1300
        %v1302 = vpop.f32.mrf.mxu0
        %v1303 = vpop.f32.mrf.mxu0
        %v1304 = vpop.f32.mrf.mxu0
        %1305 = vdwg.mxu0
        %1307 = vrot.lane.b32.xlu0 %v1301, 64
        %v1308 = vpop.permute.xlu0 %1307
        %vm1310 = vcmask 782848
        %1311 = vst.msk [vmem:[#allocation2] sm:$0x1f] %vm1310, %v1308
        %1312 = vrot.lane.b32.xlu0 %v951, 32
        %v1313 = vpop.permute.xlu0 %1312
        %1314 = vrot.lane.b32.xlu0 %v957, 32
        %v1315 = vpop.permute.xlu0 %1314
        %v1317 = vsel %vm964, %v1313, 0
        %v1320 = vsel %vm964, %v1315, 0
        %1322 = vmatprep.subr.bf16.mxu0 0
        %1323 = vmatpush1.bf16.xpose.msra.mxu0 0
        %1324 = vmatprep.subr.bf16.mxu0 0
        %1325 = vmatpush1.bf16.xpose.msra.mxu0 0
        %1326 = vmatprep.subr.bf16.mxu0 0
        %1327 = vmatpush1.bf16.xpose.msra.mxu0 0
        %1328 = vmatprep.subr.bf16.mxu0 0
        %1329 = vmatpush1.bf16.xpose.msra.mxu0 0
        %1330 = vmatprep.subr.bf16.mxu0 0
        %1331 = vmatpush1.bf16.xpose.msra.mxu0 0
        %1332 = vmatprep.subr.bf16.mxu0 0
        %1333 = vmatpush1.bf16.xpose.msra.mxu0 0
        %1334 = vmatprep.subr.bf16.mxu0 0
        %1335 = vmatpush1.bf16.xpose.msra.mxu0 0
        %1336 = vmatprep.subr.bf16.mxu0 0
        %1337 = vmatpush1.bf16.xpose.msra.mxu0 %v1320
        %1338 = vmatprep.subr.bf16.mxu0 0
        %1339 = vmatpush2.bf16.xpose.msra.mxu0 0
        %1340 = vmatprep.subr.bf16.mxu0 0
        %1341 = vmatpush2.bf16.xpose.msra.mxu0 0
        %1342 = vmatprep.subr.bf16.mxu0 0
        %1343 = vmatpush2.bf16.xpose.msra.mxu0 0
        %1344 = vmatprep.subr.bf16.mxu0 0
        %1345 = vmatpush2.bf16.xpose.msra.mxu0 0
        %1346 = vmatprep.subr.bf16.mxu0 0
        %1347 = vmatpush2.bf16.xpose.msra.mxu0 0
        %1348 = vmatprep.subr.bf16.mxu0 0
        %1349 = vmatpush2.bf16.xpose.msra.mxu0 0
        %1350 = vmatprep.subr.bf16.mxu0 0
        %1351 = vmatpush2.bf16.xpose.msra.mxu0 0
        %1352 = vmatprep.subr.bf16.mxu0 0
        %1353 = vmatpush2.bf16.xpose.msra.mxu0 0
        %1354 = vmatprep.mubr.bf16.mxu0 0
        %1355 = vmatmul.mubr.bf16.gmra.mxu0 %v1317
        %v1356 = vpop.f32.mrf.mxu0
        %v1357 = vadd.f32 0.0, %v1356
        %v1358 = vpop.f32.mrf.mxu0
        %v1359 = vpop.f32.mrf.mxu0
        %v1360 = vpop.f32.mrf.mxu0
        %1361 = vdwg.mxu0
        %v1362 = vsel %vm1011, %v1357, -inf
        %1363 = vmax.xlane.f32.xlu0 %v1362
        %v1364 = vpop.xlane.xlu0 %1363
        %v1365 = vsub.f32 %v1357, %v1364
        %v1366 = vmul.f32 %v1365, 1.442695
        %v1367 = vpow.pop %v1366
        %v1368 = vsel %vm1011, %v1367, 0.0
        %1369 = vadd.xlane.f32.xlu0 %v1368
        %v1370 = vpop.xlane.xlu0 %1369
        %v1371 = vrcp.pop %v1370
        %v1372 = vmul.f32 %v1367, %v1371
        %v1373 = vpack.c.bf16 %v1372, %v1372
        %1374 = vrot.lane.b32.xlu0 %v963, 32
        %v1375 = vpop.permute.xlu0 %1374
        %v1377 = vsel %vm1024, %v1373, 0
        %v1380 = vand.u32 %v1375, %v1031
        %1382 = vmatprep.subr.bf16.mxu0 0
        %1383 = vmatpush1.bf16.msra.mxu0 0
        %1384 = vmatprep.subr.bf16.mxu0 0
        %1385 = vmatpush1.bf16.msra.mxu0 0
        %1386 = vmatprep.subr.bf16.mxu0 0
        %1387 = vmatpush1.bf16.msra.mxu0 0
        %1388 = vmatprep.subr.bf16.mxu0 0
        %1389 = vmatpush1.bf16.msra.mxu0 0
        %1390 = vmatprep.subr.bf16.mxu0 0
        %1391 = vmatpush1.bf16.msra.mxu0 0
        %1392 = vmatprep.subr.bf16.mxu0 0
        %1393 = vmatpush1.bf16.msra.mxu0 0
        %1394 = vmatprep.subr.bf16.mxu0 0
        %1395 = vmatpush1.bf16.msra.mxu0 0
        %1396 = vmatprep.subr.bf16.mxu0 0
        %1397 = vmatpush1.bf16.msra.mxu0 %v1380
        %1398 = vmatprep.subr.bf16.mxu0 0
        %1399 = vmatpush2.bf16.msra.mxu0 0
        %1400 = vmatprep.subr.bf16.mxu0 0
        %1401 = vmatpush2.bf16.msra.mxu0 0
        %1402 = vmatprep.subr.bf16.mxu0 0
        %1403 = vmatpush2.bf16.msra.mxu0 0
        %1404 = vmatprep.subr.bf16.mxu0 0
        %1405 = vmatpush2.bf16.msra.mxu0 0
        %1406 = vmatprep.subr.bf16.mxu0 0
        %1407 = vmatpush2.bf16.msra.mxu0 0
        %1408 = vmatprep.subr.bf16.mxu0 0
        %1409 = vmatpush2.bf16.msra.mxu0 0
        %1410 = vmatprep.subr.bf16.mxu0 0
        %1411 = vmatpush2.bf16.msra.mxu0 0
        %1412 = vmatprep.subr.bf16.mxu0 0
        %1413 = vmatpush2.bf16.msra.mxu0 0
        %1414 = vmatprep.mubr.bf16.mxu0 0
        %1415 = vmatmul.mubr.bf16.gmra.mxu0 %v1377
        %v1416 = vpop.f32.mrf.mxu0
        %v1417 = vadd.f32 0.0, %v1416
        %v1418 = vpop.f32.mrf.mxu0
        %v1419 = vpop.f32.mrf.mxu0
        %v1420 = vpop.f32.mrf.mxu0
        %1421 = vdwg.mxu0
        %1423 = vrot.lane.b32.xlu0 %v1417, 96
        %v1424 = vpop.permute.xlu0 %1423
        %vm1426 = vcmask 1045248
        %1427 = vst.msk [vmem:[#allocation2] sm:$0x1f] %vm1426, %v1424
        %v1428 = vld [vmem:[#allocation2] sm:$0x1f]
        %v1429 = vpack.c.bf16 %v1428, %v1428
        %v1430 = vlaneseq
        %v1431 = vshrl.u32 %v1430, 7
        %v1432 = vsub.s32 5, %v1431
        %v1433 = vrot.slane %v653, %v1432
        %v1450 = vunpack.c.l.b16 %v719
        %v1451 = vunpack.c.l.b16 %v720
        %v1452 = vunpack.c.l.b16 %v721
        %v1453 = vunpack.c.l.b16 %v722
        %v1454 = vunpack.c.l.b16 %v723
        %v1455 = vunpack.c.l.b16 %v724
        %v1456 = vunpack.c.l.b16 %v725
        %v1457 = vunpack.c.l.b16 %v726
        %v1458 = vunpack.c.l.b16 %v727
        %v1459 = vunpack.c.l.b16 %v728
        %v1460 = vunpack.c.l.b16 %v729
        %v1461 = vunpack.c.l.b16 %v730
        %v1462 = vunpack.c.l.b16 %v731
        %v1463 = vunpack.c.l.b16 %v732
        %v1464 = vunpack.c.l.b16 %v733
        %v1465 = vunpack.c.l.b16 %v734
        %v1466 = vpack.c.b16 %v1451, %v1450
        %v1467 = vpack.c.b16 %v1453, %v1452
        %v1468 = vpack.c.b16 %v1455, %v1454
        %v1469 = vpack.c.b16 %v1457, %v1456
        %v1470 = vpack.c.b16 %v1459, %v1458
        %v1471 = vpack.c.b16 %v1461, %v1460
        %v1472 = vpack.c.b16 %v1463, %v1462
        %v1473 = vpack.c.b16 %v1465, %v1464
        %1482 = vmatprep.subr.bf16.mxu0 0
        %1483 = vmatpush1.bf16.msra.mxu0 %v1473
        %1484 = vmatprep.subr.bf16.mxu0 0
        %1485 = vmatpush1.bf16.msra.mxu0 %v1472
        %1486 = vmatprep.subr.bf16.mxu0 0
        %1487 = vmatpush1.bf16.msra.mxu0 %v1471
        %1488 = vmatprep.subr.bf16.mxu0 0
        %1489 = vmatpush1.bf16.msra.mxu0 %v1470
        %1490 = vmatprep.subr.bf16.mxu0 0
        %1491 = vmatpush1.bf16.msra.mxu0 %v1469
        %1492 = vmatprep.subr.bf16.mxu0 0
        %1493 = vmatpush1.bf16.msra.mxu0 %v1468
        %1494 = vmatprep.subr.bf16.mxu0 0
        %1495 = vmatpush1.bf16.msra.mxu0 %v1467
        %1496 = vmatprep.subr.bf16.mxu0 0
        %1497 = vmatpush1.bf16.msra.mxu0 %v1466
        %1498 = vmatprep.subr.bf16.mxu0 0
        %1499 = vmatpush2.bf16.msra.mxu0 0
        %1500 = vmatprep.subr.bf16.mxu0 0
        %1501 = vmatpush2.bf16.msra.mxu0 0
        %1502 = vmatprep.subr.bf16.mxu0 0
        %1503 = vmatpush2.bf16.msra.mxu0 0
        %1504 = vmatprep.subr.bf16.mxu0 0
        %1505 = vmatpush2.bf16.msra.mxu0 0
        %1506 = vmatprep.subr.bf16.mxu0 0
        %1507 = vmatpush2.bf16.msra.mxu0 0
        %1508 = vmatprep.subr.bf16.mxu0 0
        %1509 = vmatpush2.bf16.msra.mxu0 0
        %1510 = vmatprep.subr.bf16.mxu0 0
        %1511 = vmatpush2.bf16.msra.mxu0 0
        %1512 = vmatprep.subr.bf16.mxu0 0
        %1513 = vmatpush2.bf16.msra.mxu0 0
        %1514 = vmatprep.mubr.bf16.mxu0 0
        %1515 = vmatmul.mubr.bf16.gmra.mxu0 %v1429
        %v1516 = vpop.f32.mrf.mxu0
        %v1517 = vadd.f32 %v1433, %v1516
        %v1518 = vpop.f32.mrf.mxu0
        %v1519 = vpop.f32.mrf.mxu0
        %v1520 = vpop.f32.mrf.mxu0
        %1521 = vdwg.mxu0
        %v1522 = vadd.f32 %v652, %v1517
        %v1523 = vsel %vm662, %v1522, 0.0
        %1524 = vadd.xlane.f32.xlu0 %v1523
        %v1525 = vpop.xlane.xlu0 %1524
        %v1526 = vmul.f32 %v1525, %v666
        %v1527 = vsub.f32 %v1522, %v1526
        %v1528 = vmul.f32 %v1527, %v1527
        %v1529 = vsel %vm662, %v1528, 0.0
        %1530 = vadd.xlane.f32.xlu0 %v1529
        %v1531 = vpop.xlane.xlu0 %1530
        %v1532 = vmul.f32 %v1531, %v666
        %v1533 = vadd.f32 %v1532, 1e-06
        %v1534 = vrsqrt.pop %v1533
        %v1535 = vmul.f32 %v1527, %v1534
        %v1536 = vlaneseq
        %v1537 = vshrl.u32 %v1536, 7
        %v1538 = vsub.s32 6, %v1537
        %v1539 = vrot.slane %v653, %v1538
        %v1540 = vmul.f32 %v1535, %v1539
        %v1541 = vlaneseq
        %v1542 = vshrl.u32 %v1541, 7
        %v1543 = vsub.s32 7, %v1542
        %v1544 = vrot.slane %v653, %v1543
        %v1545 = vadd.f32 %v1540, %v1544
        %v1546 = vld [vmem:[%s495] sm:$0xff]
        %v1547 = vld [vmem:[%s495 + $0x8] sm:$0xff]
        %v1548 = vld [vmem:[%s495 + $0x10] sm:$0xff]
        %v1549 = vld [vmem:[%s495 + $0x18] sm:$0xff]
        %v1550 = vld [vmem:[%s495 + $0x20] sm:$0xff]
        %v1551 = vld [vmem:[%s495 + $0x28] sm:$0xff]
        %v1552 = vld [vmem:[%s495 + $0x30] sm:$0xff]
        %v1553 = vld [vmem:[%s495 + $0x38] sm:$0xff]
        %v1554 = vld [vmem:[%s495 + $0x40] sm:$0xff]
        %v1555 = vld [vmem:[%s495 + $0x48] sm:$0xff]
        %v1556 = vld [vmem:[%s495 + $0x50] sm:$0xff]
        %v1557 = vld [vmem:[%s495 + $0x58] sm:$0xff]
        %v1558 = vld [vmem:[%s495 + $0x60] sm:$0xff]
        %v1559 = vld [vmem:[%s495 + $0x68] sm:$0xff]
        %v1560 = vld [vmem:[%s495 + $0x70] sm:$0xff]
        %v1561 = vld [vmem:[%s495 + $0x78] sm:$0xff]
        %v1562 = vld [vmem:[%s495 + $0x80] sm:$0xff]
        %v1563 = vld [vmem:[%s495 + $0x88] sm:$0xff]
        %v1564 = vld [vmem:[%s495 + $0x90] sm:$0xff]
        %v1565 = vld [vmem:[%s495 + $0x98] sm:$0xff]
        %v1566 = vld [vmem:[%s495 + $0xa0] sm:$0xff]
        %v1567 = vld [vmem:[%s495 + $0xa8] sm:$0xff]
        %v1568 = vld [vmem:[%s495 + $0xb0] sm:$0xff]
        %v1569 = vld [vmem:[%s495 + $0xb8] sm:$0xff]
        %v1570 = vld [vmem:[%s495 + $0xc0] sm:$0xff]
        %v1571 = vld [vmem:[%s495 + $0xc8] sm:$0xff]
        %v1572 = vld [vmem:[%s495 + $0xd0] sm:$0xff]
        %v1573 = vld [vmem:[%s495 + $0xd8] sm:$0xff]
        %v1574 = vld [vmem:[%s495 + $0xe0] sm:$0xff]
        %v1575 = vld [vmem:[%s495 + $0xe8] sm:$0xff]
        %v1576 = vld [vmem:[%s495 + $0xf0] sm:$0xff]
        %v1577 = vld [vmem:[%s495 + $0xf8] sm:$0xff]
        %v1578 = vpack.c.bf16 %v1545, %v1545
        %v1579 = vlaneseq
        %v1580 = vshrl.u32 %v1579, 7
        %v1581 = vsub.s32 0, %v1580
        %v1582 = vrot.slane %v654, %v1581
        %v1583 = vlaneseq
        %v1584 = vshrl.u32 %v1583, 7
        %v1585 = vsub.s32 0, %v1584
        %v1586 = vrot.slane %v656, %v1585
        %v1587 = vlaneseq
        %v1588 = vshrl.u32 %v1587, 7
        %v1589 = vsub.s32 0, %v1588
        %v1590 = vrot.slane %v658, %v1589
        %v1591 = vlaneseq
        %v1592 = vshrl.u32 %v1591, 7
        %v1593 = vsub.s32 0, %v1592
        %v1594 = vrot.slane %v660, %v1593
        %v1627 = vunpack.c.l.b16 %v1546
        %v1628 = vunpack.c.h.b16 %v1546
        %v1629 = vunpack.c.l.b16 %v1547
        %v1630 = vunpack.c.h.b16 %v1547
        %v1631 = vunpack.c.l.b16 %v1548
        %v1632 = vunpack.c.h.b16 %v1548
        %v1633 = vunpack.c.l.b16 %v1549
        %v1634 = vunpack.c.h.b16 %v1549
        %v1635 = vunpack.c.l.b16 %v1550
        %v1636 = vunpack.c.h.b16 %v1550
        %v1637 = vunpack.c.l.b16 %v1551
        %v1638 = vunpack.c.h.b16 %v1551
        %v1639 = vunpack.c.l.b16 %v1552
        %v1640 = vunpack.c.h.b16 %v1552
        %v1641 = vunpack.c.l.b16 %v1553
        %v1642 = vunpack.c.h.b16 %v1553
        %v1643 = vunpack.c.l.b16 %v1554
        %v1644 = vunpack.c.h.b16 %v1554
        %v1645 = vunpack.c.l.b16 %v1555
        %v1646 = vunpack.c.h.b16 %v1555
        %v1647 = vunpack.c.l.b16 %v1556
        %v1648 = vunpack.c.h.b16 %v1556
        %v1649 = vunpack.c.l.b16 %v1557
        %v1650 = vunpack.c.h.b16 %v1557
        %v1651 = vunpack.c.l.b16 %v1558
        %v1652 = vunpack.c.h.b16 %v1558
        %v1653 = vunpack.c.l.b16 %v1559
        %v1654 = vunpack.c.h.b16 %v1559
        %v1655 = vunpack.c.l.b16 %v1560
        %v1656 = vunpack.c.h.b16 %v1560
        %v1657 = vunpack.c.l.b16 %v1561
        %v1658 = vunpack.c.h.b16 %v1561
        %v1659 = vunpack.c.l.b16 %v1562
        %v1660 = vunpack.c.h.b16 %v1562
        %v1661 = vunpack.c.l.b16 %v1563
        %v1662 = vunpack.c.h.b16 %v1563
        %v1663 = vunpack.c.l.b16 %v1564
        %v1664 = vunpack.c.h.b16 %v1564
        %v1665 = vunpack.c.l.b16 %v1565
        %v1666 = vunpack.c.h.b16 %v1565
        %v1667 = vunpack.c.l.b16 %v1566
        %v1668 = vunpack.c.h.b16 %v1566
        %v1669 = vunpack.c.l.b16 %v1567
        %v1670 = vunpack.c.h.b16 %v1567
        %v1671 = vunpack.c.l.b16 %v1568
        %v1672 = vunpack.c.h.b16 %v1568
        %v1673 = vunpack.c.l.b16 %v1569
        %v1674 = vunpack.c.h.b16 %v1569
        %v1675 = vunpack.c.l.b16 %v1570
        %v1676 = vunpack.c.h.b16 %v1570
        %v1677 = vunpack.c.l.b16 %v1571
        %v1678 = vunpack.c.h.b16 %v1571
        %v1679 = vunpack.c.l.b16 %v1572
        %v1680 = vunpack.c.h.b16 %v1572
        %v1681 = vunpack.c.l.b16 %v1573
        %v1682 = vunpack.c.h.b16 %v1573
        %v1683 = vunpack.c.l.b16 %v1574
        %v1684 = vunpack.c.h.b16 %v1574
        %v1685 = vunpack.c.l.b16 %v1575
        %v1686 = vunpack.c.h.b16 %v1575
        %v1687 = vunpack.c.l.b16 %v1576
        %v1688 = vunpack.c.h.b16 %v1576
        %v1689 = vunpack.c.l.b16 %v1577
        %v1690 = vunpack.c.h.b16 %v1577
        %v1691 = vpack.c.b16 %v1631, %v1627
        %v1692 = vpack.c.b16 %v1632, %v1628
        %v1693 = vpack.c.b16 %v1633, %v1629
        %v1694 = vpack.c.b16 %v1634, %v1630
        %v1695 = vpack.c.b16 %v1639, %v1635
        %v1696 = vpack.c.b16 %v1640, %v1636
        %v1697 = vpack.c.b16 %v1641, %v1637
        %v1698 = vpack.c.b16 %v1642, %v1638
        %v1699 = vpack.c.b16 %v1647, %v1643
        %v1700 = vpack.c.b16 %v1648, %v1644
        %v1701 = vpack.c.b16 %v1649, %v1645
        %v1702 = vpack.c.b16 %v1650, %v1646
        %v1703 = vpack.c.b16 %v1655, %v1651
        %v1704 = vpack.c.b16 %v1656, %v1652
        %v1705 = vpack.c.b16 %v1657, %v1653
        %v1706 = vpack.c.b16 %v1658, %v1654
        %v1707 = vpack.c.b16 %v1663, %v1659
        %v1708 = vpack.c.b16 %v1664, %v1660
        %v1709 = vpack.c.b16 %v1665, %v1661
        %v1710 = vpack.c.b16 %v1666, %v1662
        %v1711 = vpack.c.b16 %v1671, %v1667
        %v1712 = vpack.c.b16 %v1672, %v1668
        %v1713 = vpack.c.b16 %v1673, %v1669
        %v1714 = vpack.c.b16 %v1674, %v1670
        %v1715 = vpack.c.b16 %v1679, %v1675
        %v1716 = vpack.c.b16 %v1680, %v1676
        %v1717 = vpack.c.b16 %v1681, %v1677
        %v1718 = vpack.c.b16 %v1682, %v1678
        %v1719 = vpack.c.b16 %v1687, %v1683
        %v1720 = vpack.c.b16 %v1688, %v1684
        %v1721 = vpack.c.b16 %v1689, %v1685
        %v1722 = vpack.c.b16 %v1690, %v1686
        %1755 = vmatprep.subr.bf16.mxu0 %v1720
        %1756 = vmatpush1.bf16.msra.mxu0 %v1719
        %1757 = vmatprep.subr.bf16.mxu0 %v1716
        %1758 = vmatpush1.bf16.msra.mxu0 %v1715
        %1759 = vmatprep.subr.bf16.mxu0 %v1712
        %1760 = vmatpush1.bf16.msra.mxu0 %v1711
        %1761 = vmatprep.subr.bf16.mxu0 %v1708
        %1762 = vmatpush1.bf16.msra.mxu0 %v1707
        %1763 = vmatprep.subr.bf16.mxu0 %v1704
        %1764 = vmatpush1.bf16.msra.mxu0 %v1703
        %1765 = vmatprep.subr.bf16.mxu0 %v1700
        %1766 = vmatpush1.bf16.msra.mxu0 %v1699
        %1767 = vmatprep.subr.bf16.mxu0 %v1696
        %1768 = vmatpush1.bf16.msra.mxu0 %v1695
        %1769 = vmatprep.subr.bf16.mxu0 %v1692
        %1770 = vmatpush1.bf16.msra.mxu0 %v1691
        %1771 = vmatprep.subr.bf16.mxu0 0
        %1772 = vmatpush2.bf16.msra.mxu0 0
        %1773 = vmatprep.subr.bf16.mxu0 0
        %1774 = vmatpush2.bf16.msra.mxu0 0
        %1775 = vmatprep.subr.bf16.mxu0 0
        %1776 = vmatpush2.bf16.msra.mxu0 0
        %1777 = vmatprep.subr.bf16.mxu0 0
        %1778 = vmatpush2.bf16.msra.mxu0 0
        %1779 = vmatprep.subr.bf16.mxu0 0
        %1780 = vmatpush2.bf16.msra.mxu0 0
        %1781 = vmatprep.subr.bf16.mxu0 0
        %1782 = vmatpush2.bf16.msra.mxu0 0
        %1783 = vmatprep.subr.bf16.mxu0 0
        %1784 = vmatpush2.bf16.msra.mxu0 0
        %1785 = vmatprep.subr.bf16.mxu0 0
        %1786 = vmatpush2.bf16.msra.mxu0 0
        %1787 = vmatprep.mubr.bf16.mxu0 0
        %1788 = vmatmul.mubr.bf16.gmra.mxu0 %v1578
        %v1789 = vpop.f32.mrf.mxu0
        %v1790 = vadd.f32 %v1582, %v1789
        %v1791 = vpop.f32.mrf.mxu0
        %v1792 = vadd.f32 %v1586, %v1791
        %v1793 = vpop.f32.mrf.mxu0
        %v1794 = vpop.f32.mrf.mxu0
        %1795 = vdwg.mxu0
        %1796 = vmatprep.subr.bf16.mxu0 %v1722
        %1797 = vmatpush1.bf16.msra.mxu0 %v1721
        %1798 = vmatprep.subr.bf16.mxu0 %v1718
        %1799 = vmatpush1.bf16.msra.mxu0 %v1717
        %1800 = vmatprep.subr.bf16.mxu0 %v1714
        %1801 = vmatpush1.bf16.msra.mxu0 %v1713
        %1802 = vmatprep.subr.bf16.mxu0 %v1710
        %1803 = vmatpush1.bf16.msra.mxu0 %v1709
        %1804 = vmatprep.subr.bf16.mxu0 %v1706
        %1805 = vmatpush1.bf16.msra.mxu0 %v1705
        %1806 = vmatprep.subr.bf16.mxu0 %v1702
        %1807 = vmatpush1.bf16.msra.mxu0 %v1701
        %1808 = vmatprep.subr.bf16.mxu0 %v1698
        %1809 = vmatpush1.bf16.msra.mxu0 %v1697
        %1810 = vmatprep.subr.bf16.mxu0 %v1694
        %1811 = vmatpush1.bf16.msra.mxu0 %v1693
        %1812 = vmatprep.subr.bf16.mxu0 0
        %1813 = vmatpush2.bf16.msra.mxu0 0
        %1814 = vmatprep.subr.bf16.mxu0 0
        %1815 = vmatpush2.bf16.msra.mxu0 0
        %1816 = vmatprep.subr.bf16.mxu0 0
        %1817 = vmatpush2.bf16.msra.mxu0 0
        %1818 = vmatprep.subr.bf16.mxu0 0
        %1819 = vmatpush2.bf16.msra.mxu0 0
        %1820 = vmatprep.subr.bf16.mxu0 0
        %1821 = vmatpush2.bf16.msra.mxu0 0
        %1822 = vmatprep.subr.bf16.mxu0 0
        %1823 = vmatpush2.bf16.msra.mxu0 0
        %1824 = vmatprep.subr.bf16.mxu0 0
        %1825 = vmatpush2.bf16.msra.mxu0 0
        %1826 = vmatprep.subr.bf16.mxu0 0
        %1827 = vmatpush2.bf16.msra.mxu0 0
        %1828 = vmatprep.mubr.bf16.mxu0 0
        %1829 = vmatmul.mubr.bf16.gmra.mxu0 %v1578
        %v1830 = vpop.f32.mrf.mxu0
        %v1831 = vadd.f32 %v1590, %v1830
        %v1832 = vpop.f32.mrf.mxu0
        %v1833 = vadd.f32 %v1594, %v1832
        %v1834 = vpop.f32.mrf.mxu0
        %v1835 = vpop.f32.mrf.mxu0
        %1836 = vdwg.mxu0
        %v1837 = vmul.f32 %v1790, %v1790
        %v1838 = vmul.f32 %v1792, %v1792
        %v1839 = vmul.f32 %v1831, %v1831
        %v1840 = vmul.f32 %v1833, %v1833
        %v1841 = vmul.f32 %v1790, %v1837
        %v1842 = vmul.f32 %v1792, %v1838
        %v1843 = vmul.f32 %v1831, %v1839
        %v1844 = vmul.f32 %v1833, %v1840
        %v1845 = vmul.f32 %v1841, 0.044715
        %v1846 = vmul.f32 %v1842, 0.044715
        %v1847 = vmul.f32 %v1843, 0.044715
        %v1848 = vmul.f32 %v1844, 0.044715
        %v1849 = vadd.f32 %v1790, %v1845
        %v1850 = vadd.f32 %v1792, %v1846
        %v1851 = vadd.f32 %v1831, %v1847
        %v1852 = vadd.f32 %v1833, %v1848
        %v1853 = vmul.f32 %v1849, 0.7978846
        %v1854 = vmul.f32 %v1850, 0.7978846
        %v1855 = vmul.f32 %v1851, 0.7978846
        %v1856 = vmul.f32 %v1852, 0.7978846
        %v1857 = vtanh.pop %v1853
        %v1858 = vtanh.pop %v1854
        %v1859 = vtanh.pop %v1855
        %v1860 = vtanh.pop %v1856
        %v1861 = vadd.f32 %v1857, 1.0
        %v1862 = vadd.f32 %v1858, 1.0
        %v1863 = vadd.f32 %v1859, 1.0
        %v1864 = vadd.f32 %v1860, 1.0
        %v1865 = vmul.f32 %v1861, 0.5
        %v1866 = vmul.f32 %v1862, 0.5
        %v1867 = vmul.f32 %v1863, 0.5
        %v1868 = vmul.f32 %v1864, 0.5
        %v1869 = vmul.f32 %v1790, %v1865
        %v1870 = vmul.f32 %v1792, %v1866
        %v1871 = vmul.f32 %v1831, %v1867
        %v1872 = vmul.f32 %v1833, %v1868
        %v1873 = vld [vmem:[%s413] sm:$0xf]
        %v1874 = vld [vmem:[%s413 + $0x4] sm:$0xf]
        %v1875 = vld [vmem:[%s413 + $0x8] sm:$0xf]
        %v1876 = vld [vmem:[%s413 + $0xc] sm:$0xf]
        %v1877 = vld [vmem:[%s413 + $0x10] sm:$0xf]
        %v1878 = vld [vmem:[%s413 + $0x14] sm:$0xf]
        %v1879 = vld [vmem:[%s413 + $0x18] sm:$0xf]
        %v1880 = vld [vmem:[%s413 + $0x1c] sm:$0xf]
        %v1881 = vld [vmem:[%s413 + $0x20] sm:$0xf]
        %v1882 = vld [vmem:[%s413 + $0x24] sm:$0xf]
        %v1883 = vld [vmem:[%s413 + $0x28] sm:$0xf]
        %v1884 = vld [vmem:[%s413 + $0x2c] sm:$0xf]
        %v1885 = vld [vmem:[%s413 + $0x30] sm:$0xf]
        %v1886 = vld [vmem:[%s413 + $0x34] sm:$0xf]
        %v1887 = vld [vmem:[%s413 + $0x38] sm:$0xf]
        %v1888 = vld [vmem:[%s413 + $0x3c] sm:$0xf]
        %v1889 = vld [vmem:[%s413 + $0x40] sm:$0xf]
        %v1890 = vld [vmem:[%s413 + $0x44] sm:$0xf]
        %v1891 = vld [vmem:[%s413 + $0x48] sm:$0xf]
        %v1892 = vld [vmem:[%s413 + $0x4c] sm:$0xf]
        %v1893 = vld [vmem:[%s413 + $0x50] sm:$0xf]
        %v1894 = vld [vmem:[%s413 + $0x54] sm:$0xf]
        %v1895 = vld [vmem:[%s413 + $0x58] sm:$0xf]
        %v1896 = vld [vmem:[%s413 + $0x5c] sm:$0xf]
        %v1897 = vld [vmem:[%s413 + $0x60] sm:$0xf]
        %v1898 = vld [vmem:[%s413 + $0x64] sm:$0xf]
        %v1899 = vld [vmem:[%s413 + $0x68] sm:$0xf]
        %v1900 = vld [vmem:[%s413 + $0x6c] sm:$0xf]
        %v1901 = vld [vmem:[%s413 + $0x70] sm:$0xf]
        %v1902 = vld [vmem:[%s413 + $0x74] sm:$0xf]
        %v1903 = vld [vmem:[%s413 + $0x78] sm:$0xf]
        %v1904 = vld [vmem:[%s413 + $0x7c] sm:$0xf]
        %v1905 = vld [vmem:[%s413 + $0x80] sm:$0xf]
        %v1906 = vld [vmem:[%s413 + $0x84] sm:$0xf]
        %v1907 = vld [vmem:[%s413 + $0x88] sm:$0xf]
        %v1908 = vld [vmem:[%s413 + $0x8c] sm:$0xf]
        %v1909 = vld [vmem:[%s413 + $0x90] sm:$0xf]
        %v1910 = vld [vmem:[%s413 + $0x94] sm:$0xf]
        %v1911 = vld [vmem:[%s413 + $0x98] sm:$0xf]
        %v1912 = vld [vmem:[%s413 + $0x9c] sm:$0xf]
        %v1913 = vld [vmem:[%s413 + $0xa0] sm:$0xf]
        %v1914 = vld [vmem:[%s413 + $0xa4] sm:$0xf]
        %v1915 = vld [vmem:[%s413 + $0xa8] sm:$0xf]
        %v1916 = vld [vmem:[%s413 + $0xac] sm:$0xf]
        %v1917 = vld [vmem:[%s413 + $0xb0] sm:$0xf]
        %v1918 = vld [vmem:[%s413 + $0xb4] sm:$0xf]
        %v1919 = vld [vmem:[%s413 + $0xb8] sm:$0xf]
        %v1920 = vld [vmem:[%s413 + $0xbc] sm:$0xf]
        %v1921 = vld [vmem:[%s413 + $0xc0] sm:$0xf]
        %v1922 = vld [vmem:[%s413 + $0xc4] sm:$0xf]
        %v1923 = vld [vmem:[%s413 + $0xc8] sm:$0xf]
        %v1924 = vld [vmem:[%s413 + $0xcc] sm:$0xf]
        %v1925 = vld [vmem:[%s413 + $0xd0] sm:$0xf]
        %v1926 = vld [vmem:[%s413 + $0xd4] sm:$0xf]
        %v1927 = vld [vmem:[%s413 + $0xd8] sm:$0xf]
        %v1928 = vld [vmem:[%s413 + $0xdc] sm:$0xf]
        %v1929 = vld [vmem:[%s413 + $0xe0] sm:$0xf]
        %v1930 = vld [vmem:[%s413 + $0xe4] sm:$0xf]
        %v1931 = vld [vmem:[%s413 + $0xe8] sm:$0xf]
        %v1932 = vld [vmem:[%s413 + $0xec] sm:$0xf]
        %v1933 = vld [vmem:[%s413 + $0xf0] sm:$0xf]
        %v1934 = vld [vmem:[%s413 + $0xf4] sm:$0xf]
        %v1935 = vld [vmem:[%s413 + $0xf8] sm:$0xf]
        %v1936 = vld [vmem:[%s413 + $0xfc] sm:$0xf]
        %v1937 = vpack.c.bf16 %v1869, %v1869
        %v1938 = vpack.c.bf16 %v1870, %v1870
        %v1939 = vpack.c.bf16 %v1871, %v1871
        %v1940 = vpack.c.bf16 %v1872, %v1872
        %v2005 = vunpack.c.l.b16 %v1873
        %v2006 = vunpack.c.l.b16 %v1874
        %v2007 = vunpack.c.l.b16 %v1875
        %v2008 = vunpack.c.l.b16 %v1876
        %v2009 = vunpack.c.l.b16 %v1877
        %v2010 = vunpack.c.l.b16 %v1878
        %v2011 = vunpack.c.l.b16 %v1879
        %v2012 = vunpack.c.l.b16 %v1880
        %v2013 = vunpack.c.l.b16 %v1881
        %v2014 = vunpack.c.l.b16 %v1882
        %v2015 = vunpack.c.l.b16 %v1883
        %v2016 = vunpack.c.l.b16 %v1884
        %v2017 = vunpack.c.l.b16 %v1885
        %v2018 = vunpack.c.l.b16 %v1886
        %v2019 = vunpack.c.l.b16 %v1887
        %v2020 = vunpack.c.l.b16 %v1888
        %v2021 = vunpack.c.l.b16 %v1889
        %v2022 = vunpack.c.l.b16 %v1890
        %v2023 = vunpack.c.l.b16 %v1891
        %v2024 = vunpack.c.l.b16 %v1892
        %v2025 = vunpack.c.l.b16 %v1893
        %v2026 = vunpack.c.l.b16 %v1894
        %v2027 = vunpack.c.l.b16 %v1895
        %v2028 = vunpack.c.l.b16 %v1896
        %v2029 = vunpack.c.l.b16 %v1897
        %v2030 = vunpack.c.l.b16 %v1898
        %v2031 = vunpack.c.l.b16 %v1899
        %v2032 = vunpack.c.l.b16 %v1900
        %v2033 = vunpack.c.l.b16 %v1901
        %v2034 = vunpack.c.l.b16 %v1902
        %v2035 = vunpack.c.l.b16 %v1903
        %v2036 = vunpack.c.l.b16 %v1904
        %v2037 = vunpack.c.l.b16 %v1905
        %v2038 = vunpack.c.l.b16 %v1906
        %v2039 = vunpack.c.l.b16 %v1907
        %v2040 = vunpack.c.l.b16 %v1908
        %v2041 = vunpack.c.l.b16 %v1909
        %v2042 = vunpack.c.l.b16 %v1910
        %v2043 = vunpack.c.l.b16 %v1911
        %v2044 = vunpack.c.l.b16 %v1912
        %v2045 = vunpack.c.l.b16 %v1913
        %v2046 = vunpack.c.l.b16 %v1914
        %v2047 = vunpack.c.l.b16 %v1915
        %v2048 = vunpack.c.l.b16 %v1916
        %v2049 = vunpack.c.l.b16 %v1917
        %v2050 = vunpack.c.l.b16 %v1918
        %v2051 = vunpack.c.l.b16 %v1919
        %v2052 = vunpack.c.l.b16 %v1920
        %v2053 = vunpack.c.l.b16 %v1921
        %v2054 = vunpack.c.l.b16 %v1922
        %v2055 = vunpack.c.l.b16 %v1923
        %v2056 = vunpack.c.l.b16 %v1924
        %v2057 = vunpack.c.l.b16 %v1925
        %v2058 = vunpack.c.l.b16 %v1926
        %v2059 = vunpack.c.l.b16 %v1927
        %v2060 = vunpack.c.l.b16 %v1928
        %v2061 = vunpack.c.l.b16 %v1929
        %v2062 = vunpack.c.l.b16 %v1930
        %v2063 = vunpack.c.l.b16 %v1931
        %v2064 = vunpack.c.l.b16 %v1932
        %v2065 = vunpack.c.l.b16 %v1933
        %v2066 = vunpack.c.l.b16 %v1934
        %v2067 = vunpack.c.l.b16 %v1935
        %v2068 = vunpack.c.l.b16 %v1936
        %v2069 = vpack.c.b16 %v2006, %v2005
        %v2070 = vpack.c.b16 %v2008, %v2007
        %v2071 = vpack.c.b16 %v2010, %v2009
        %v2072 = vpack.c.b16 %v2012, %v2011
        %v2073 = vpack.c.b16 %v2014, %v2013
        %v2074 = vpack.c.b16 %v2016, %v2015
        %v2075 = vpack.c.b16 %v2018, %v2017
        %v2076 = vpack.c.b16 %v2020, %v2019
        %v2077 = vpack.c.b16 %v2022, %v2021
        %v2078 = vpack.c.b16 %v2024, %v2023
        %v2079 = vpack.c.b16 %v2026, %v2025
        %v2080 = vpack.c.b16 %v2028, %v2027
        %v2081 = vpack.c.b16 %v2030, %v2029
        %v2082 = vpack.c.b16 %v2032, %v2031
        %v2083 = vpack.c.b16 %v2034, %v2033
        %v2084 = vpack.c.b16 %v2036, %v2035
        %v2085 = vpack.c.b16 %v2038, %v2037
        %v2086 = vpack.c.b16 %v2040, %v2039
        %v2087 = vpack.c.b16 %v2042, %v2041
        %v2088 = vpack.c.b16 %v2044, %v2043
        %v2089 = vpack.c.b16 %v2046, %v2045
        %v2090 = vpack.c.b16 %v2048, %v2047
        %v2091 = vpack.c.b16 %v2050, %v2049
        %v2092 = vpack.c.b16 %v2052, %v2051
        %v2093 = vpack.c.b16 %v2054, %v2053
        %v2094 = vpack.c.b16 %v2056, %v2055
        %v2095 = vpack.c.b16 %v2058, %v2057
        %v2096 = vpack.c.b16 %v2060, %v2059
        %v2097 = vpack.c.b16 %v2062, %v2061
        %v2098 = vpack.c.b16 %v2064, %v2063
        %v2099 = vpack.c.b16 %v2066, %v2065
        %v2100 = vpack.c.b16 %v2068, %v2067
        %2133 = vmatprep.subr.bf16.mxu0 0
        %2134 = vmatpush1.bf16.msra.mxu0 %v2076
        %2135 = vmatprep.subr.bf16.mxu0 0
        %2136 = vmatpush1.bf16.msra.mxu0 %v2075
        %2137 = vmatprep.subr.bf16.mxu0 0
        %2138 = vmatpush1.bf16.msra.mxu0 %v2074
        %2139 = vmatprep.subr.bf16.mxu0 0
        %2140 = vmatpush1.bf16.msra.mxu0 %v2073
        %2141 = vmatprep.subr.bf16.mxu0 0
        %2142 = vmatpush1.bf16.msra.mxu0 %v2072
        %2143 = vmatprep.subr.bf16.mxu0 0
        %2144 = vmatpush1.bf16.msra.mxu0 %v2071
        %2145 = vmatprep.subr.bf16.mxu0 0
        %2146 = vmatpush1.bf16.msra.mxu0 %v2070
        %2147 = vmatprep.subr.bf16.mxu0 0
        %2148 = vmatpush1.bf16.msra.mxu0 %v2069
        %2149 = vmatprep.subr.bf16.mxu0 0
        %2150 = vmatpush2.bf16.msra.mxu0 %v2084
        %2151 = vmatprep.subr.bf16.mxu0 0
        %2152 = vmatpush2.bf16.msra.mxu0 %v2083
        %2153 = vmatprep.subr.bf16.mxu0 0
        %2154 = vmatpush2.bf16.msra.mxu0 %v2082
        %2155 = vmatprep.subr.bf16.mxu0 0
        %2156 = vmatpush2.bf16.msra.mxu0 %v2081
        %2157 = vmatprep.subr.bf16.mxu0 0
        %2158 = vmatpush2.bf16.msra.mxu0 %v2080
        %2159 = vmatprep.subr.bf16.mxu0 0
        %2160 = vmatpush2.bf16.msra.mxu0 %v2079
        %2161 = vmatprep.subr.bf16.mxu0 0
        %2162 = vmatpush2.bf16.msra.mxu0 %v2078
        %2163 = vmatprep.subr.bf16.mxu0 0
        %2164 = vmatpush2.bf16.msra.mxu0 %v2077
        %2165 = vmatprep.mubr.bf16.mxu0 %v1938
        %2166 = vmatmul.mubr.bf16.gmra.mxu0 %v1937
        %v2167 = vpop.f32.mrf.mxu0
        %v2168 = vadd.f32 0.0, %v2167
        %v2169 = vpop.f32.mrf.mxu0
        %v2170 = vpop.f32.mrf.mxu0
        %v2171 = vpop.f32.mrf.mxu0
        %2172 = vdwg.mxu0
        %2173 = vmatprep.subr.bf16.mxu0 0
        %2174 = vmatpush1.bf16.msra.mxu0 %v2092
        %2175 = vmatprep.subr.bf16.mxu0 0
        %2176 = vmatpush1.bf16.msra.mxu0 %v2091
        %2177 = vmatprep.subr.bf16.mxu0 0
        %2178 = vmatpush1.bf16.msra.mxu0 %v2090
        %2179 = vmatprep.subr.bf16.mxu0 0
        %2180 = vmatpush1.bf16.msra.mxu0 %v2089
        %2181 = vmatprep.subr.bf16.mxu0 0
        %2182 = vmatpush1.bf16.msra.mxu0 %v2088
        %2183 = vmatprep.subr.bf16.mxu0 0
        %2184 = vmatpush1.bf16.msra.mxu0 %v2087
        %2185 = vmatprep.subr.bf16.mxu0 0
        %2186 = vmatpush1.bf16.msra.mxu0 %v2086
        %2187 = vmatprep.subr.bf16.mxu0 0
        %2188 = vmatpush1.bf16.msra.mxu0 %v2085
        %2189 = vmatprep.subr.bf16.mxu0 0
        %2190 = vmatpush2.bf16.msra.mxu0 %v2100
        %2191 = vmatprep.subr.bf16.mxu0 0
        %2192 = vmatpush2.bf16.msra.mxu0 %v2099
        %2193 = vmatprep.subr.bf16.mxu0 0
        %2194 = vmatpush2.bf16.msra.mxu0 %v2098
        %2195 = vmatprep.subr.bf16.mxu0 0
        %2196 = vmatpush2.bf16.msra.mxu0 %v2097
        %2197 = vmatprep.subr.bf16.mxu0 0
        %2198 = vmatpush2.bf16.msra.mxu0 %v2096
        %2199 = vmatprep.subr.bf16.mxu0 0
        %2200 = vmatpush2.bf16.msra.mxu0 %v2095
        %2201 = vmatprep.subr.bf16.mxu0 0
        %2202 = vmatpush2.bf16.msra.mxu0 %v2094
        %2203 = vmatprep.subr.bf16.mxu0 0
        %2204 = vmatpush2.bf16.msra.mxu0 %v2093
        %2205 = vmatprep.mubr.bf16.mxu0 %v1940
        %2206 = vmatmul.mubr.bf16.gmra.mxu0 %v1939
        %v2207 = vpop.f32.mrf.mxu0
        %v2208 = vadd.f32 %v2168, %v2207
        %v2209 = vpop.f32.mrf.mxu0
        %v2210 = vpop.f32.mrf.mxu0
        %v2211 = vpop.f32.mrf.mxu0
        %2212 = vdwg.mxu0
        %v2213 = vadd.f32 %v1522, %v2208
        %v2214 = vlaneseq
        %v2215 = vshrl.u32 %v2214, 7
        %v2216 = vsub.s32 4, %v2215
        %v2217 = vrot.slane %v654, %v2216
        %v2218 = vadd.f32 %v2213, %v2217
        %2219 = vst [vmem:[%s499] sm:$0x1f] %v2218
        %p2220 = scmp.eq.s32.totalorder %s31, 1
        // Predicated region
        $region73: #{blip_forward.3} parent=55 // pred_check
          %p2221 = pneg %p2220
        $region74: #{blip_forward.3} parent=55 // pred_check_branch
          %2223 = sbr.rel (%p2221) target = $region76
        $region75: #{blip_forward.3} parent=55 // pred_region
          %v2224 = vld [vmem:[%s8] sm:$0x1]
          %v2225 = vld [vmem:[%s8 + $0x1] sm:$0x1]
          %v2226 = vsel %vm662, %v2218, 0.0
          %2227 = vadd.xlane.f32.xlu0 %v2226
          %v2228 = vpop.xlane.xlu0 %2227
          %v2229 = vmul.f32 %v2228, %v666
          %v2230 = vsub.f32 %v2218, %v2229
          %v2231 = vmul.f32 %v2230, %v2230
          %v2232 = vsel %vm662, %v2231, 0.0
          %2233 = vadd.xlane.f32.xlu0 %v2232
          %v2234 = vpop.xlane.xlu0 %2233
          %v2235 = vmul.f32 %v2234, %v666
          %v2236 = vadd.f32 %v2235, 1e-06
          %v2237 = vrsqrt.pop %v2236
          %v2238 = vmul.f32 %v2230, %v2237
          %v2239 = vlaneseq
          %v2240 = vshrl.u32 %v2239, 7
          %v2241 = vsub.s32 0, %v2240
          %v2242 = vrot.slane %v2224, %v2241
          %v2243 = vmul.f32 %v2238, %v2242
          %v2244 = vlaneseq
          %v2245 = vshrl.u32 %v2244, 7
          %v2246 = vsub.s32 0, %v2245
          %v2247 = vrot.slane %v2225, %v2246
          %v2248 = vadd.f32 %v2243, %v2247
          %2249 = vst [vmem:[%s499] sm:$0x1f] %v2248
        $region76: #{blip_forward.3} parent=55 // pred_fallthru
          _
        %p2250 = scmp.lt.s32.totalorder %s30, 1
        %s2251 = scalar_select %p2250, %s30, 1
        %s2252 = smul.addr %s2251, 8
        %s2253 = scalar_lea.vmem %s9, %s2252
        // Predicated region
        $region77: #{blip_forward.3} parent=55 // pred_check
          %p2254 = pneg %p275
        $region78: #{blip_forward.3} parent=55 // pred_check_branch
          %2256 = sbr.rel (%p2254) target = $region80
        $region79: #{blip_forward.3} parent=55 // pred_region
          _
        $region80: #{blip_forward.3} parent=55 // pred_fallthru
          _
      $region56: #{blip_forward.3} parent=5 // pred_fallthru
        _
      %p2257 = scmp.le.s32.totalorder 2, %s21
      // Predicated region
      $region81: #{blip_forward.3} parent=5 // pred_check
        %p2258 = pneg %p2257
      $region82: #{blip_forward.3} parent=5 // pred_check_branch
        %2260 = sbr.rel (%p2258) target = $region84
      $region83: #{blip_forward.3} parent=5 // pred_region
        %s2261 = ssub.s32 %s21, 2
        // Predicated region
        $region85: #{blip_forward.3} parent=83 // pred_check
          %p2262 = pneg %p281
        $region86: #{blip_forward.3} parent=83 // pred_check_branch
          %2264 = sbr.rel (%p2262) target = $region88
        $region87: #{blip_forward.3} parent=83 // pred_region
          %p2265 = scmp.lt.s32.totalorder %s32, 1
          %s2266 = scalar_select %p2265, %s32, 1
          %s2267 = smul.addr %s2266, 8
          %s2268 = scalar_lea.vmem %s9, %s2267
        $region88: #{blip_forward.3} parent=83 // pred_fallthru
          _
      $region84: #{blip_forward.3} parent=5 // pred_fallthru
        _
    $region6: #{blip_forward.3} parent=1 // loop_footer
      %s25 = sadd.s32 1, %s21
    $region7: #{blip_forward.3} parent=1 // loop_footer_branch
      %20 = sbr.rel target = $region3
    $region8: #{blip_forward.3} parent=1 // loop_exit
      _
    %2269 = vsyncpa [#allocation4], 1
    %s2270 = scalar_lea.sflag [#allocation4], 1
    %2271 = vsyncpa %s2270, 1
    %2272 = vsyncpa [#allocation6], 1
    %s2273 = scalar_lea.sflag [#allocation6], 1
    %2274 = vsyncpa %s2273, 1

</llo_original>
